<compile_context>
chip_gen: v7x
topology: tpu7x:2x2x1
jax: 0.10.0
libtpu: 0.0.40
codegen_flags: <defaults>
</compile_context>

<pallas_src>
import jax
import jax.numpy as jnp
from jax import lax
from jax.experimental import pallas as pl
from jax.experimental.pallas import tpu as pltpu


# ----------------------------------------------------------------------------
# Fused Pallas kernel: whole DWRSU4F forward for one batch element per step
# ----------------------------------------------------------------------------
def _make_dwrsu4f_kernel(H, W, WP):
    P = H * WP  # flat padded spatial size (lane axis)

    def shift(x, s):
        """out[:, i] = x[:, i + s] (zero fill outside [0, P)); s is static."""
        if s == 0:
            return x
        c = x.shape[0]
        z = jnp.zeros((c, abs(s)), x.dtype)
        if s > 0:
            return jnp.concatenate([x[:, s:], z], axis=1)
        return jnp.concatenate([z, x[:, :P + s]], axis=1)

    def dw_block(x, dwT, pwT, sc, bi, cmask):
        """Depthwise 3x3 (pad=1) + pointwise 1x1 + folded BN + ReLU.

        x: (Cin, P), dwT: (Cin, 9), pwT: (Cout, Cin), sc/bi: (Cout, 1).
        """
        acc = x * dwT[:, 4:5]                        # center tap (dy=0, dx=0)
        for k in range(9):
            if k == 4:
                continue
            dy, dx = k // 3 - 1, k % 3 - 1
            acc = acc + shift(x, dy * WP + dx) * dwT[:, k:k + 1]
        z = jnp.dot(pwT, acc, preferred_element_type=jnp.float32)
        return jnp.maximum(z * sc + bi, 0.0) * cmask

    def dense_block(x, wd, sc, bi, cmask):
        """Dense 3x3 conv, dilation=2, pad=2 + folded BN + ReLU.

        Single K = 9*Cin matmul on an in-kernel im2col slab.
        x: (Cin, P), wd: (Cout, 9*Cin), sc/bi: (Cout, 1).
        """
        cols = [shift(x, 2 * (k // 3 - 1) * WP + 2 * (k % 3 - 1))
                for k in range(9)]
        patches = jnp.concatenate(cols, axis=0)      # (9*Cin, P)
        z = jnp.dot(wd, patches, preferred_element_type=jnp.float32)
        return jnp.maximum(z * sc + bi, 0.0) * cmask

    def kernel(*refs):
        # refs = [x, cmask, <31 weight refs>, out]
        x_ref, cmask_ref = refs[0], refs[1]
        o_ref = refs[-1]
        wrefs = refs[2:-1]
        cmask = cmask_ref[...]                       # (1, P) pad-column mask

        cursor = [0]

        def take(n):
            vals = [wrefs[cursor[0] + i][...] for i in range(n)]
            cursor[0] += n
            return vals

        x = x_ref[0]                                           # (in_ch, P)
        x = dw_block(x, *take(4), cmask)                       # in_out
        x_res0 = x
        x = dw_block(x, *take(4), cmask)                       # out_mid
        x_res1 = x
        x = dw_block(x, *take(4), cmask)                       # mid_mid_dilation2
        x_res2 = x
        x = dw_block(x, *take(4), cmask)                       # mid_mid_dilation4
        x_res3 = x
        x = dw_block(x, *take(4), cmask)                       # mid_mid_dilation8
        x = dw_block(jnp.concatenate([x, x_res3], axis=0),     # mid2_mid_dilation4
                     *take(4), cmask)
        x = dense_block(jnp.concatenate([x, x_res2], axis=0),  # mid2_mid_dilation2
                        *take(3), cmask)
        x = dw_block(jnp.concatenate([x, x_res1], axis=0),     # mid2_out
                     *take(4), cmask)
        o_ref[0] = x + x_res0                                  # final residual

    return kernel


# ----------------------------------------------------------------------------
# Wrapper: weight re-layout + single pallas_call
# ----------------------------------------------------------------------------
def _prep_dw(dw, pw, scale, bias):
    """dw: (3,3,Cin), pw: (Cin,Cout), scale/bias: (Cout,) -> kernel layouts."""
    cin = dw.shape[2]
    cout = pw.shape[1]
    dwT = dw.reshape(9, cin).T                       # (Cin, 9)
    pwT = pw.T                                       # (Cout, Cin)
    return [dwT, pwT, scale.reshape(cout, 1), bias.reshape(cout, 1)]


def _prep_dense(w, scale, bias):
    """w: (3,3,Cin,Cout) HWIO -> (Cout, 9*Cin) matching the kernel's im2col."""
    cin, cout = w.shape[2], w.shape[3]
    wd = jnp.transpose(w.reshape(9, cin, cout), (2, 0, 1)).reshape(cout, 9 * cin)
    return [wd, scale.reshape(cout, 1), bias.reshape(cout, 1)]


def dwrsu4f_forward(x_nchw, p):
    """Fused DWRSU4F forward.  x_nchw: (N, in_ch, H, W) -> (N, out_ch, H, W)."""
    N, Cin, H, W = x_nchw.shape
    WP = W + 4                                # 2 zero columns per side (d<=2 halo)
    P = H * WP
    Cout = p["in_out"][1].shape[1]            # out_ch

    # One cheap input pad; the kernel keeps this (C, H*WP) lane-dense layout.
    xp = jnp.pad(x_nchw, ((0, 0), (0, 0), (0, 0), (2, 2))).reshape(N, Cin, P)
    col = jnp.arange(P, dtype=jnp.int32) % WP
    cmask = ((col >= 2) & (col < W + 2)).astype(jnp.float32).reshape(1, P)

    flat = []
    flat += _prep_dw(*p["in_out"])
    flat += _prep_dw(*p["out_mid"])
    flat += _prep_dw(*p["mid_mid_d2"])
    flat += _prep_dw(*p["mid_mid_d4"])
    flat += _prep_dw(*p["mid_mid_d8"])
    flat += _prep_dw(*p["mid2_mid_d4"])
    flat += _prep_dense(*p["mid2_mid_d2"])
    flat += _prep_dw(*p["mid2_out"])

    in_specs = [pl.BlockSpec((1, Cin, P), lambda n: (n, 0, 0)),
                pl.BlockSpec((1, P), lambda n: (0, 0))]
    for a in flat:
        in_specs.append(pl.BlockSpec(a.shape, lambda n, _nd=a.ndim: (0,) * _nd))

    out = pl.pallas_call(
        _make_dwrsu4f_kernel(H, W, WP),
        out_shape=jax.ShapeDtypeStruct((N, Cout, P), jnp.float32),
        grid=(N,),
        in_specs=in_specs,
        out_specs=pl.BlockSpec((1, Cout, P), lambda n: (n, 0, 0)),
        compiler_params=pltpu.CompilerParams(
            dimension_semantics=("parallel",)),
    )(xp, cmask, *flat)

    # Drop the zero pad columns -> NCHW output.
    return out.reshape(N, Cout, H, WP)[:, :, :, 2:2 + W]


# ----------------------------------------------------------------------------
# Pure-JAX reference (lax.conv, NHWC) for correctness check
# ----------------------------------------------------------------------------
_DN = ("NHWC", "HWIO", "NHWC")


def _ref_dw_block(x, dw, pw, scale, bias):
    Cin = x.shape[-1]
    y = lax.conv_general_dilated(x, dw.reshape(3, 3, 1, Cin), (1, 1),
                                 ((1, 1), (1, 1)), dimension_numbers=_DN,
                                 feature_group_count=Cin)
    y = lax.conv_general_dilated(y, pw.reshape(1, 1, *pw.shape), (1, 1),
                                 "VALID", dimension_numbers=_DN)
    return jnp.maximum(y * scale + bias, 0.0)


def _ref_d2_block(x, w, scale, bias):
    y = lax.conv_general_dilated(x, w, (1, 1), ((2, 2), (2, 2)),
                                 rhs_dilation=(2, 2), dimension_numbers=_DN)
    return jnp.maximum(y * scale + bias, 0.0)


def dwrsu4f_ref(x_nhwc, p):
    x = _ref_dw_block(x_nhwc, *p["in_out"])
    x_res0 = x
    x = _ref_dw_block(x, *p["out_mid"])
    x_res1 = x
    x = _ref_dw_block(x, *p["mid_mid_d2"])
    x_res2 = x
    x = _ref_dw_block(x, *p["mid_mid_d4"])
    x_res3 = x
    x = _ref_dw_block(x, *p["mid_mid_d8"])
    x = _ref_dw_block(jnp.concatenate([x, x_res3], -1), *p["mid2_mid_d4"])
    x = _ref_d2_block(jnp.concatenate([x, x_res2], -1), *p["mid2_mid_d2"])
    x = _ref_dw_block(jnp.concatenate([x, x_res1], -1), *p["mid2_out"]) + x_res0
    return x


# ----------------------------------------------------------------------------
# Deterministic parameter construction (folded inference-mode BN)
# ----------------------------------------------------------------------------
def _fold_bn(kg, kb, km, kv, c, eps=1e-5):
    gamma = 1.0 + 0.1 * jax.random.normal(kg, (c,), jnp.float32)
    beta = 0.1 * jax.random.normal(kb, (c,), jnp.float32)
    rmean = 0.1 * jax.random.normal(km, (c,), jnp.float32)
    rvar = 0.9 + 0.1 * jnp.abs(jax.random.normal(kv, (c,), jnp.float32))
    scale = gamma / jnp.sqrt(rvar + eps)
    bias = beta - rmean * scale
    return scale, bias


def make_dw_block_params(key, cin, cout):
    ks = jax.random.split(key, 6)
    dw = 0.2 * jax.random.normal(ks[0], (3, 3, cin), jnp.float32)
    pw = jax.random.normal(ks[1], (cin, cout), jnp.float32) / jnp.sqrt(cin)
    scale, bias = _fold_bn(ks[2], ks[3], ks[4], ks[5], cout)
    return dw, pw, scale, bias


def make_dense_block_params(key, cin, cout):
    ks = jax.random.split(key, 5)
    w = jax.random.normal(ks[0], (3, 3, cin, cout), jnp.float32) / jnp.sqrt(9 * cin)
    scale, bias = _fold_bn(ks[1], ks[2], ks[3], ks[4], cout)
    return w, scale, bias


if __name__ == "__main__":
    N, H, W = 2, 16, 16
    in_ch, mid_ch, out_ch = 4, 8, 8

    root = jax.random.PRNGKey(0)
    keys = jax.random.split(root, 10)

    params = {
        "in_out":       make_dw_block_params(keys[0], in_ch, out_ch),
        "out_mid":      make_dw_block_params(keys[1], out_ch, mid_ch),
        "mid_mid_d2":   make_dw_block_params(keys[2], mid_ch, mid_ch),
        "mid_mid_d4":   make_dw_block_params(keys[3], mid_ch, mid_ch),
        "mid_mid_d8":   make_dw_block_params(keys[4], mid_ch, mid_ch),
        "mid2_mid_d4":  make_dw_block_params(keys[5], 2 * mid_ch, mid_ch),
        "mid2_mid_d2":  make_dense_block_params(keys[6], 2 * mid_ch, mid_ch),
        "mid2_out":     make_dw_block_params(keys[7], 2 * mid_ch, out_ch),
    }

    # Input in PyTorch NCHW convention (matches the nn.Module spec).
    x_nchw = jax.random.normal(keys[8], (N, in_ch, H, W), jnp.float32)

    out = jax.jit(dwrsu4f_forward)(x_nchw, params)
    out = jax.block_until_ready(out)

    # Reference (NHWC lax convs), transposed back to NCHW for comparison.
    x_nhwc = jnp.transpose(x_nchw, (0, 2, 3, 1))
    ref = jnp.transpose(dwrsu4f_ref(x_nhwc, params), (0, 3, 1, 2))

    assert out.shape == (N, out_ch, H, W)
    max_err = float(jnp.max(jnp.abs(out - ref)))
    assert jnp.allclose(out, ref, atol=1e-4, rtol=1e-4), max_err

    print("KERNEL_OK")
</pallas_src>

<mosaic_0001>
module attributes {stable_mosaic.version = 11 : i64} {
  func.func @kernel(%arg0: i32, %arg1: memref<1x4x320xf32, #tpu.memory_space<vmem>>, %arg2: memref<1x320xf32, #tpu.memory_space<vmem>>, %arg3: memref<4x9xf32, #tpu.memory_space<vmem>>, %arg4: memref<8x4xf32, #tpu.memory_space<vmem>>, %arg5: memref<8x1xf32, #tpu.memory_space<vmem>>, %arg6: memref<8x1xf32, #tpu.memory_space<vmem>>, %arg7: memref<8x9xf32, #tpu.memory_space<vmem>>, %arg8: memref<8x8xf32, #tpu.memory_space<vmem>>, %arg9: memref<8x1xf32, #tpu.memory_space<vmem>>, %arg10: memref<8x1xf32, #tpu.memory_space<vmem>>, %arg11: memref<8x9xf32, #tpu.memory_space<vmem>>, %arg12: memref<8x8xf32, #tpu.memory_space<vmem>>, %arg13: memref<8x1xf32, #tpu.memory_space<vmem>>, %arg14: memref<8x1xf32, #tpu.memory_space<vmem>>, %arg15: memref<8x9xf32, #tpu.memory_space<vmem>>, %arg16: memref<8x8xf32, #tpu.memory_space<vmem>>, %arg17: memref<8x1xf32, #tpu.memory_space<vmem>>, %arg18: memref<8x1xf32, #tpu.memory_space<vmem>>, %arg19: memref<8x9xf32, #tpu.memory_space<vmem>>, %arg20: memref<8x8xf32, #tpu.memory_space<vmem>>, %arg21: memref<8x1xf32, #tpu.memory_space<vmem>>, %arg22: memref<8x1xf32, #tpu.memory_space<vmem>>, %arg23: memref<16x9xf32, #tpu.memory_space<vmem>>, %arg24: memref<8x16xf32, #tpu.memory_space<vmem>>, %arg25: memref<8x1xf32, #tpu.memory_space<vmem>>, %arg26: memref<8x1xf32, #tpu.memory_space<vmem>>, %arg27: memref<8x144xf32, #tpu.memory_space<vmem>>, %arg28: memref<8x1xf32, #tpu.memory_space<vmem>>, %arg29: memref<8x1xf32, #tpu.memory_space<vmem>>, %arg30: memref<16x9xf32, #tpu.memory_space<vmem>>, %arg31: memref<8x16xf32, #tpu.memory_space<vmem>>, %arg32: memref<8x1xf32, #tpu.memory_space<vmem>>, %arg33: memref<8x1xf32, #tpu.memory_space<vmem>>, %arg34: memref<1x8x320xf32, #tpu.memory_space<vmem>>) attributes {dimension_semantics = [#tpu.dimension_semantics<parallel>], iteration_bounds = array<i64: 2>, scalar_prefetch = 0 : i64, scratch_operands = 0 : i64, tpu.core_type = #tpu.core_type<tc>, window_params = [{transform_indices = @transform_0, window_bounds = array<i64: 1, 4, 320>}, {pipeline_mode = #tpu.pipeline_mode<synchronous>, transform_indices = @transform_1, window_bounds = array<i64: 1, 320>}, {pipeline_mode = #tpu.pipeline_mode<synchronous>, transform_indices = @transform_2, window_bounds = array<i64: 4, 9>}, {pipeline_mode = #tpu.pipeline_mode<synchronous>, transform_indices = @transform_3, window_bounds = array<i64: 8, 4>}, {pipeline_mode = #tpu.pipeline_mode<synchronous>, transform_indices = @transform_4, window_bounds = array<i64: 8, 1>}, {pipeline_mode = #tpu.pipeline_mode<synchronous>, transform_indices = @transform_5, window_bounds = array<i64: 8, 1>}, {pipeline_mode = #tpu.pipeline_mode<synchronous>, transform_indices = @transform_6, window_bounds = array<i64: 8, 9>}, {pipeline_mode = #tpu.pipeline_mode<synchronous>, transform_indices = @transform_7, window_bounds = array<i64: 8, 8>}, {pipeline_mode = #tpu.pipeline_mode<synchronous>, transform_indices = @transform_8, window_bounds = array<i64: 8, 1>}, {pipeline_mode = #tpu.pipeline_mode<synchronous>, transform_indices = @transform_9, window_bounds = array<i64: 8, 1>}, {pipeline_mode = #tpu.pipeline_mode<synchronous>, transform_indices = @transform_10, window_bounds = array<i64: 8, 9>}, {pipeline_mode = #tpu.pipeline_mode<synchronous>, transform_indices = @transform_11, window_bounds = array<i64: 8, 8>}, {pipeline_mode = #tpu.pipeline_mode<synchronous>, transform_indices = @transform_12, window_bounds = array<i64: 8, 1>}, {pipeline_mode = #tpu.pipeline_mode<synchronous>, transform_indices = @transform_13, window_bounds = array<i64: 8, 1>}, {pipeline_mode = #tpu.pipeline_mode<synchronous>, transform_indices = @transform_14, window_bounds = array<i64: 8, 9>}, {pipeline_mode = #tpu.pipeline_mode<synchronous>, transform_indices = @transform_15, window_bounds = array<i64: 8, 8>}, {pipeline_mode = #tpu.pipeline_mode<synchronous>, transform_indices = @transform_16, window_bounds = array<i64: 8, 1>}, {pipeline_mode = #tpu.pipeline_mode<synchronous>, transform_indices = @transform_17, window_bounds = array<i64: 8, 1>}, {pipeline_mode = #tpu.pipeline_mode<synchronous>, transform_indices = @transform_18, window_bounds = array<i64: 8, 9>}, {pipeline_mode = #tpu.pipeline_mode<synchronous>, transform_indices = @transform_19, window_bounds = array<i64: 8, 8>}, {pipeline_mode = #tpu.pipeline_mode<synchronous>, transform_indices = @transform_20, window_bounds = array<i64: 8, 1>}, {pipeline_mode = #tpu.pipeline_mode<synchronous>, transform_indices = @transform_21, window_bounds = array<i64: 8, 1>}, {pipeline_mode = #tpu.pipeline_mode<synchronous>, transform_indices = @transform_22, window_bounds = array<i64: 16, 9>}, {pipeline_mode = #tpu.pipeline_mode<synchronous>, transform_indices = @transform_23, window_bounds = array<i64: 8, 16>}, {pipeline_mode = #tpu.pipeline_mode<synchronous>, transform_indices = @transform_24, window_bounds = array<i64: 8, 1>}, {pipeline_mode = #tpu.pipeline_mode<synchronous>, transform_indices = @transform_25, window_bounds = array<i64: 8, 1>}, {pipeline_mode = #tpu.pipeline_mode<synchronous>, transform_indices = @transform_26, window_bounds = array<i64: 8, 144>}, {pipeline_mode = #tpu.pipeline_mode<synchronous>, transform_indices = @transform_27, window_bounds = array<i64: 8, 1>}, {pipeline_mode = #tpu.pipeline_mode<synchronous>, transform_indices = @transform_28, window_bounds = array<i64: 8, 1>}, {pipeline_mode = #tpu.pipeline_mode<synchronous>, transform_indices = @transform_29, window_bounds = array<i64: 16, 9>}, {pipeline_mode = #tpu.pipeline_mode<synchronous>, transform_indices = @transform_30, window_bounds = array<i64: 8, 16>}, {pipeline_mode = #tpu.pipeline_mode<synchronous>, transform_indices = @transform_31, window_bounds = array<i64: 8, 1>}, {pipeline_mode = #tpu.pipeline_mode<synchronous>, transform_indices = @transform_32, window_bounds = array<i64: 8, 1>}, {transform_indices = @transform_33, window_bounds = array<i64: 1, 8, 320>}]} {
    %c0 = arith.constant 0 : index
    %c0_0 = arith.constant 0 : index
    %0 = vector.load %arg2[%c0, %c0_0] : memref<1x320xf32, #tpu.memory_space<vmem>>, vector<1x320xf32>
    %c0_1 = arith.constant 0 : index
    %c0_2 = arith.constant 0 : index
    %c0_3 = arith.constant 0 : index
    %1 = vector.load %arg1[%c0_1, %c0_2, %c0_3] : memref<1x4x320xf32, #tpu.memory_space<vmem>>, vector<1x4x320xf32>
    %2 = vector.shape_cast %1 : vector<1x4x320xf32> to vector<4x320xf32>
    %c0_4 = arith.constant 0 : index
    %c0_5 = arith.constant 0 : index
    %3 = vector.load %arg3[%c0_4, %c0_5] : memref<4x9xf32, #tpu.memory_space<vmem>>, vector<4x9xf32>
    %c0_6 = arith.constant 0 : index
    %c0_7 = arith.constant 0 : index
    %4 = vector.load %arg4[%c0_6, %c0_7] : memref<8x4xf32, #tpu.memory_space<vmem>>, vector<8x4xf32>
    %c0_8 = arith.constant 0 : index
    %c0_9 = arith.constant 0 : index
    %5 = vector.load %arg5[%c0_8, %c0_9] : memref<8x1xf32, #tpu.memory_space<vmem>>, vector<8x1xf32>
    %c0_10 = arith.constant 0 : index
    %c0_11 = arith.constant 0 : index
    %6 = vector.load %arg6[%c0_10, %c0_11] : memref<8x1xf32, #tpu.memory_space<vmem>>, vector<8x1xf32>
    %7 = vector.extract_strided_slice %3 {offsets = [0, 4], sizes = [4, 1], strides = [1, 1]} : vector<4x9xf32> to vector<4x1xf32>
    %8 = vector.broadcast %7 : vector<4x1xf32> to vector<4x320xf32>
    %9 = arith.mulf %2, %8 : vector<4x320xf32>
    %cst = arith.constant 0.000000e+00 : f32
    %10 = vector.broadcast %cst : f32 to vector<4x21xf32>
    %11 = vector.extract_strided_slice %2 {offsets = [0, 0], sizes = [4, 299], strides = [1, 1]} : vector<4x320xf32> to vector<4x299xf32>
    %12 = tpu.concatenate %10, %11 in 1 : vector<4x21xf32>, vector<4x299xf32> -> vector<4x320xf32>
    %13 = vector.extract_strided_slice %3 {offsets = [0, 0], sizes = [4, 1], strides = [1, 1]} : vector<4x9xf32> to vector<4x1xf32>
    %14 = vector.broadcast %13 : vector<4x1xf32> to vector<4x320xf32>
    %15 = arith.mulf %12, %14 : vector<4x320xf32>
    %16 = arith.addf %9, %15 : vector<4x320xf32>
    %cst_12 = arith.constant 0.000000e+00 : f32
    %17 = vector.broadcast %cst_12 : f32 to vector<4x20xf32>
    %18 = vector.extract_strided_slice %2 {offsets = [0, 0], sizes = [4, 300], strides = [1, 1]} : vector<4x320xf32> to vector<4x300xf32>
    %19 = tpu.concatenate %17, %18 in 1 : vector<4x20xf32>, vector<4x300xf32> -> vector<4x320xf32>
    %20 = vector.extract_strided_slice %3 {offsets = [0, 1], sizes = [4, 1], strides = [1, 1]} : vector<4x9xf32> to vector<4x1xf32>
    %21 = vector.broadcast %20 : vector<4x1xf32> to vector<4x320xf32>
    %22 = arith.mulf %19, %21 : vector<4x320xf32>
    %23 = arith.addf %16, %22 : vector<4x320xf32>
    %cst_13 = arith.constant 0.000000e+00 : f32
    %24 = vector.broadcast %cst_13 : f32 to vector<4x19xf32>
    %25 = vector.extract_strided_slice %2 {offsets = [0, 0], sizes = [4, 301], strides = [1, 1]} : vector<4x320xf32> to vector<4x301xf32>
    %26 = tpu.concatenate %24, %25 in 1 : vector<4x19xf32>, vector<4x301xf32> -> vector<4x320xf32>
    %27 = vector.extract_strided_slice %3 {offsets = [0, 2], sizes = [4, 1], strides = [1, 1]} : vector<4x9xf32> to vector<4x1xf32>
    %28 = vector.broadcast %27 : vector<4x1xf32> to vector<4x320xf32>
    %29 = arith.mulf %26, %28 : vector<4x320xf32>
    %30 = arith.addf %23, %29 : vector<4x320xf32>
    %cst_14 = arith.constant 0.000000e+00 : f32
    %31 = vector.broadcast %cst_14 : f32 to vector<4x1xf32>
    %32 = vector.extract_strided_slice %2 {offsets = [0, 0], sizes = [4, 319], strides = [1, 1]} : vector<4x320xf32> to vector<4x319xf32>
    %33 = tpu.concatenate %31, %32 in 1 : vector<4x1xf32>, vector<4x319xf32> -> vector<4x320xf32>
    %34 = vector.extract_strided_slice %3 {offsets = [0, 3], sizes = [4, 1], strides = [1, 1]} : vector<4x9xf32> to vector<4x1xf32>
    %35 = vector.broadcast %34 : vector<4x1xf32> to vector<4x320xf32>
    %36 = arith.mulf %33, %35 : vector<4x320xf32>
    %37 = arith.addf %30, %36 : vector<4x320xf32>
    %cst_15 = arith.constant 0.000000e+00 : f32
    %38 = vector.broadcast %cst_15 : f32 to vector<4x1xf32>
    %39 = vector.extract_strided_slice %2 {offsets = [0, 1], sizes = [4, 319], strides = [1, 1]} : vector<4x320xf32> to vector<4x319xf32>
    %40 = tpu.concatenate %39, %38 in 1 : vector<4x319xf32>, vector<4x1xf32> -> vector<4x320xf32>
    %41 = vector.extract_strided_slice %3 {offsets = [0, 5], sizes = [4, 1], strides = [1, 1]} : vector<4x9xf32> to vector<4x1xf32>
    %42 = vector.broadcast %41 : vector<4x1xf32> to vector<4x320xf32>
    %43 = arith.mulf %40, %42 : vector<4x320xf32>
    %44 = arith.addf %37, %43 : vector<4x320xf32>
    %cst_16 = arith.constant 0.000000e+00 : f32
    %45 = vector.broadcast %cst_16 : f32 to vector<4x19xf32>
    %46 = vector.extract_strided_slice %2 {offsets = [0, 19], sizes = [4, 301], strides = [1, 1]} : vector<4x320xf32> to vector<4x301xf32>
    %47 = tpu.concatenate %46, %45 in 1 : vector<4x301xf32>, vector<4x19xf32> -> vector<4x320xf32>
    %48 = vector.extract_strided_slice %3 {offsets = [0, 6], sizes = [4, 1], strides = [1, 1]} : vector<4x9xf32> to vector<4x1xf32>
    %49 = vector.broadcast %48 : vector<4x1xf32> to vector<4x320xf32>
    %50 = arith.mulf %47, %49 : vector<4x320xf32>
    %51 = arith.addf %44, %50 : vector<4x320xf32>
    %cst_17 = arith.constant 0.000000e+00 : f32
    %52 = vector.broadcast %cst_17 : f32 to vector<4x20xf32>
    %53 = vector.extract_strided_slice %2 {offsets = [0, 20], sizes = [4, 300], strides = [1, 1]} : vector<4x320xf32> to vector<4x300xf32>
    %54 = tpu.concatenate %53, %52 in 1 : vector<4x300xf32>, vector<4x20xf32> -> vector<4x320xf32>
    %55 = vector.extract_strided_slice %3 {offsets = [0, 7], sizes = [4, 1], strides = [1, 1]} : vector<4x9xf32> to vector<4x1xf32>
    %56 = vector.broadcast %55 : vector<4x1xf32> to vector<4x320xf32>
    %57 = arith.mulf %54, %56 : vector<4x320xf32>
    %58 = arith.addf %51, %57 : vector<4x320xf32>
    %cst_18 = arith.constant 0.000000e+00 : f32
    %59 = vector.broadcast %cst_18 : f32 to vector<4x21xf32>
    %60 = vector.extract_strided_slice %2 {offsets = [0, 21], sizes = [4, 299], strides = [1, 1]} : vector<4x320xf32> to vector<4x299xf32>
    %61 = tpu.concatenate %60, %59 in 1 : vector<4x299xf32>, vector<4x21xf32> -> vector<4x320xf32>
    %62 = vector.extract_strided_slice %3 {offsets = [0, 8], sizes = [4, 1], strides = [1, 1]} : vector<4x9xf32> to vector<4x1xf32>
    %63 = vector.broadcast %62 : vector<4x1xf32> to vector<4x320xf32>
    %64 = arith.mulf %61, %63 : vector<4x320xf32>
    %65 = arith.addf %58, %64 : vector<4x320xf32>
    %cst_19 = arith.constant dense<0.000000e+00> : vector<8x320xf32>
    %66 = tpu.matmul %4, %65, %cst_19 {dimension_numbers = #tpu.dot_dimension_numbers<[1], [0], [0], [1], [0, 0, 1, 1], [], []>} : vector<8x4xf32>, vector<4x320xf32>, vector<8x320xf32> -> vector<8x320xf32>
    %67 = vector.broadcast %5 : vector<8x1xf32> to vector<8x320xf32>
    %68 = arith.mulf %66, %67 : vector<8x320xf32>
    %69 = vector.broadcast %6 : vector<8x1xf32> to vector<8x320xf32>
    %70 = arith.addf %68, %69 : vector<8x320xf32>
    %cst_20 = arith.constant 0.000000e+00 : f32
    %71 = vector.broadcast %cst_20 : f32 to vector<8x320xf32>
    %72 = arith.maximumf %70, %71 : vector<8x320xf32>
    %73 = vector.broadcast %0 : vector<1x320xf32> to vector<8x320xf32>
    %74 = arith.mulf %72, %73 : vector<8x320xf32>
    %c0_21 = arith.constant 0 : index
    %c0_22 = arith.constant 0 : index
    %75 = vector.load %arg7[%c0_21, %c0_22] : memref<8x9xf32, #tpu.memory_space<vmem>>, vector<8x9xf32>
    %c0_23 = arith.constant 0 : index
    %c0_24 = arith.constant 0 : index
    %76 = vector.load %arg8[%c0_23, %c0_24] : memref<8x8xf32, #tpu.memory_space<vmem>>, vector<8x8xf32>
    %c0_25 = arith.constant 0 : index
    %c0_26 = arith.constant 0 : index
    %77 = vector.load %arg9[%c0_25, %c0_26] : memref<8x1xf32, #tpu.memory_space<vmem>>, vector<8x1xf32>
    %c0_27 = arith.constant 0 : index
    %c0_28 = arith.constant 0 : index
    %78 = vector.load %arg10[%c0_27, %c0_28] : memref<8x1xf32, #tpu.memory_space<vmem>>, vector<8x1xf32>
    %79 = vector.extract_strided_slice %75 {offsets = [0, 4], sizes = [8, 1], strides = [1, 1]} : vector<8x9xf32> to vector<8x1xf32>
    %80 = vector.broadcast %79 : vector<8x1xf32> to vector<8x320xf32>
    %81 = arith.mulf %74, %80 : vector<8x320xf32>
    %cst_29 = arith.constant 0.000000e+00 : f32
    %82 = vector.broadcast %cst_29 : f32 to vector<8x21xf32>
    %83 = vector.extract_strided_slice %74 {offsets = [0, 0], sizes = [8, 299], strides = [1, 1]} : vector<8x320xf32> to vector<8x299xf32>
    %84 = tpu.concatenate %82, %83 in 1 : vector<8x21xf32>, vector<8x299xf32> -> vector<8x320xf32>
    %85 = vector.extract_strided_slice %75 {offsets = [0, 0], sizes = [8, 1], strides = [1, 1]} : vector<8x9xf32> to vector<8x1xf32>
    %86 = vector.broadcast %85 : vector<8x1xf32> to vector<8x320xf32>
    %87 = arith.mulf %84, %86 : vector<8x320xf32>
    %88 = arith.addf %81, %87 : vector<8x320xf32>
    %cst_30 = arith.constant 0.000000e+00 : f32
    %89 = vector.broadcast %cst_30 : f32 to vector<8x20xf32>
    %90 = vector.extract_strided_slice %74 {offsets = [0, 0], sizes = [8, 300], strides = [1, 1]} : vector<8x320xf32> to vector<8x300xf32>
    %91 = tpu.concatenate %89, %90 in 1 : vector<8x20xf32>, vector<8x300xf32> -> vector<8x320xf32>
    %92 = vector.extract_strided_slice %75 {offsets = [0, 1], sizes = [8, 1], strides = [1, 1]} : vector<8x9xf32> to vector<8x1xf32>
    %93 = vector.broadcast %92 : vector<8x1xf32> to vector<8x320xf32>
    %94 = arith.mulf %91, %93 : vector<8x320xf32>
    %95 = arith.addf %88, %94 : vector<8x320xf32>
    %cst_31 = arith.constant 0.000000e+00 : f32
    %96 = vector.broadcast %cst_31 : f32 to vector<8x19xf32>
    %97 = vector.extract_strided_slice %74 {offsets = [0, 0], sizes = [8, 301], strides = [1, 1]} : vector<8x320xf32> to vector<8x301xf32>
    %98 = tpu.concatenate %96, %97 in 1 : vector<8x19xf32>, vector<8x301xf32> -> vector<8x320xf32>
    %99 = vector.extract_strided_slice %75 {offsets = [0, 2], sizes = [8, 1], strides = [1, 1]} : vector<8x9xf32> to vector<8x1xf32>
    %100 = vector.broadcast %99 : vector<8x1xf32> to vector<8x320xf32>
    %101 = arith.mulf %98, %100 : vector<8x320xf32>
    %102 = arith.addf %95, %101 : vector<8x320xf32>
    %cst_32 = arith.constant 0.000000e+00 : f32
    %103 = vector.broadcast %cst_32 : f32 to vector<8x1xf32>
    %104 = vector.extract_strided_slice %74 {offsets = [0, 0], sizes = [8, 319], strides = [1, 1]} : vector<8x320xf32> to vector<8x319xf32>
    %105 = tpu.concatenate %103, %104 in 1 : vector<8x1xf32>, vector<8x319xf32> -> vector<8x320xf32>
    %106 = vector.extract_strided_slice %75 {offsets = [0, 3], sizes = [8, 1], strides = [1, 1]} : vector<8x9xf32> to vector<8x1xf32>
    %107 = vector.broadcast %106 : vector<8x1xf32> to vector<8x320xf32>
    %108 = arith.mulf %105, %107 : vector<8x320xf32>
    %109 = arith.addf %102, %108 : vector<8x320xf32>
    %cst_33 = arith.constant 0.000000e+00 : f32
    %110 = vector.broadcast %cst_33 : f32 to vector<8x1xf32>
    %111 = vector.extract_strided_slice %74 {offsets = [0, 1], sizes = [8, 319], strides = [1, 1]} : vector<8x320xf32> to vector<8x319xf32>
    %112 = tpu.concatenate %111, %110 in 1 : vector<8x319xf32>, vector<8x1xf32> -> vector<8x320xf32>
    %113 = vector.extract_strided_slice %75 {offsets = [0, 5], sizes = [8, 1], strides = [1, 1]} : vector<8x9xf32> to vector<8x1xf32>
    %114 = vector.broadcast %113 : vector<8x1xf32> to vector<8x320xf32>
    %115 = arith.mulf %112, %114 : vector<8x320xf32>
    %116 = arith.addf %109, %115 : vector<8x320xf32>
    %cst_34 = arith.constant 0.000000e+00 : f32
    %117 = vector.broadcast %cst_34 : f32 to vector<8x19xf32>
    %118 = vector.extract_strided_slice %74 {offsets = [0, 19], sizes = [8, 301], strides = [1, 1]} : vector<8x320xf32> to vector<8x301xf32>
    %119 = tpu.concatenate %118, %117 in 1 : vector<8x301xf32>, vector<8x19xf32> -> vector<8x320xf32>
    %120 = vector.extract_strided_slice %75 {offsets = [0, 6], sizes = [8, 1], strides = [1, 1]} : vector<8x9xf32> to vector<8x1xf32>
    %121 = vector.broadcast %120 : vector<8x1xf32> to vector<8x320xf32>
    %122 = arith.mulf %119, %121 : vector<8x320xf32>
    %123 = arith.addf %116, %122 : vector<8x320xf32>
    %cst_35 = arith.constant 0.000000e+00 : f32
    %124 = vector.broadcast %cst_35 : f32 to vector<8x20xf32>
    %125 = vector.extract_strided_slice %74 {offsets = [0, 20], sizes = [8, 300], strides = [1, 1]} : vector<8x320xf32> to vector<8x300xf32>
    %126 = tpu.concatenate %125, %124 in 1 : vector<8x300xf32>, vector<8x20xf32> -> vector<8x320xf32>
    %127 = vector.extract_strided_slice %75 {offsets = [0, 7], sizes = [8, 1], strides = [1, 1]} : vector<8x9xf32> to vector<8x1xf32>
    %128 = vector.broadcast %127 : vector<8x1xf32> to vector<8x320xf32>
    %129 = arith.mulf %126, %128 : vector<8x320xf32>
    %130 = arith.addf %123, %129 : vector<8x320xf32>
    %cst_36 = arith.constant 0.000000e+00 : f32
    %131 = vector.broadcast %cst_36 : f32 to vector<8x21xf32>
    %132 = vector.extract_strided_slice %74 {offsets = [0, 21], sizes = [8, 299], strides = [1, 1]} : vector<8x320xf32> to vector<8x299xf32>
    %133 = tpu.concatenate %132, %131 in 1 : vector<8x299xf32>, vector<8x21xf32> -> vector<8x320xf32>
    %134 = vector.extract_strided_slice %75 {offsets = [0, 8], sizes = [8, 1], strides = [1, 1]} : vector<8x9xf32> to vector<8x1xf32>
    %135 = vector.broadcast %134 : vector<8x1xf32> to vector<8x320xf32>
    %136 = arith.mulf %133, %135 : vector<8x320xf32>
    %137 = arith.addf %130, %136 : vector<8x320xf32>
    %cst_37 = arith.constant dense<0.000000e+00> : vector<8x320xf32>
    %138 = tpu.matmul %76, %137, %cst_37 {dimension_numbers = #tpu.dot_dimension_numbers<[1], [0], [0], [1], [0, 0, 1, 1], [], []>} : vector<8x8xf32>, vector<8x320xf32>, vector<8x320xf32> -> vector<8x320xf32>
    %139 = vector.broadcast %77 : vector<8x1xf32> to vector<8x320xf32>
    %140 = arith.mulf %138, %139 : vector<8x320xf32>
    %141 = vector.broadcast %78 : vector<8x1xf32> to vector<8x320xf32>
    %142 = arith.addf %140, %141 : vector<8x320xf32>
    %cst_38 = arith.constant 0.000000e+00 : f32
    %143 = vector.broadcast %cst_38 : f32 to vector<8x320xf32>
    %144 = arith.maximumf %142, %143 : vector<8x320xf32>
    %145 = vector.broadcast %0 : vector<1x320xf32> to vector<8x320xf32>
    %146 = arith.mulf %144, %145 : vector<8x320xf32>
    %c0_39 = arith.constant 0 : index
    %c0_40 = arith.constant 0 : index
    %147 = vector.load %arg11[%c0_39, %c0_40] : memref<8x9xf32, #tpu.memory_space<vmem>>, vector<8x9xf32>
    %c0_41 = arith.constant 0 : index
    %c0_42 = arith.constant 0 : index
    %148 = vector.load %arg12[%c0_41, %c0_42] : memref<8x8xf32, #tpu.memory_space<vmem>>, vector<8x8xf32>
    %c0_43 = arith.constant 0 : index
    %c0_44 = arith.constant 0 : index
    %149 = vector.load %arg13[%c0_43, %c0_44] : memref<8x1xf32, #tpu.memory_space<vmem>>, vector<8x1xf32>
    %c0_45 = arith.constant 0 : index
    %c0_46 = arith.constant 0 : index
    %150 = vector.load %arg14[%c0_45, %c0_46] : memref<8x1xf32, #tpu.memory_space<vmem>>, vector<8x1xf32>
    %151 = vector.extract_strided_slice %147 {offsets = [0, 4], sizes = [8, 1], strides = [1, 1]} : vector<8x9xf32> to vector<8x1xf32>
    %152 = vector.broadcast %151 : vector<8x1xf32> to vector<8x320xf32>
    %153 = arith.mulf %146, %152 : vector<8x320xf32>
    %cst_47 = arith.constant 0.000000e+00 : f32
    %154 = vector.broadcast %cst_47 : f32 to vector<8x21xf32>
    %155 = vector.extract_strided_slice %146 {offsets = [0, 0], sizes = [8, 299], strides = [1, 1]} : vector<8x320xf32> to vector<8x299xf32>
    %156 = tpu.concatenate %154, %155 in 1 : vector<8x21xf32>, vector<8x299xf32> -> vector<8x320xf32>
    %157 = vector.extract_strided_slice %147 {offsets = [0, 0], sizes = [8, 1], strides = [1, 1]} : vector<8x9xf32> to vector<8x1xf32>
    %158 = vector.broadcast %157 : vector<8x1xf32> to vector<8x320xf32>
    %159 = arith.mulf %156, %158 : vector<8x320xf32>
    %160 = arith.addf %153, %159 : vector<8x320xf32>
    %cst_48 = arith.constant 0.000000e+00 : f32
    %161 = vector.broadcast %cst_48 : f32 to vector<8x20xf32>
    %162 = vector.extract_strided_slice %146 {offsets = [0, 0], sizes = [8, 300], strides = [1, 1]} : vector<8x320xf32> to vector<8x300xf32>
    %163 = tpu.concatenate %161, %162 in 1 : vector<8x20xf32>, vector<8x300xf32> -> vector<8x320xf32>
    %164 = vector.extract_strided_slice %147 {offsets = [0, 1], sizes = [8, 1], strides = [1, 1]} : vector<8x9xf32> to vector<8x1xf32>
    %165 = vector.broadcast %164 : vector<8x1xf32> to vector<8x320xf32>
    %166 = arith.mulf %163, %165 : vector<8x320xf32>
    %167 = arith.addf %160, %166 : vector<8x320xf32>
    %cst_49 = arith.constant 0.000000e+00 : f32
    %168 = vector.broadcast %cst_49 : f32 to vector<8x19xf32>
    %169 = vector.extract_strided_slice %146 {offsets = [0, 0], sizes = [8, 301], strides = [1, 1]} : vector<8x320xf32> to vector<8x301xf32>
    %170 = tpu.concatenate %168, %169 in 1 : vector<8x19xf32>, vector<8x301xf32> -> vector<8x320xf32>
    %171 = vector.extract_strided_slice %147 {offsets = [0, 2], sizes = [8, 1], strides = [1, 1]} : vector<8x9xf32> to vector<8x1xf32>
    %172 = vector.broadcast %171 : vector<8x1xf32> to vector<8x320xf32>
    %173 = arith.mulf %170, %172 : vector<8x320xf32>
    %174 = arith.addf %167, %173 : vector<8x320xf32>
    %cst_50 = arith.constant 0.000000e+00 : f32
    %175 = vector.broadcast %cst_50 : f32 to vector<8x1xf32>
    %176 = vector.extract_strided_slice %146 {offsets = [0, 0], sizes = [8, 319], strides = [1, 1]} : vector<8x320xf32> to vector<8x319xf32>
    %177 = tpu.concatenate %175, %176 in 1 : vector<8x1xf32>, vector<8x319xf32> -> vector<8x320xf32>
    %178 = vector.extract_strided_slice %147 {offsets = [0, 3], sizes = [8, 1], strides = [1, 1]} : vector<8x9xf32> to vector<8x1xf32>
    %179 = vector.broadcast %178 : vector<8x1xf32> to vector<8x320xf32>
    %180 = arith.mulf %177, %179 : vector<8x320xf32>
    %181 = arith.addf %174, %180 : vector<8x320xf32>
    %cst_51 = arith.constant 0.000000e+00 : f32
    %182 = vector.broadcast %cst_51 : f32 to vector<8x1xf32>
    %183 = vector.extract_strided_slice %146 {offsets = [0, 1], sizes = [8, 319], strides = [1, 1]} : vector<8x320xf32> to vector<8x319xf32>
    %184 = tpu.concatenate %183, %182 in 1 : vector<8x319xf32>, vector<8x1xf32> -> vector<8x320xf32>
    %185 = vector.extract_strided_slice %147 {offsets = [0, 5], sizes = [8, 1], strides = [1, 1]} : vector<8x9xf32> to vector<8x1xf32>
    %186 = vector.broadcast %185 : vector<8x1xf32> to vector<8x320xf32>
    %187 = arith.mulf %184, %186 : vector<8x320xf32>
    %188 = arith.addf %181, %187 : vector<8x320xf32>
    %cst_52 = arith.constant 0.000000e+00 : f32
    %189 = vector.broadcast %cst_52 : f32 to vector<8x19xf32>
    %190 = vector.extract_strided_slice %146 {offsets = [0, 19], sizes = [8, 301], strides = [1, 1]} : vector<8x320xf32> to vector<8x301xf32>
    %191 = tpu.concatenate %190, %189 in 1 : vector<8x301xf32>, vector<8x19xf32> -> vector<8x320xf32>
    %192 = vector.extract_strided_slice %147 {offsets = [0, 6], sizes = [8, 1], strides = [1, 1]} : vector<8x9xf32> to vector<8x1xf32>
    %193 = vector.broadcast %192 : vector<8x1xf32> to vector<8x320xf32>
    %194 = arith.mulf %191, %193 : vector<8x320xf32>
    %195 = arith.addf %188, %194 : vector<8x320xf32>
    %cst_53 = arith.constant 0.000000e+00 : f32
    %196 = vector.broadcast %cst_53 : f32 to vector<8x20xf32>
    %197 = vector.extract_strided_slice %146 {offsets = [0, 20], sizes = [8, 300], strides = [1, 1]} : vector<8x320xf32> to vector<8x300xf32>
    %198 = tpu.concatenate %197, %196 in 1 : vector<8x300xf32>, vector<8x20xf32> -> vector<8x320xf32>
    %199 = vector.extract_strided_slice %147 {offsets = [0, 7], sizes = [8, 1], strides = [1, 1]} : vector<8x9xf32> to vector<8x1xf32>
    %200 = vector.broadcast %199 : vector<8x1xf32> to vector<8x320xf32>
    %201 = arith.mulf %198, %200 : vector<8x320xf32>
    %202 = arith.addf %195, %201 : vector<8x320xf32>
    %cst_54 = arith.constant 0.000000e+00 : f32
    %203 = vector.broadcast %cst_54 : f32 to vector<8x21xf32>
    %204 = vector.extract_strided_slice %146 {offsets = [0, 21], sizes = [8, 299], strides = [1, 1]} : vector<8x320xf32> to vector<8x299xf32>
    %205 = tpu.concatenate %204, %203 in 1 : vector<8x299xf32>, vector<8x21xf32> -> vector<8x320xf32>
    %206 = vector.extract_strided_slice %147 {offsets = [0, 8], sizes = [8, 1], strides = [1, 1]} : vector<8x9xf32> to vector<8x1xf32>
    %207 = vector.broadcast %206 : vector<8x1xf32> to vector<8x320xf32>
    %208 = arith.mulf %205, %207 : vector<8x320xf32>
    %209 = arith.addf %202, %208 : vector<8x320xf32>
    %cst_55 = arith.constant dense<0.000000e+00> : vector<8x320xf32>
    %210 = tpu.matmul %148, %209, %cst_55 {dimension_numbers = #tpu.dot_dimension_numbers<[1], [0], [0], [1], [0, 0, 1, 1], [], []>} : vector<8x8xf32>, vector<8x320xf32>, vector<8x320xf32> -> vector<8x320xf32>
    %211 = vector.broadcast %149 : vector<8x1xf32> to vector<8x320xf32>
    %212 = arith.mulf %210, %211 : vector<8x320xf32>
    %213 = vector.broadcast %150 : vector<8x1xf32> to vector<8x320xf32>
    %214 = arith.addf %212, %213 : vector<8x320xf32>
    %cst_56 = arith.constant 0.000000e+00 : f32
    %215 = vector.broadcast %cst_56 : f32 to vector<8x320xf32>
    %216 = arith.maximumf %214, %215 : vector<8x320xf32>
    %217 = vector.broadcast %0 : vector<1x320xf32> to vector<8x320xf32>
    %218 = arith.mulf %216, %217 : vector<8x320xf32>
    %c0_57 = arith.constant 0 : index
    %c0_58 = arith.constant 0 : index
    %219 = vector.load %arg15[%c0_57, %c0_58] : memref<8x9xf32, #tpu.memory_space<vmem>>, vector<8x9xf32>
    %c0_59 = arith.constant 0 : index
    %c0_60 = arith.constant 0 : index
    %220 = vector.load %arg16[%c0_59, %c0_60] : memref<8x8xf32, #tpu.memory_space<vmem>>, vector<8x8xf32>
    %c0_61 = arith.constant 0 : index
    %c0_62 = arith.constant 0 : index
    %221 = vector.load %arg17[%c0_61, %c0_62] : memref<8x1xf32, #tpu.memory_space<vmem>>, vector<8x1xf32>
    %c0_63 = arith.constant 0 : index
    %c0_64 = arith.constant 0 : index
    %222 = vector.load %arg18[%c0_63, %c0_64] : memref<8x1xf32, #tpu.memory_space<vmem>>, vector<8x1xf32>
    %223 = vector.extract_strided_slice %219 {offsets = [0, 4], sizes = [8, 1], strides = [1, 1]} : vector<8x9xf32> to vector<8x1xf32>
    %224 = vector.broadcast %223 : vector<8x1xf32> to vector<8x320xf32>
    %225 = arith.mulf %218, %224 : vector<8x320xf32>
    %cst_65 = arith.constant 0.000000e+00 : f32
    %226 = vector.broadcast %cst_65 : f32 to vector<8x21xf32>
    %227 = vector.extract_strided_slice %218 {offsets = [0, 0], sizes = [8, 299], strides = [1, 1]} : vector<8x320xf32> to vector<8x299xf32>
    %228 = tpu.concatenate %226, %227 in 1 : vector<8x21xf32>, vector<8x299xf32> -> vector<8x320xf32>
    %229 = vector.extract_strided_slice %219 {offsets = [0, 0], sizes = [8, 1], strides = [1, 1]} : vector<8x9xf32> to vector<8x1xf32>
    %230 = vector.broadcast %229 : vector<8x1xf32> to vector<8x320xf32>
    %231 = arith.mulf %228, %230 : vector<8x320xf32>
    %232 = arith.addf %225, %231 : vector<8x320xf32>
    %cst_66 = arith.constant 0.000000e+00 : f32
    %233 = vector.broadcast %cst_66 : f32 to vector<8x20xf32>
    %234 = vector.extract_strided_slice %218 {offsets = [0, 0], sizes = [8, 300], strides = [1, 1]} : vector<8x320xf32> to vector<8x300xf32>
    %235 = tpu.concatenate %233, %234 in 1 : vector<8x20xf32>, vector<8x300xf32> -> vector<8x320xf32>
    %236 = vector.extract_strided_slice %219 {offsets = [0, 1], sizes = [8, 1], strides = [1, 1]} : vector<8x9xf32> to vector<8x1xf32>
    %237 = vector.broadcast %236 : vector<8x1xf32> to vector<8x320xf32>
    %238 = arith.mulf %235, %237 : vector<8x320xf32>
    %239 = arith.addf %232, %238 : vector<8x320xf32>
    %cst_67 = arith.constant 0.000000e+00 : f32
    %240 = vector.broadcast %cst_67 : f32 to vector<8x19xf32>
    %241 = vector.extract_strided_slice %218 {offsets = [0, 0], sizes = [8, 301], strides = [1, 1]} : vector<8x320xf32> to vector<8x301xf32>
    %242 = tpu.concatenate %240, %241 in 1 : vector<8x19xf32>, vector<8x301xf32> -> vector<8x320xf32>
    %243 = vector.extract_strided_slice %219 {offsets = [0, 2], sizes = [8, 1], strides = [1, 1]} : vector<8x9xf32> to vector<8x1xf32>
    %244 = vector.broadcast %243 : vector<8x1xf32> to vector<8x320xf32>
    %245 = arith.mulf %242, %244 : vector<8x320xf32>
    %246 = arith.addf %239, %245 : vector<8x320xf32>
    %cst_68 = arith.constant 0.000000e+00 : f32
    %247 = vector.broadcast %cst_68 : f32 to vector<8x1xf32>
    %248 = vector.extract_strided_slice %218 {offsets = [0, 0], sizes = [8, 319], strides = [1, 1]} : vector<8x320xf32> to vector<8x319xf32>
    %249 = tpu.concatenate %247, %248 in 1 : vector<8x1xf32>, vector<8x319xf32> -> vector<8x320xf32>
    %250 = vector.extract_strided_slice %219 {offsets = [0, 3], sizes = [8, 1], strides = [1, 1]} : vector<8x9xf32> to vector<8x1xf32>
    %251 = vector.broadcast %250 : vector<8x1xf32> to vector<8x320xf32>
    %252 = arith.mulf %249, %251 : vector<8x320xf32>
    %253 = arith.addf %246, %252 : vector<8x320xf32>
    %cst_69 = arith.constant 0.000000e+00 : f32
    %254 = vector.broadcast %cst_69 : f32 to vector<8x1xf32>
    %255 = vector.extract_strided_slice %218 {offsets = [0, 1], sizes = [8, 319], strides = [1, 1]} : vector<8x320xf32> to vector<8x319xf32>
    %256 = tpu.concatenate %255, %254 in 1 : vector<8x319xf32>, vector<8x1xf32> -> vector<8x320xf32>
    %257 = vector.extract_strided_slice %219 {offsets = [0, 5], sizes = [8, 1], strides = [1, 1]} : vector<8x9xf32> to vector<8x1xf32>
    %258 = vector.broadcast %257 : vector<8x1xf32> to vector<8x320xf32>
    %259 = arith.mulf %256, %258 : vector<8x320xf32>
    %260 = arith.addf %253, %259 : vector<8x320xf32>
    %cst_70 = arith.constant 0.000000e+00 : f32
    %261 = vector.broadcast %cst_70 : f32 to vector<8x19xf32>
    %262 = vector.extract_strided_slice %218 {offsets = [0, 19], sizes = [8, 301], strides = [1, 1]} : vector<8x320xf32> to vector<8x301xf32>
    %263 = tpu.concatenate %262, %261 in 1 : vector<8x301xf32>, vector<8x19xf32> -> vector<8x320xf32>
    %264 = vector.extract_strided_slice %219 {offsets = [0, 6], sizes = [8, 1], strides = [1, 1]} : vector<8x9xf32> to vector<8x1xf32>
    %265 = vector.broadcast %264 : vector<8x1xf32> to vector<8x320xf32>
    %266 = arith.mulf %263, %265 : vector<8x320xf32>
    %267 = arith.addf %260, %266 : vector<8x320xf32>
    %cst_71 = arith.constant 0.000000e+00 : f32
    %268 = vector.broadcast %cst_71 : f32 to vector<8x20xf32>
    %269 = vector.extract_strided_slice %218 {offsets = [0, 20], sizes = [8, 300], strides = [1, 1]} : vector<8x320xf32> to vector<8x300xf32>
    %270 = tpu.concatenate %269, %268 in 1 : vector<8x300xf32>, vector<8x20xf32> -> vector<8x320xf32>
    %271 = vector.extract_strided_slice %219 {offsets = [0, 7], sizes = [8, 1], strides = [1, 1]} : vector<8x9xf32> to vector<8x1xf32>
    %272 = vector.broadcast %271 : vector<8x1xf32> to vector<8x320xf32>
    %273 = arith.mulf %270, %272 : vector<8x320xf32>
    %274 = arith.addf %267, %273 : vector<8x320xf32>
    %cst_72 = arith.constant 0.000000e+00 : f32
    %275 = vector.broadcast %cst_72 : f32 to vector<8x21xf32>
    %276 = vector.extract_strided_slice %218 {offsets = [0, 21], sizes = [8, 299], strides = [1, 1]} : vector<8x320xf32> to vector<8x299xf32>
    %277 = tpu.concatenate %276, %275 in 1 : vector<8x299xf32>, vector<8x21xf32> -> vector<8x320xf32>
    %278 = vector.extract_strided_slice %219 {offsets = [0, 8], sizes = [8, 1], strides = [1, 1]} : vector<8x9xf32> to vector<8x1xf32>
    %279 = vector.broadcast %278 : vector<8x1xf32> to vector<8x320xf32>
    %280 = arith.mulf %277, %279 : vector<8x320xf32>
    %281 = arith.addf %274, %280 : vector<8x320xf32>
    %cst_73 = arith.constant dense<0.000000e+00> : vector<8x320xf32>
    %282 = tpu.matmul %220, %281, %cst_73 {dimension_numbers = #tpu.dot_dimension_numbers<[1], [0], [0], [1], [0, 0, 1, 1], [], []>} : vector<8x8xf32>, vector<8x320xf32>, vector<8x320xf32> -> vector<8x320xf32>
    %283 = vector.broadcast %221 : vector<8x1xf32> to vector<8x320xf32>
    %284 = arith.mulf %282, %283 : vector<8x320xf32>
    %285 = vector.broadcast %222 : vector<8x1xf32> to vector<8x320xf32>
    %286 = arith.addf %284, %285 : vector<8x320xf32>
    %cst_74 = arith.constant 0.000000e+00 : f32
    %287 = vector.broadcast %cst_74 : f32 to vector<8x320xf32>
    %288 = arith.maximumf %286, %287 : vector<8x320xf32>
    %289 = vector.broadcast %0 : vector<1x320xf32> to vector<8x320xf32>
    %290 = arith.mulf %288, %289 : vector<8x320xf32>
    %c0_75 = arith.constant 0 : index
    %c0_76 = arith.constant 0 : index
    %291 = vector.load %arg19[%c0_75, %c0_76] : memref<8x9xf32, #tpu.memory_space<vmem>>, vector<8x9xf32>
    %c0_77 = arith.constant 0 : index
    %c0_78 = arith.constant 0 : index
    %292 = vector.load %arg20[%c0_77, %c0_78] : memref<8x8xf32, #tpu.memory_space<vmem>>, vector<8x8xf32>
    %c0_79 = arith.constant 0 : index
    %c0_80 = arith.constant 0 : index
    %293 = vector.load %arg21[%c0_79, %c0_80] : memref<8x1xf32, #tpu.memory_space<vmem>>, vector<8x1xf32>
    %c0_81 = arith.constant 0 : index
    %c0_82 = arith.constant 0 : index
    %294 = vector.load %arg22[%c0_81, %c0_82] : memref<8x1xf32, #tpu.memory_space<vmem>>, vector<8x1xf32>
    %295 = vector.extract_strided_slice %291 {offsets = [0, 4], sizes = [8, 1], strides = [1, 1]} : vector<8x9xf32> to vector<8x1xf32>
    %296 = vector.broadcast %295 : vector<8x1xf32> to vector<8x320xf32>
    %297 = arith.mulf %290, %296 : vector<8x320xf32>
    %cst_83 = arith.constant 0.000000e+00 : f32
    %298 = vector.broadcast %cst_83 : f32 to vector<8x21xf32>
    %299 = vector.extract_strided_slice %290 {offsets = [0, 0], sizes = [8, 299], strides = [1, 1]} : vector<8x320xf32> to vector<8x299xf32>
    %300 = tpu.concatenate %298, %299 in 1 : vector<8x21xf32>, vector<8x299xf32> -> vector<8x320xf32>
    %301 = vector.extract_strided_slice %291 {offsets = [0, 0], sizes = [8, 1], strides = [1, 1]} : vector<8x9xf32> to vector<8x1xf32>
    %302 = vector.broadcast %301 : vector<8x1xf32> to vector<8x320xf32>
    %303 = arith.mulf %300, %302 : vector<8x320xf32>
    %304 = arith.addf %297, %303 : vector<8x320xf32>
    %cst_84 = arith.constant 0.000000e+00 : f32
    %305 = vector.broadcast %cst_84 : f32 to vector<8x20xf32>
    %306 = vector.extract_strided_slice %290 {offsets = [0, 0], sizes = [8, 300], strides = [1, 1]} : vector<8x320xf32> to vector<8x300xf32>
    %307 = tpu.concatenate %305, %306 in 1 : vector<8x20xf32>, vector<8x300xf32> -> vector<8x320xf32>
    %308 = vector.extract_strided_slice %291 {offsets = [0, 1], sizes = [8, 1], strides = [1, 1]} : vector<8x9xf32> to vector<8x1xf32>
    %309 = vector.broadcast %308 : vector<8x1xf32> to vector<8x320xf32>
    %310 = arith.mulf %307, %309 : vector<8x320xf32>
    %311 = arith.addf %304, %310 : vector<8x320xf32>
    %cst_85 = arith.constant 0.000000e+00 : f32
    %312 = vector.broadcast %cst_85 : f32 to vector<8x19xf32>
    %313 = vector.extract_strided_slice %290 {offsets = [0, 0], sizes = [8, 301], strides = [1, 1]} : vector<8x320xf32> to vector<8x301xf32>
    %314 = tpu.concatenate %312, %313 in 1 : vector<8x19xf32>, vector<8x301xf32> -> vector<8x320xf32>
    %315 = vector.extract_strided_slice %291 {offsets = [0, 2], sizes = [8, 1], strides = [1, 1]} : vector<8x9xf32> to vector<8x1xf32>
    %316 = vector.broadcast %315 : vector<8x1xf32> to vector<8x320xf32>
    %317 = arith.mulf %314, %316 : vector<8x320xf32>
    %318 = arith.addf %311, %317 : vector<8x320xf32>
    %cst_86 = arith.constant 0.000000e+00 : f32
    %319 = vector.broadcast %cst_86 : f32 to vector<8x1xf32>
    %320 = vector.extract_strided_slice %290 {offsets = [0, 0], sizes = [8, 319], strides = [1, 1]} : vector<8x320xf32> to vector<8x319xf32>
    %321 = tpu.concatenate %319, %320 in 1 : vector<8x1xf32>, vector<8x319xf32> -> vector<8x320xf32>
    %322 = vector.extract_strided_slice %291 {offsets = [0, 3], sizes = [8, 1], strides = [1, 1]} : vector<8x9xf32> to vector<8x1xf32>
    %323 = vector.broadcast %322 : vector<8x1xf32> to vector<8x320xf32>
    %324 = arith.mulf %321, %323 : vector<8x320xf32>
    %325 = arith.addf %318, %324 : vector<8x320xf32>
    %cst_87 = arith.constant 0.000000e+00 : f32
    %326 = vector.broadcast %cst_87 : f32 to vector<8x1xf32>
    %327 = vector.extract_strided_slice %290 {offsets = [0, 1], sizes = [8, 319], strides = [1, 1]} : vector<8x320xf32> to vector<8x319xf32>
    %328 = tpu.concatenate %327, %326 in 1 : vector<8x319xf32>, vector<8x1xf32> -> vector<8x320xf32>
    %329 = vector.extract_strided_slice %291 {offsets = [0, 5], sizes = [8, 1], strides = [1, 1]} : vector<8x9xf32> to vector<8x1xf32>
    %330 = vector.broadcast %329 : vector<8x1xf32> to vector<8x320xf32>
    %331 = arith.mulf %328, %330 : vector<8x320xf32>
    %332 = arith.addf %325, %331 : vector<8x320xf32>
    %cst_88 = arith.constant 0.000000e+00 : f32
    %333 = vector.broadcast %cst_88 : f32 to vector<8x19xf32>
    %334 = vector.extract_strided_slice %290 {offsets = [0, 19], sizes = [8, 301], strides = [1, 1]} : vector<8x320xf32> to vector<8x301xf32>
    %335 = tpu.concatenate %334, %333 in 1 : vector<8x301xf32>, vector<8x19xf32> -> vector<8x320xf32>
    %336 = vector.extract_strided_slice %291 {offsets = [0, 6], sizes = [8, 1], strides = [1, 1]} : vector<8x9xf32> to vector<8x1xf32>
    %337 = vector.broadcast %336 : vector<8x1xf32> to vector<8x320xf32>
    %338 = arith.mulf %335, %337 : vector<8x320xf32>
    %339 = arith.addf %332, %338 : vector<8x320xf32>
    %cst_89 = arith.constant 0.000000e+00 : f32
    %340 = vector.broadcast %cst_89 : f32 to vector<8x20xf32>
    %341 = vector.extract_strided_slice %290 {offsets = [0, 20], sizes = [8, 300], strides = [1, 1]} : vector<8x320xf32> to vector<8x300xf32>
    %342 = tpu.concatenate %341, %340 in 1 : vector<8x300xf32>, vector<8x20xf32> -> vector<8x320xf32>
    %343 = vector.extract_strided_slice %291 {offsets = [0, 7], sizes = [8, 1], strides = [1, 1]} : vector<8x9xf32> to vector<8x1xf32>
    %344 = vector.broadcast %343 : vector<8x1xf32> to vector<8x320xf32>
    %345 = arith.mulf %342, %344 : vector<8x320xf32>
    %346 = arith.addf %339, %345 : vector<8x320xf32>
    %cst_90 = arith.constant 0.000000e+00 : f32
    %347 = vector.broadcast %cst_90 : f32 to vector<8x21xf32>
    %348 = vector.extract_strided_slice %290 {offsets = [0, 21], sizes = [8, 299], strides = [1, 1]} : vector<8x320xf32> to vector<8x299xf32>
    %349 = tpu.concatenate %348, %347 in 1 : vector<8x299xf32>, vector<8x21xf32> -> vector<8x320xf32>
    %350 = vector.extract_strided_slice %291 {offsets = [0, 8], sizes = [8, 1], strides = [1, 1]} : vector<8x9xf32> to vector<8x1xf32>
    %351 = vector.broadcast %350 : vector<8x1xf32> to vector<8x320xf32>
    %352 = arith.mulf %349, %351 : vector<8x320xf32>
    %353 = arith.addf %346, %352 : vector<8x320xf32>
    %cst_91 = arith.constant dense<0.000000e+00> : vector<8x320xf32>
    %354 = tpu.matmul %292, %353, %cst_91 {dimension_numbers = #tpu.dot_dimension_numbers<[1], [0], [0], [1], [0, 0, 1, 1], [], []>} : vector<8x8xf32>, vector<8x320xf32>, vector<8x320xf32> -> vector<8x320xf32>
    %355 = vector.broadcast %293 : vector<8x1xf32> to vector<8x320xf32>
    %356 = arith.mulf %354, %355 : vector<8x320xf32>
    %357 = vector.broadcast %294 : vector<8x1xf32> to vector<8x320xf32>
    %358 = arith.addf %356, %357 : vector<8x320xf32>
    %cst_92 = arith.constant 0.000000e+00 : f32
    %359 = vector.broadcast %cst_92 : f32 to vector<8x320xf32>
    %360 = arith.maximumf %358, %359 : vector<8x320xf32>
    %361 = vector.broadcast %0 : vector<1x320xf32> to vector<8x320xf32>
    %362 = arith.mulf %360, %361 : vector<8x320xf32>
    %363 = tpu.concatenate %362, %290 in 0 : vector<8x320xf32>, vector<8x320xf32> -> vector<16x320xf32>
    %c0_93 = arith.constant 0 : index
    %c0_94 = arith.constant 0 : index
    %364 = vector.load %arg23[%c0_93, %c0_94] : memref<16x9xf32, #tpu.memory_space<vmem>>, vector<16x9xf32>
    %c0_95 = arith.constant 0 : index
    %c0_96 = arith.constant 0 : index
    %365 = vector.load %arg24[%c0_95, %c0_96] : memref<8x16xf32, #tpu.memory_space<vmem>>, vector<8x16xf32>
    %c0_97 = arith.constant 0 : index
    %c0_98 = arith.constant 0 : index
    %366 = vector.load %arg25[%c0_97, %c0_98] : memref<8x1xf32, #tpu.memory_space<vmem>>, vector<8x1xf32>
    %c0_99 = arith.constant 0 : index
    %c0_100 = arith.constant 0 : index
    %367 = vector.load %arg26[%c0_99, %c0_100] : memref<8x1xf32, #tpu.memory_space<vmem>>, vector<8x1xf32>
    %368 = vector.extract_strided_slice %364 {offsets = [0, 4], sizes = [16, 1], strides = [1, 1]} : vector<16x9xf32> to vector<16x1xf32>
    %369 = vector.broadcast %368 : vector<16x1xf32> to vector<16x320xf32>
    %370 = arith.mulf %363, %369 : vector<16x320xf32>
    %cst_101 = arith.constant 0.000000e+00 : f32
    %371 = vector.broadcast %cst_101 : f32 to vector<16x21xf32>
    %372 = vector.extract_strided_slice %363 {offsets = [0, 0], sizes = [16, 299], strides = [1, 1]} : vector<16x320xf32> to vector<16x299xf32>
    %373 = tpu.concatenate %371, %372 in 1 : vector<16x21xf32>, vector<16x299xf32> -> vector<16x320xf32>
    %374 = vector.extract_strided_slice %364 {offsets = [0, 0], sizes = [16, 1], strides = [1, 1]} : vector<16x9xf32> to vector<16x1xf32>
    %375 = vector.broadcast %374 : vector<16x1xf32> to vector<16x320xf32>
    %376 = arith.mulf %373, %375 : vector<16x320xf32>
    %377 = arith.addf %370, %376 : vector<16x320xf32>
    %cst_102 = arith.constant 0.000000e+00 : f32
    %378 = vector.broadcast %cst_102 : f32 to vector<16x20xf32>
    %379 = vector.extract_strided_slice %363 {offsets = [0, 0], sizes = [16, 300], strides = [1, 1]} : vector<16x320xf32> to vector<16x300xf32>
    %380 = tpu.concatenate %378, %379 in 1 : vector<16x20xf32>, vector<16x300xf32> -> vector<16x320xf32>
    %381 = vector.extract_strided_slice %364 {offsets = [0, 1], sizes = [16, 1], strides = [1, 1]} : vector<16x9xf32> to vector<16x1xf32>
    %382 = vector.broadcast %381 : vector<16x1xf32> to vector<16x320xf32>
    %383 = arith.mulf %380, %382 : vector<16x320xf32>
    %384 = arith.addf %377, %383 : vector<16x320xf32>
    %cst_103 = arith.constant 0.000000e+00 : f32
    %385 = vector.broadcast %cst_103 : f32 to vector<16x19xf32>
    %386 = vector.extract_strided_slice %363 {offsets = [0, 0], sizes = [16, 301], strides = [1, 1]} : vector<16x320xf32> to vector<16x301xf32>
    %387 = tpu.concatenate %385, %386 in 1 : vector<16x19xf32>, vector<16x301xf32> -> vector<16x320xf32>
    %388 = vector.extract_strided_slice %364 {offsets = [0, 2], sizes = [16, 1], strides = [1, 1]} : vector<16x9xf32> to vector<16x1xf32>
    %389 = vector.broadcast %388 : vector<16x1xf32> to vector<16x320xf32>
    %390 = arith.mulf %387, %389 : vector<16x320xf32>
    %391 = arith.addf %384, %390 : vector<16x320xf32>
    %cst_104 = arith.constant 0.000000e+00 : f32
    %392 = vector.broadcast %cst_104 : f32 to vector<16x1xf32>
    %393 = vector.extract_strided_slice %363 {offsets = [0, 0], sizes = [16, 319], strides = [1, 1]} : vector<16x320xf32> to vector<16x319xf32>
    %394 = tpu.concatenate %392, %393 in 1 : vector<16x1xf32>, vector<16x319xf32> -> vector<16x320xf32>
    %395 = vector.extract_strided_slice %364 {offsets = [0, 3], sizes = [16, 1], strides = [1, 1]} : vector<16x9xf32> to vector<16x1xf32>
    %396 = vector.broadcast %395 : vector<16x1xf32> to vector<16x320xf32>
    %397 = arith.mulf %394, %396 : vector<16x320xf32>
    %398 = arith.addf %391, %397 : vector<16x320xf32>
    %cst_105 = arith.constant 0.000000e+00 : f32
    %399 = vector.broadcast %cst_105 : f32 to vector<16x1xf32>
    %400 = vector.extract_strided_slice %363 {offsets = [0, 1], sizes = [16, 319], strides = [1, 1]} : vector<16x320xf32> to vector<16x319xf32>
    %401 = tpu.concatenate %400, %399 in 1 : vector<16x319xf32>, vector<16x1xf32> -> vector<16x320xf32>
    %402 = vector.extract_strided_slice %364 {offsets = [0, 5], sizes = [16, 1], strides = [1, 1]} : vector<16x9xf32> to vector<16x1xf32>
    %403 = vector.broadcast %402 : vector<16x1xf32> to vector<16x320xf32>
    %404 = arith.mulf %401, %403 : vector<16x320xf32>
    %405 = arith.addf %398, %404 : vector<16x320xf32>
    %cst_106 = arith.constant 0.000000e+00 : f32
    %406 = vector.broadcast %cst_106 : f32 to vector<16x19xf32>
    %407 = vector.extract_strided_slice %363 {offsets = [0, 19], sizes = [16, 301], strides = [1, 1]} : vector<16x320xf32> to vector<16x301xf32>
    %408 = tpu.concatenate %407, %406 in 1 : vector<16x301xf32>, vector<16x19xf32> -> vector<16x320xf32>
    %409 = vector.extract_strided_slice %364 {offsets = [0, 6], sizes = [16, 1], strides = [1, 1]} : vector<16x9xf32> to vector<16x1xf32>
    %410 = vector.broadcast %409 : vector<16x1xf32> to vector<16x320xf32>
    %411 = arith.mulf %408, %410 : vector<16x320xf32>
    %412 = arith.addf %405, %411 : vector<16x320xf32>
    %cst_107 = arith.constant 0.000000e+00 : f32
    %413 = vector.broadcast %cst_107 : f32 to vector<16x20xf32>
    %414 = vector.extract_strided_slice %363 {offsets = [0, 20], sizes = [16, 300], strides = [1, 1]} : vector<16x320xf32> to vector<16x300xf32>
    %415 = tpu.concatenate %414, %413 in 1 : vector<16x300xf32>, vector<16x20xf32> -> vector<16x320xf32>
    %416 = vector.extract_strided_slice %364 {offsets = [0, 7], sizes = [16, 1], strides = [1, 1]} : vector<16x9xf32> to vector<16x1xf32>
    %417 = vector.broadcast %416 : vector<16x1xf32> to vector<16x320xf32>
    %418 = arith.mulf %415, %417 : vector<16x320xf32>
    %419 = arith.addf %412, %418 : vector<16x320xf32>
    %cst_108 = arith.constant 0.000000e+00 : f32
    %420 = vector.broadcast %cst_108 : f32 to vector<16x21xf32>
    %421 = vector.extract_strided_slice %363 {offsets = [0, 21], sizes = [16, 299], strides = [1, 1]} : vector<16x320xf32> to vector<16x299xf32>
    %422 = tpu.concatenate %421, %420 in 1 : vector<16x299xf32>, vector<16x21xf32> -> vector<16x320xf32>
    %423 = vector.extract_strided_slice %364 {offsets = [0, 8], sizes = [16, 1], strides = [1, 1]} : vector<16x9xf32> to vector<16x1xf32>
    %424 = vector.broadcast %423 : vector<16x1xf32> to vector<16x320xf32>
    %425 = arith.mulf %422, %424 : vector<16x320xf32>
    %426 = arith.addf %419, %425 : vector<16x320xf32>
    %cst_109 = arith.constant dense<0.000000e+00> : vector<8x320xf32>
    %427 = tpu.matmul %365, %426, %cst_109 {dimension_numbers = #tpu.dot_dimension_numbers<[1], [0], [0], [1], [0, 0, 1, 1], [], []>} : vector<8x16xf32>, vector<16x320xf32>, vector<8x320xf32> -> vector<8x320xf32>
    %428 = vector.broadcast %366 : vector<8x1xf32> to vector<8x320xf32>
    %429 = arith.mulf %427, %428 : vector<8x320xf32>
    %430 = vector.broadcast %367 : vector<8x1xf32> to vector<8x320xf32>
    %431 = arith.addf %429, %430 : vector<8x320xf32>
    %cst_110 = arith.constant 0.000000e+00 : f32
    %432 = vector.broadcast %cst_110 : f32 to vector<8x320xf32>
    %433 = arith.maximumf %431, %432 : vector<8x320xf32>
    %434 = vector.broadcast %0 : vector<1x320xf32> to vector<8x320xf32>
    %435 = arith.mulf %433, %434 : vector<8x320xf32>
    %436 = tpu.concatenate %435, %218 in 0 : vector<8x320xf32>, vector<8x320xf32> -> vector<16x320xf32>
    %c0_111 = arith.constant 0 : index
    %c0_112 = arith.constant 0 : index
    %437 = vector.load %arg27[%c0_111, %c0_112] : memref<8x144xf32, #tpu.memory_space<vmem>>, vector<8x144xf32>
    %c0_113 = arith.constant 0 : index
    %c0_114 = arith.constant 0 : index
    %438 = vector.load %arg28[%c0_113, %c0_114] : memref<8x1xf32, #tpu.memory_space<vmem>>, vector<8x1xf32>
    %c0_115 = arith.constant 0 : index
    %c0_116 = arith.constant 0 : index
    %439 = vector.load %arg29[%c0_115, %c0_116] : memref<8x1xf32, #tpu.memory_space<vmem>>, vector<8x1xf32>
    %cst_117 = arith.constant 0.000000e+00 : f32
    %440 = vector.broadcast %cst_117 : f32 to vector<16x42xf32>
    %441 = vector.extract_strided_slice %436 {offsets = [0, 0], sizes = [16, 278], strides = [1, 1]} : vector<16x320xf32> to vector<16x278xf32>
    %442 = tpu.concatenate %440, %441 in 1 : vector<16x42xf32>, vector<16x278xf32> -> vector<16x320xf32>
    %cst_118 = arith.constant 0.000000e+00 : f32
    %443 = vector.broadcast %cst_118 : f32 to vector<16x40xf32>
    %444 = vector.extract_strided_slice %436 {offsets = [0, 0], sizes = [16, 280], strides = [1, 1]} : vector<16x320xf32> to vector<16x280xf32>
    %445 = tpu.concatenate %443, %444 in 1 : vector<16x40xf32>, vector<16x280xf32> -> vector<16x320xf32>
    %cst_119 = arith.constant 0.000000e+00 : f32
    %446 = vector.broadcast %cst_119 : f32 to vector<16x38xf32>
    %447 = vector.extract_strided_slice %436 {offsets = [0, 0], sizes = [16, 282], strides = [1, 1]} : vector<16x320xf32> to vector<16x282xf32>
    %448 = tpu.concatenate %446, %447 in 1 : vector<16x38xf32>, vector<16x282xf32> -> vector<16x320xf32>
    %cst_120 = arith.constant 0.000000e+00 : f32
    %449 = vector.broadcast %cst_120 : f32 to vector<16x2xf32>
    %450 = vector.extract_strided_slice %436 {offsets = [0, 0], sizes = [16, 318], strides = [1, 1]} : vector<16x320xf32> to vector<16x318xf32>
    %451 = tpu.concatenate %449, %450 in 1 : vector<16x2xf32>, vector<16x318xf32> -> vector<16x320xf32>
    %cst_121 = arith.constant 0.000000e+00 : f32
    %452 = vector.broadcast %cst_121 : f32 to vector<16x2xf32>
    %453 = vector.extract_strided_slice %436 {offsets = [0, 2], sizes = [16, 318], strides = [1, 1]} : vector<16x320xf32> to vector<16x318xf32>
    %454 = tpu.concatenate %453, %452 in 1 : vector<16x318xf32>, vector<16x2xf32> -> vector<16x320xf32>
    %cst_122 = arith.constant 0.000000e+00 : f32
    %455 = vector.broadcast %cst_122 : f32 to vector<16x38xf32>
    %456 = vector.extract_strided_slice %436 {offsets = [0, 38], sizes = [16, 282], strides = [1, 1]} : vector<16x320xf32> to vector<16x282xf32>
    %457 = tpu.concatenate %456, %455 in 1 : vector<16x282xf32>, vector<16x38xf32> -> vector<16x320xf32>
    %cst_123 = arith.constant 0.000000e+00 : f32
    %458 = vector.broadcast %cst_123 : f32 to vector<16x40xf32>
    %459 = vector.extract_strided_slice %436 {offsets = [0, 40], sizes = [16, 280], strides = [1, 1]} : vector<16x320xf32> to vector<16x280xf32>
    %460 = tpu.concatenate %459, %458 in 1 : vector<16x280xf32>, vector<16x40xf32> -> vector<16x320xf32>
    %cst_124 = arith.constant 0.000000e+00 : f32
    %461 = vector.broadcast %cst_124 : f32 to vector<16x42xf32>
    %462 = vector.extract_strided_slice %436 {offsets = [0, 42], sizes = [16, 278], strides = [1, 1]} : vector<16x320xf32> to vector<16x278xf32>
    %463 = tpu.concatenate %462, %461 in 1 : vector<16x278xf32>, vector<16x42xf32> -> vector<16x320xf32>
    %464 = tpu.concatenate %442, %445, %448, %451, %436, %454, %457, %460, %463 in 0 : vector<16x320xf32>, vector<16x320xf32>, vector<16x320xf32>, vector<16x320xf32>, vector<16x320xf32>, vector<16x320xf32>, vector<16x320xf32>, vector<16x320xf32>, vector<16x320xf32> -> vector<144x320xf32>
    %cst_125 = arith.constant dense<0.000000e+00> : vector<8x320xf32>
    %465 = tpu.matmul %437, %464, %cst_125 {dimension_numbers = #tpu.dot_dimension_numbers<[1], [0], [0], [1], [0, 0, 1, 1], [], []>} : vector<8x144xf32>, vector<144x320xf32>, vector<8x320xf32> -> vector<8x320xf32>
    %466 = vector.broadcast %438 : vector<8x1xf32> to vector<8x320xf32>
    %467 = arith.mulf %465, %466 : vector<8x320xf32>
    %468 = vector.broadcast %439 : vector<8x1xf32> to vector<8x320xf32>
    %469 = arith.addf %467, %468 : vector<8x320xf32>
    %cst_126 = arith.constant 0.000000e+00 : f32
    %470 = vector.broadcast %cst_126 : f32 to vector<8x320xf32>
    %471 = arith.maximumf %469, %470 : vector<8x320xf32>
    %472 = vector.broadcast %0 : vector<1x320xf32> to vector<8x320xf32>
    %473 = arith.mulf %471, %472 : vector<8x320xf32>
    %474 = tpu.concatenate %473, %146 in 0 : vector<8x320xf32>, vector<8x320xf32> -> vector<16x320xf32>
    %c0_127 = arith.constant 0 : index
    %c0_128 = arith.constant 0 : index
    %475 = vector.load %arg30[%c0_127, %c0_128] : memref<16x9xf32, #tpu.memory_space<vmem>>, vector<16x9xf32>
    %c0_129 = arith.constant 0 : index
    %c0_130 = arith.constant 0 : index
    %476 = vector.load %arg31[%c0_129, %c0_130] : memref<8x16xf32, #tpu.memory_space<vmem>>, vector<8x16xf32>
    %c0_131 = arith.constant 0 : index
    %c0_132 = arith.constant 0 : index
    %477 = vector.load %arg32[%c0_131, %c0_132] : memref<8x1xf32, #tpu.memory_space<vmem>>, vector<8x1xf32>
    %c0_133 = arith.constant 0 : index
    %c0_134 = arith.constant 0 : index
    %478 = vector.load %arg33[%c0_133, %c0_134] : memref<8x1xf32, #tpu.memory_space<vmem>>, vector<8x1xf32>
    %479 = vector.extract_strided_slice %475 {offsets = [0, 4], sizes = [16, 1], strides = [1, 1]} : vector<16x9xf32> to vector<16x1xf32>
    %480 = vector.broadcast %479 : vector<16x1xf32> to vector<16x320xf32>
    %481 = arith.mulf %474, %480 : vector<16x320xf32>
    %cst_135 = arith.constant 0.000000e+00 : f32
    %482 = vector.broadcast %cst_135 : f32 to vector<16x21xf32>
    %483 = vector.extract_strided_slice %474 {offsets = [0, 0], sizes = [16, 299], strides = [1, 1]} : vector<16x320xf32> to vector<16x299xf32>
    %484 = tpu.concatenate %482, %483 in 1 : vector<16x21xf32>, vector<16x299xf32> -> vector<16x320xf32>
    %485 = vector.extract_strided_slice %475 {offsets = [0, 0], sizes = [16, 1], strides = [1, 1]} : vector<16x9xf32> to vector<16x1xf32>
    %486 = vector.broadcast %485 : vector<16x1xf32> to vector<16x320xf32>
    %487 = arith.mulf %484, %486 : vector<16x320xf32>
    %488 = arith.addf %481, %487 : vector<16x320xf32>
    %cst_136 = arith.constant 0.000000e+00 : f32
    %489 = vector.broadcast %cst_136 : f32 to vector<16x20xf32>
    %490 = vector.extract_strided_slice %474 {offsets = [0, 0], sizes = [16, 300], strides = [1, 1]} : vector<16x320xf32> to vector<16x300xf32>
    %491 = tpu.concatenate %489, %490 in 1 : vector<16x20xf32>, vector<16x300xf32> -> vector<16x320xf32>
    %492 = vector.extract_strided_slice %475 {offsets = [0, 1], sizes = [16, 1], strides = [1, 1]} : vector<16x9xf32> to vector<16x1xf32>
    %493 = vector.broadcast %492 : vector<16x1xf32> to vector<16x320xf32>
    %494 = arith.mulf %491, %493 : vector<16x320xf32>
    %495 = arith.addf %488, %494 : vector<16x320xf32>
    %cst_137 = arith.constant 0.000000e+00 : f32
    %496 = vector.broadcast %cst_137 : f32 to vector<16x19xf32>
    %497 = vector.extract_strided_slice %474 {offsets = [0, 0], sizes = [16, 301], strides = [1, 1]} : vector<16x320xf32> to vector<16x301xf32>
    %498 = tpu.concatenate %496, %497 in 1 : vector<16x19xf32>, vector<16x301xf32> -> vector<16x320xf32>
    %499 = vector.extract_strided_slice %475 {offsets = [0, 2], sizes = [16, 1], strides = [1, 1]} : vector<16x9xf32> to vector<16x1xf32>
    %500 = vector.broadcast %499 : vector<16x1xf32> to vector<16x320xf32>
    %501 = arith.mulf %498, %500 : vector<16x320xf32>
    %502 = arith.addf %495, %501 : vector<16x320xf32>
    %cst_138 = arith.constant 0.000000e+00 : f32
    %503 = vector.broadcast %cst_138 : f32 to vector<16x1xf32>
    %504 = vector.extract_strided_slice %474 {offsets = [0, 0], sizes = [16, 319], strides = [1, 1]} : vector<16x320xf32> to vector<16x319xf32>
    %505 = tpu.concatenate %503, %504 in 1 : vector<16x1xf32>, vector<16x319xf32> -> vector<16x320xf32>
    %506 = vector.extract_strided_slice %475 {offsets = [0, 3], sizes = [16, 1], strides = [1, 1]} : vector<16x9xf32> to vector<16x1xf32>
    %507 = vector.broadcast %506 : vector<16x1xf32> to vector<16x320xf32>
    %508 = arith.mulf %505, %507 : vector<16x320xf32>
    %509 = arith.addf %502, %508 : vector<16x320xf32>
    %cst_139 = arith.constant 0.000000e+00 : f32
    %510 = vector.broadcast %cst_139 : f32 to vector<16x1xf32>
    %511 = vector.extract_strided_slice %474 {offsets = [0, 1], sizes = [16, 319], strides = [1, 1]} : vector<16x320xf32> to vector<16x319xf32>
    %512 = tpu.concatenate %511, %510 in 1 : vector<16x319xf32>, vector<16x1xf32> -> vector<16x320xf32>
    %513 = vector.extract_strided_slice %475 {offsets = [0, 5], sizes = [16, 1], strides = [1, 1]} : vector<16x9xf32> to vector<16x1xf32>
    %514 = vector.broadcast %513 : vector<16x1xf32> to vector<16x320xf32>
    %515 = arith.mulf %512, %514 : vector<16x320xf32>
    %516 = arith.addf %509, %515 : vector<16x320xf32>
    %cst_140 = arith.constant 0.000000e+00 : f32
    %517 = vector.broadcast %cst_140 : f32 to vector<16x19xf32>
    %518 = vector.extract_strided_slice %474 {offsets = [0, 19], sizes = [16, 301], strides = [1, 1]} : vector<16x320xf32> to vector<16x301xf32>
    %519 = tpu.concatenate %518, %517 in 1 : vector<16x301xf32>, vector<16x19xf32> -> vector<16x320xf32>
    %520 = vector.extract_strided_slice %475 {offsets = [0, 6], sizes = [16, 1], strides = [1, 1]} : vector<16x9xf32> to vector<16x1xf32>
    %521 = vector.broadcast %520 : vector<16x1xf32> to vector<16x320xf32>
    %522 = arith.mulf %519, %521 : vector<16x320xf32>
    %523 = arith.addf %516, %522 : vector<16x320xf32>
    %cst_141 = arith.constant 0.000000e+00 : f32
    %524 = vector.broadcast %cst_141 : f32 to vector<16x20xf32>
    %525 = vector.extract_strided_slice %474 {offsets = [0, 20], sizes = [16, 300], strides = [1, 1]} : vector<16x320xf32> to vector<16x300xf32>
    %526 = tpu.concatenate %525, %524 in 1 : vector<16x300xf32>, vector<16x20xf32> -> vector<16x320xf32>
    %527 = vector.extract_strided_slice %475 {offsets = [0, 7], sizes = [16, 1], strides = [1, 1]} : vector<16x9xf32> to vector<16x1xf32>
    %528 = vector.broadcast %527 : vector<16x1xf32> to vector<16x320xf32>
    %529 = arith.mulf %526, %528 : vector<16x320xf32>
    %530 = arith.addf %523, %529 : vector<16x320xf32>
    %cst_142 = arith.constant 0.000000e+00 : f32
    %531 = vector.broadcast %cst_142 : f32 to vector<16x21xf32>
    %532 = vector.extract_strided_slice %474 {offsets = [0, 21], sizes = [16, 299], strides = [1, 1]} : vector<16x320xf32> to vector<16x299xf32>
    %533 = tpu.concatenate %532, %531 in 1 : vector<16x299xf32>, vector<16x21xf32> -> vector<16x320xf32>
    %534 = vector.extract_strided_slice %475 {offsets = [0, 8], sizes = [16, 1], strides = [1, 1]} : vector<16x9xf32> to vector<16x1xf32>
    %535 = vector.broadcast %534 : vector<16x1xf32> to vector<16x320xf32>
    %536 = arith.mulf %533, %535 : vector<16x320xf32>
    %537 = arith.addf %530, %536 : vector<16x320xf32>
    %cst_143 = arith.constant dense<0.000000e+00> : vector<8x320xf32>
    %538 = tpu.matmul %476, %537, %cst_143 {dimension_numbers = #tpu.dot_dimension_numbers<[1], [0], [0], [1], [0, 0, 1, 1], [], []>} : vector<8x16xf32>, vector<16x320xf32>, vector<8x320xf32> -> vector<8x320xf32>
    %539 = vector.broadcast %477 : vector<8x1xf32> to vector<8x320xf32>
    %540 = arith.mulf %538, %539 : vector<8x320xf32>
    %541 = vector.broadcast %478 : vector<8x1xf32> to vector<8x320xf32>
    %542 = arith.addf %540, %541 : vector<8x320xf32>
    %cst_144 = arith.constant 0.000000e+00 : f32
    %543 = vector.broadcast %cst_144 : f32 to vector<8x320xf32>
    %544 = arith.maximumf %542, %543 : vector<8x320xf32>
    %545 = vector.broadcast %0 : vector<1x320xf32> to vector<8x320xf32>
    %546 = arith.mulf %544, %545 : vector<8x320xf32>
    %547 = arith.addf %546, %74 : vector<8x320xf32>
    %c0_145 = arith.constant 0 : index
    %c0_146 = arith.constant 0 : index
    %c0_147 = arith.constant 0 : index
    %548 = vector.load %arg34[%c0_145, %c0_146, %c0_147] : memref<1x8x320xf32, #tpu.memory_space<vmem>>, vector<1x8x320xf32>
    %549 = vector.shape_cast %548 : vector<1x8x320xf32> to vector<8x320xf32>
    %550 = vector.shape_cast %547 : vector<8x320xf32> to vector<1x8x320xf32>
    tpu.vector_store %arg34[%c0_145, %c0_146, %c0_147], %550 {strides = array<i32>} : memref<1x8x320xf32, #tpu.memory_space<vmem>>, vector<1x8x320xf32>,
    return
  }
  func.func @transform_0(%arg0: i32) -> (i32, i32, i32) {
    %c0_i32 = arith.constant 0 : i32
    %c0_i32_0 = arith.constant 0 : i32
    %c0_i32_1 = arith.constant 0 : i32
    return %arg0, %c0_i32, %c0_i32_0 : i32, i32, i32
  }
  func.func @transform_1(%arg0: i32) -> (i32, i32) {
    %c0_i32 = arith.constant 0 : i32
    %c0_i32_0 = arith.constant 0 : i32
    %c0_i32_1 = arith.constant 0 : i32
    return %c0_i32, %c0_i32_0 : i32, i32
  }
  func.func @transform_2(%arg0: i32) -> (i32, i32) {
    %c0_i32 = arith.constant 0 : i32
    %c0_i32_0 = arith.constant 0 : i32
    %c0_i32_1 = arith.constant 0 : i32
    return %c0_i32, %c0_i32_0 : i32, i32
  }
  func.func @transform_3(%arg0: i32) -> (i32, i32) {
    %c0_i32 = arith.constant 0 : i32
    %c0_i32_0 = arith.constant 0 : i32
    %c0_i32_1 = arith.constant 0 : i32
    return %c0_i32, %c0_i32_0 : i32, i32
  }
  func.func @transform_4(%arg0: i32) -> (i32, i32) {
    %c0_i32 = arith.constant 0 : i32
    %c0_i32_0 = arith.constant 0 : i32
    %c0_i32_1 = arith.constant 0 : i32
    return %c0_i32, %c0_i32_0 : i32, i32
  }
  func.func @transform_5(%arg0: i32) -> (i32, i32) {
    %c0_i32 = arith.constant 0 : i32
    %c0_i32_0 = arith.constant 0 : i32
    %c0_i32_1 = arith.constant 0 : i32
    return %c0_i32, %c0_i32_0 : i32, i32
  }
  func.func @transform_6(%arg0: i32) -> (i32, i32) {
    %c0_i32 = arith.constant 0 : i32
    %c0_i32_0 = arith.constant 0 : i32
    %c0_i32_1 = arith.constant 0 : i32
    return %c0_i32, %c0_i32_0 : i32, i32
  }
  func.func @transform_7(%arg0: i32) -> (i32, i32) {
    %c0_i32 = arith.constant 0 : i32
    %c0_i32_0 = arith.constant 0 : i32
    %c0_i32_1 = arith.constant 0 : i32
    return %c0_i32, %c0_i32_0 : i32, i32
  }
  func.func @transform_8(%arg0: i32) -> (i32, i32) {
    %c0_i32 = arith.constant 0 : i32
    %c0_i32_0 = arith.constant 0 : i32
    %c0_i32_1 = arith.constant 0 : i32
    return %c0_i32, %c0_i32_0 : i32, i32
  }
  func.func @transform_9(%arg0: i32) -> (i32, i32) {
    %c0_i32 = arith.constant 0 : i32
    %c0_i32_0 = arith.constant 0 : i32
    %c0_i32_1 = arith.constant 0 : i32
    return %c0_i32, %c0_i32_0 : i32, i32
  }
  func.func @transform_10(%arg0: i32) -> (i32, i32) {
    %c0_i32 = arith.constant 0 : i32
    %c0_i32_0 = arith.constant 0 : i32
    %c0_i32_1 = arith.constant 0 : i32
    return %c0_i32, %c0_i32_0 : i32, i32
  }
  func.func @transform_11(%arg0: i32) -> (i32, i32) {
    %c0_i32 = arith.constant 0 : i32
    %c0_i32_0 = arith.constant 0 : i32
    %c0_i32_1 = arith.constant 0 : i32
    return %c0_i32, %c0_i32_0 : i32, i32
  }
  func.func @transform_12(%arg0: i32) -> (i32, i32) {
    %c0_i32 = arith.constant 0 : i32
    %c0_i32_0 = arith.constant 0 : i32
    %c0_i32_1 = arith.constant 0 : i32
    return %c0_i32, %c0_i32_0 : i32, i32
  }
  func.func @transform_13(%arg0: i32) -> (i32, i32) {
    %c0_i32 = arith.constant 0 : i32
    %c0_i32_0 = arith.constant 0 : i32
    %c0_i32_1 = arith.constant 0 : i32
    return %c0_i32, %c0_i32_0 : i32, i32
  }
  func.func @transform_14(%arg0: i32) -> (i32, i32) {
    %c0_i32 = arith.constant 0 : i32
    %c0_i32_0 = arith.constant 0 : i32
    %c0_i32_1 = arith.constant 0 : i32
    return %c0_i32, %c0_i32_0 : i32, i32
  }
  func.func @transform_15(%arg0: i32) -> (i32, i32) {
    %c0_i32 = arith.constant 0 : i32
    %c0_i32_0 = arith.constant 0 : i32
    %c0_i32_1 = arith.constant 0 : i32
    return %c0_i32, %c0_i32_0 : i32, i32
  }
  func.func @transform_16(%arg0: i32) -> (i32, i32) {
    %c0_i32 = arith.constant 0 : i32
    %c0_i32_0 = arith.constant 0 : i32
    %c0_i32_1 = arith.constant 0 : i32
    return %c0_i32, %c0_i32_0 : i32, i32
  }
  func.func @transform_17(%arg0: i32) -> (i32, i32) {
    %c0_i32 = arith.constant 0 : i32
    %c0_i32_0 = arith.constant 0 : i32
    %c0_i32_1 = arith.constant 0 : i32
    return %c0_i32, %c0_i32_0 : i32, i32
  }
  func.func @transform_18(%arg0: i32) -> (i32, i32) {
    %c0_i32 = arith.constant 0 : i32
    %c0_i32_0 = arith.constant 0 : i32
    %c0_i32_1 = arith.constant 0 : i32
    return %c0_i32, %c0_i32_0 : i32, i32
  }
  func.func @transform_19(%arg0: i32) -> (i32, i32) {
    %c0_i32 = arith.constant 0 : i32
    %c0_i32_0 = arith.constant 0 : i32
    %c0_i32_1 = arith.constant 0 : i32
    return %c0_i32, %c0_i32_0 : i32, i32
  }
  func.func @transform_20(%arg0: i32) -> (i32, i32) {
    %c0_i32 = arith.constant 0 : i32
    %c0_i32_0 = arith.constant 0 : i32
    %c0_i32_1 = arith.constant 0 : i32
    return %c0_i32, %c0_i32_0 : i32, i32
  }
  func.func @transform_21(%arg0: i32) -> (i32, i32) {
    %c0_i32 = arith.constant 0 : i32
    %c0_i32_0 = arith.constant 0 : i32
    %c0_i32_1 = arith.constant 0 : i32
    return %c0_i32, %c0_i32_0 : i32, i32
  }
  func.func @transform_22(%arg0: i32) -> (i32, i32) {
    %c0_i32 = arith.constant 0 : i32
    %c0_i32_0 = arith.constant 0 : i32
    %c0_i32_1 = arith.constant 0 : i32
    return %c0_i32, %c0_i32_0 : i32, i32
  }
  func.func @transform_23(%arg0: i32) -> (i32, i32) {
    %c0_i32 = arith.constant 0 : i32
    %c0_i32_0 = arith.constant 0 : i32
    %c0_i32_1 = arith.constant 0 : i32
    return %c0_i32, %c0_i32_0 : i32, i32
  }
  func.func @transform_24(%arg0: i32) -> (i32, i32) {
    %c0_i32 = arith.constant 0 : i32
    %c0_i32_0 = arith.constant 0 : i32
    %c0_i32_1 = arith.constant 0 : i32
    return %c0_i32, %c0_i32_0 : i32, i32
  }
  func.func @transform_25(%arg0: i32) -> (i32, i32) {
    %c0_i32 = arith.constant 0 : i32
    %c0_i32_0 = arith.constant 0 : i32
    %c0_i32_1 = arith.constant 0 : i32
    return %c0_i32, %c0_i32_0 : i32, i32
  }
  func.func @transform_26(%arg0: i32) -> (i32, i32) {
    %c0_i32 = arith.constant 0 : i32
    %c0_i32_0 = arith.constant 0 : i32
    %c0_i32_1 = arith.constant 0 : i32
    return %c0_i32, %c0_i32_0 : i32, i32
  }
  func.func @transform_27(%arg0: i32) -> (i32, i32) {
    %c0_i32 = arith.constant 0 : i32
    %c0_i32_0 = arith.constant 0 : i32
    %c0_i32_1 = arith.constant 0 : i32
    return %c0_i32, %c0_i32_0 : i32, i32
  }
  func.func @transform_28(%arg0: i32) -> (i32, i32) {
    %c0_i32 = arith.constant 0 : i32
    %c0_i32_0 = arith.constant 0 : i32
    %c0_i32_1 = arith.constant 0 : i32
    return %c0_i32, %c0_i32_0 : i32, i32
  }
  func.func @transform_29(%arg0: i32) -> (i32, i32) {
    %c0_i32 = arith.constant 0 : i32
    %c0_i32_0 = arith.constant 0 : i32
    %c0_i32_1 = arith.constant 0 : i32
    return %c0_i32, %c0_i32_0 : i32, i32
  }
  func.func @transform_30(%arg0: i32) -> (i32, i32) {
    %c0_i32 = arith.constant 0 : i32
    %c0_i32_0 = arith.constant 0 : i32
    %c0_i32_1 = arith.constant 0 : i32
    return %c0_i32, %c0_i32_0 : i32, i32
  }
  func.func @transform_31(%arg0: i32) -> (i32, i32) {
    %c0_i32 = arith.constant 0 : i32
    %c0_i32_0 = arith.constant 0 : i32
    %c0_i32_1 = arith.constant 0 : i32
    return %c0_i32, %c0_i32_0 : i32, i32
  }
  func.func @transform_32(%arg0: i32) -> (i32, i32) {
    %c0_i32 = arith.constant 0 : i32
    %c0_i32_0 = arith.constant 0 : i32
    %c0_i32_1 = arith.constant 0 : i32
    return %c0_i32, %c0_i32_0 : i32, i32
  }
  func.func @transform_33(%arg0: i32) -> (i32, i32, i32) {
    %c0_i32 = arith.constant 0 : i32
    %c0_i32_0 = arith.constant 0 : i32
    %c0_i32_1 = arith.constant 0 : i32
    return %arg0, %c0_i32, %c0_i32_0 : i32, i32, i32
  }
}

</mosaic_0001>

<llo_original>
// kernel: dwrsu4f_forward.1
$region0: #{dwrsu4f_forward.1}
  #allocation0 [shape = 'u32[]', space=smem, size = 0x4, offset = 0x4, fixed_abs, tag = 'smem constant byte address 0x4 - core index']
  #allocation1 [shape = 'u32[144,128]{1,0:T(1,128)}', space=vmem, size = 0x12000, scoped, tag = 'internal scratch']
  %s0 = inlined_call_operand.smem [shape: u32[34], index: -1, kind: input, shape index: {}]
  %s1 = sld [smem:[%s0]]
  %s2 = scalar_lea.smem %s0, 1
  %s3 = sld [smem:[%s2]]
  %s4 = scalar_lea.smem %s0, 2
  %s5 = sld [smem:[%s4]]
  %s6 = scalar_lea.smem %s0, 3
  %s7 = sld [smem:[%s6]]
  %s8 = scalar_lea.smem %s0, 4
  %s9 = sld [smem:[%s8]]
  %s10 = scalar_lea.smem %s0, 5
  %s11 = sld [smem:[%s10]]
  %s12 = scalar_lea.smem %s0, 6
  %s13 = sld [smem:[%s12]]
  %s14 = scalar_lea.smem %s0, 7
  %s15 = sld [smem:[%s14]]
  %s16 = scalar_lea.smem %s0, 8
  %s17 = sld [smem:[%s16]]
  %s18 = scalar_lea.smem %s0, 9
  %s19 = sld [smem:[%s18]]
  %s20 = scalar_lea.smem %s0, 10
  %s21 = sld [smem:[%s20]]
  %s22 = scalar_lea.smem %s0, 11
  %s23 = sld [smem:[%s22]]
  %s24 = scalar_lea.smem %s0, 12
  %s25 = sld [smem:[%s24]]
  %s26 = scalar_lea.smem %s0, 13
  %s27 = sld [smem:[%s26]]
  %s28 = scalar_lea.smem %s0, 14
  %s29 = sld [smem:[%s28]]
  %s30 = scalar_lea.smem %s0, 15
  %s31 = sld [smem:[%s30]]
  %s32 = scalar_lea.smem %s0, 16
  %s33 = sld [smem:[%s32]]
  %s34 = scalar_lea.smem %s0, 17
  %s35 = sld [smem:[%s34]]
  %s36 = scalar_lea.smem %s0, 18
  %s37 = sld [smem:[%s36]]
  %s38 = scalar_lea.smem %s0, 19
  %s39 = sld [smem:[%s38]]
  %s40 = scalar_lea.smem %s0, 20
  %s41 = sld [smem:[%s40]]
  %s42 = scalar_lea.smem %s0, 21
  %s43 = sld [smem:[%s42]]
  %s44 = scalar_lea.smem %s0, 22
  %s45 = sld [smem:[%s44]]
  %s46 = scalar_lea.smem %s0, 23
  %s47 = sld [smem:[%s46]]
  %s48 = scalar_lea.smem %s0, 24
  %s49 = sld [smem:[%s48]]
  %s50 = scalar_lea.smem %s0, 25
  %s51 = sld [smem:[%s50]]
  %s52 = scalar_lea.smem %s0, 26
  %s53 = sld [smem:[%s52]]
  %s54 = scalar_lea.smem %s0, 27
  %s55 = sld [smem:[%s54]]
  %s56 = scalar_lea.smem %s0, 28
  %s57 = sld [smem:[%s56]]
  %s58 = scalar_lea.smem %s0, 29
  %s59 = sld [smem:[%s58]]
  %s60 = scalar_lea.smem %s0, 30
  %s61 = sld [smem:[%s60]]
  %s62 = scalar_lea.smem %s0, 31
  %s63 = sld [smem:[%s62]]
  %s64 = scalar_lea.smem %s0, 32
  %s65 = sld [smem:[%s64]]
  %s66 = scalar_lea.smem %s0, 33
  %s67 = sld [smem:[%s66]]
  %s68 = sld [smem:[#allocation0]]
  $region165: #{dwrsu4f_forward.1} parent=0
    _
  %s70 = ssub.s32 1, %s68
  %s71 = scalar_select 0, %s70, %s68
  loop: start=0, step=1, limit=4
  $region2: #{dwrsu4f_forward.1} parent=0 // loop_pre_header
    _
  $region3: #{dwrsu4f_forward.1} parent=0 // loop_header
    %s73 = sphi 0, %s77
    %p74 = scmp.ge.s32.totalorder %s73, 4
    %s83 = sphi 0, %s85
    %s86 = sphi 0, %s83
    %s87 = sphi 0, %s86
    %s103 = sphi 0, %s87
    %s107 = sphi 0, %s107
    %s109 = sphi 0, %s107
    %s110 = sphi 0, %s109
    %s124 = sphi 0, %s110
    %s128 = sphi 0, %s128
    %s130 = sphi 0, %s128
    %s131 = sphi 0, %s130
    %s145 = sphi 0, %s131
    %s149 = sphi 0, %s149
    %s151 = sphi 0, %s149
    %s152 = sphi 0, %s151
    %s166 = sphi 0, %s152
    %s170 = sphi 0, %s170
    %s172 = sphi 0, %s170
    %s173 = sphi 0, %s172
    %s187 = sphi 0, %s173
    %s191 = sphi 0, %s191
    %s193 = sphi 0, %s191
    %s194 = sphi 0, %s193
    %s208 = sphi 0, %s194
    %s212 = sphi 0, %s212
    %s214 = sphi 0, %s212
    %s215 = sphi 0, %s214
    %s229 = sphi 0, %s215
    %s233 = sphi 0, %s233
    %s235 = sphi 0, %s233
    %s236 = sphi 0, %s235
    %s250 = sphi 0, %s236
    %s254 = sphi 0, %s254
    %s256 = sphi 0, %s254
    %s257 = sphi 0, %s256
    %s271 = sphi 0, %s257
    %s275 = sphi 0, %s275
    %s277 = sphi 0, %s275
    %s278 = sphi 0, %s277
    %s292 = sphi 0, %s278
    %s296 = sphi 0, %s296
    %s298 = sphi 0, %s296
    %s299 = sphi 0, %s298
    %s313 = sphi 0, %s299
    %s317 = sphi 0, %s317
    %s319 = sphi 0, %s317
    %s320 = sphi 0, %s319
    %s334 = sphi 0, %s320
    %s338 = sphi 0, %s338
    %s340 = sphi 0, %s338
    %s341 = sphi 0, %s340
    %s355 = sphi 0, %s341
    %s359 = sphi 0, %s359
    %s361 = sphi 0, %s359
    %s362 = sphi 0, %s361
    %s376 = sphi 0, %s362
    %s380 = sphi 0, %s380
    %s382 = sphi 0, %s380
    %s383 = sphi 0, %s382
    %s397 = sphi 0, %s383
    %s401 = sphi 0, %s401
    %s403 = sphi 0, %s401
    %s404 = sphi 0, %s403
    %s418 = sphi 0, %s404
    %s422 = sphi 0, %s422
    %s424 = sphi 0, %s422
    %s425 = sphi 0, %s424
    %s439 = sphi 0, %s425
    %s443 = sphi 0, %s443
    %s445 = sphi 0, %s443
    %s446 = sphi 0, %s445
    %s460 = sphi 0, %s446
    %s464 = sphi 0, %s464
    %s466 = sphi 0, %s464
    %s467 = sphi 0, %s466
    %s481 = sphi 0, %s467
    %s485 = sphi 0, %s485
    %s487 = sphi 0, %s485
    %s488 = sphi 0, %s487
    %s502 = sphi 0, %s488
    %s506 = sphi 0, %s506
    %s508 = sphi 0, %s506
    %s509 = sphi 0, %s508
    %s523 = sphi 0, %s509
    %s527 = sphi 0, %s527
    %s529 = sphi 0, %s527
    %s530 = sphi 0, %s529
    %s544 = sphi 0, %s530
    %s548 = sphi 0, %s548
    %s550 = sphi 0, %s548
    %s551 = sphi 0, %s550
    %s565 = sphi 0, %s551
    %s569 = sphi 0, %s569
    %s571 = sphi 0, %s569
    %s572 = sphi 0, %s571
    %s586 = sphi 0, %s572
    %s590 = sphi 0, %s590
    %s592 = sphi 0, %s590
    %s593 = sphi 0, %s592
    %s607 = sphi 0, %s593
    %s611 = sphi 0, %s611
    %s613 = sphi 0, %s611
    %s614 = sphi 0, %s613
    %s628 = sphi 0, %s614
    %s632 = sphi 0, %s632
    %s634 = sphi 0, %s632
    %s635 = sphi 0, %s634
    %s649 = sphi 0, %s635
    %s653 = sphi 0, %s653
    %s655 = sphi 0, %s653
    %s656 = sphi 0, %s655
    %s670 = sphi 0, %s656
    %s674 = sphi 0, %s674
    %s676 = sphi 0, %s674
    %s677 = sphi 0, %s676
    %s691 = sphi 0, %s677
    %s695 = sphi 0, %s695
    %s697 = sphi 0, %s695
    %s698 = sphi 0, %s697
    %s712 = sphi 0, %s698
    %s716 = sphi 0, %s716
    %s718 = sphi 0, %s716
    %s719 = sphi 0, %s718
    %s733 = sphi 0, %s719
    %s737 = sphi 0, %s737
    %s739 = sphi 0, %s737
    %s740 = sphi 0, %s739
    %s754 = sphi 0, %s740
    %s758 = sphi 0, %s758
    %s760 = sphi 0, %s758
    %s761 = sphi 0, %s760
    %s775 = sphi 0, %s761
    %s781 = sphi 0, %s783
    %s784 = sphi 0, %s781
    %s785 = sphi 0, %s784
    %s801 = sphi 0, %s785
  $region4: #{dwrsu4f_forward.1} parent=0 // loop_header_branch
    %76 = sbr.rel (%p74) target = $region8
  $region5: #{dwrsu4f_forward.1} parent=0 // loop_body
    %s78 = ssub.s32 %s73, 1
    %s79 = ssub.s32 %s73, 2
    %s80 = sadd.s32 %s73, 1
    %s81 = ssub.s32 %s73, %s80
    %p82 = scmp.eq.s32.totalorder %s81, 0
    %s84 = sadd.s32 %s83, 1
    %s85 = scalar_select %p82, %s83, %s84
    %p88 = pneg %p82
    %p89 = scmp.eq.s32.totalorder %s73, 1
    %p90 = por %p88, %p89
    %p91 = scmp.ne.s32.totalorder %s83, %s86
    %p92 = scmp.eq.s32.totalorder %s73, 0
    %p93 = por %p91, %p92
    %p94 = scmp.ne.s32.totalorder %s83, %s86
    %p95 = scmp.eq.s32.totalorder %s78, 1
    %p96 = por %p94, %p95
    %p97 = scmp.ne.s32.totalorder %s86, %s87
    %p98 = scmp.eq.s32.totalorder %s78, 0
    %p99 = por %p97, %p98
    %p100 = scmp.ne.s32.totalorder %s86, %s87
    %p101 = scmp.eq.s32.totalorder %s79, 1
    %p102 = por %p100, %p101
    %p104 = scmp.ne.s32.totalorder %s87, %s103
    %p105 = scmp.eq.s32.totalorder %s79, 0
    %p106 = por %p104, %p105
    %s108 = sadd.s32 %s107, 1
    %p111 = scmp.eq.s32.totalorder %s73, 1
    %p112 = scmp.ne.s32.totalorder %s107, %s109
    %p113 = scmp.eq.s32.totalorder %s73, 0
    %p114 = por %p112, %p113
    %p115 = scmp.ne.s32.totalorder %s107, %s109
    %p116 = scmp.eq.s32.totalorder %s78, 1
    %p117 = por %p115, %p116
    %p118 = scmp.ne.s32.totalorder %s109, %s110
    %p119 = scmp.eq.s32.totalorder %s78, 0
    %p120 = por %p118, %p119
    %p121 = scmp.ne.s32.totalorder %s109, %s110
    %p122 = scmp.eq.s32.totalorder %s79, 1
    %p123 = por %p121, %p122
    %p125 = scmp.ne.s32.totalorder %s110, %s124
    %p126 = scmp.eq.s32.totalorder %s79, 0
    %p127 = por %p125, %p126
    %s129 = sadd.s32 %s128, 1
    %p132 = scmp.eq.s32.totalorder %s73, 1
    %p133 = scmp.ne.s32.totalorder %s128, %s130
    %p134 = scmp.eq.s32.totalorder %s73, 0
    %p135 = por %p133, %p134
    %p136 = scmp.ne.s32.totalorder %s128, %s130
    %p137 = scmp.eq.s32.totalorder %s78, 1
    %p138 = por %p136, %p137
    %p139 = scmp.ne.s32.totalorder %s130, %s131
    %p140 = scmp.eq.s32.totalorder %s78, 0
    %p141 = por %p139, %p140
    %p142 = scmp.ne.s32.totalorder %s130, %s131
    %p143 = scmp.eq.s32.totalorder %s79, 1
    %p144 = por %p142, %p143
    %p146 = scmp.ne.s32.totalorder %s131, %s145
    %p147 = scmp.eq.s32.totalorder %s79, 0
    %p148 = por %p146, %p147
    %s150 = sadd.s32 %s149, 1
    %p153 = scmp.eq.s32.totalorder %s73, 1
    %p154 = scmp.ne.s32.totalorder %s149, %s151
    %p155 = scmp.eq.s32.totalorder %s73, 0
    %p156 = por %p154, %p155
    %p157 = scmp.ne.s32.totalorder %s149, %s151
    %p158 = scmp.eq.s32.totalorder %s78, 1
    %p159 = por %p157, %p158
    %p160 = scmp.ne.s32.totalorder %s151, %s152
    %p161 = scmp.eq.s32.totalorder %s78, 0
    %p162 = por %p160, %p161
    %p163 = scmp.ne.s32.totalorder %s151, %s152
    %p164 = scmp.eq.s32.totalorder %s79, 1
    %p165 = por %p163, %p164
    %p167 = scmp.ne.s32.totalorder %s152, %s166
    %p168 = scmp.eq.s32.totalorder %s79, 0
    %p169 = por %p167, %p168
    %s171 = sadd.s32 %s170, 1
    %p174 = scmp.eq.s32.totalorder %s73, 1
    %p175 = scmp.ne.s32.totalorder %s170, %s172
    %p176 = scmp.eq.s32.totalorder %s73, 0
    %p177 = por %p175, %p176
    %p178 = scmp.ne.s32.totalorder %s170, %s172
    %p179 = scmp.eq.s32.totalorder %s78, 1
    %p180 = por %p178, %p179
    %p181 = scmp.ne.s32.totalorder %s172, %s173
    %p182 = scmp.eq.s32.totalorder %s78, 0
    %p183 = por %p181, %p182
    %p184 = scmp.ne.s32.totalorder %s172, %s173
    %p185 = scmp.eq.s32.totalorder %s79, 1
    %p186 = por %p184, %p185
    %p188 = scmp.ne.s32.totalorder %s173, %s187
    %p189 = scmp.eq.s32.totalorder %s79, 0
    %p190 = por %p188, %p189
    %s192 = sadd.s32 %s191, 1
    %p195 = scmp.eq.s32.totalorder %s73, 1
    %p196 = scmp.ne.s32.totalorder %s191, %s193
    %p197 = scmp.eq.s32.totalorder %s73, 0
    %p198 = por %p196, %p197
    %p199 = scmp.ne.s32.totalorder %s191, %s193
    %p200 = scmp.eq.s32.totalorder %s78, 1
    %p201 = por %p199, %p200
    %p202 = scmp.ne.s32.totalorder %s193, %s194
    %p203 = scmp.eq.s32.totalorder %s78, 0
    %p204 = por %p202, %p203
    %p205 = scmp.ne.s32.totalorder %s193, %s194
    %p206 = scmp.eq.s32.totalorder %s79, 1
    %p207 = por %p205, %p206
    %p209 = scmp.ne.s32.totalorder %s194, %s208
    %p210 = scmp.eq.s32.totalorder %s79, 0
    %p211 = por %p209, %p210
    %s213 = sadd.s32 %s212, 1
    %p216 = scmp.eq.s32.totalorder %s73, 1
    %p217 = scmp.ne.s32.totalorder %s212, %s214
    %p218 = scmp.eq.s32.totalorder %s73, 0
    %p219 = por %p217, %p218
    %p220 = scmp.ne.s32.totalorder %s212, %s214
    %p221 = scmp.eq.s32.totalorder %s78, 1
    %p222 = por %p220, %p221
    %p223 = scmp.ne.s32.totalorder %s214, %s215
    %p224 = scmp.eq.s32.totalorder %s78, 0
    %p225 = por %p223, %p224
    %p226 = scmp.ne.s32.totalorder %s214, %s215
    %p227 = scmp.eq.s32.totalorder %s79, 1
    %p228 = por %p226, %p227
    %p230 = scmp.ne.s32.totalorder %s215, %s229
    %p231 = scmp.eq.s32.totalorder %s79, 0
    %p232 = por %p230, %p231
    %s234 = sadd.s32 %s233, 1
    %p237 = scmp.eq.s32.totalorder %s73, 1
    %p238 = scmp.ne.s32.totalorder %s233, %s235
    %p239 = scmp.eq.s32.totalorder %s73, 0
    %p240 = por %p238, %p239
    %p241 = scmp.ne.s32.totalorder %s233, %s235
    %p242 = scmp.eq.s32.totalorder %s78, 1
    %p243 = por %p241, %p242
    %p244 = scmp.ne.s32.totalorder %s235, %s236
    %p245 = scmp.eq.s32.totalorder %s78, 0
    %p246 = por %p244, %p245
    %p247 = scmp.ne.s32.totalorder %s235, %s236
    %p248 = scmp.eq.s32.totalorder %s79, 1
    %p249 = por %p247, %p248
    %p251 = scmp.ne.s32.totalorder %s236, %s250
    %p252 = scmp.eq.s32.totalorder %s79, 0
    %p253 = por %p251, %p252
    %s255 = sadd.s32 %s254, 1
    %p258 = scmp.eq.s32.totalorder %s73, 1
    %p259 = scmp.ne.s32.totalorder %s254, %s256
    %p260 = scmp.eq.s32.totalorder %s73, 0
    %p261 = por %p259, %p260
    %p262 = scmp.ne.s32.totalorder %s254, %s256
    %p263 = scmp.eq.s32.totalorder %s78, 1
    %p264 = por %p262, %p263
    %p265 = scmp.ne.s32.totalorder %s256, %s257
    %p266 = scmp.eq.s32.totalorder %s78, 0
    %p267 = por %p265, %p266
    %p268 = scmp.ne.s32.totalorder %s256, %s257
    %p269 = scmp.eq.s32.totalorder %s79, 1
    %p270 = por %p268, %p269
    %p272 = scmp.ne.s32.totalorder %s257, %s271
    %p273 = scmp.eq.s32.totalorder %s79, 0
    %p274 = por %p272, %p273
    %s276 = sadd.s32 %s275, 1
    %p279 = scmp.eq.s32.totalorder %s73, 1
    %p280 = scmp.ne.s32.totalorder %s275, %s277
    %p281 = scmp.eq.s32.totalorder %s73, 0
    %p282 = por %p280, %p281
    %p283 = scmp.ne.s32.totalorder %s275, %s277
    %p284 = scmp.eq.s32.totalorder %s78, 1
    %p285 = por %p283, %p284
    %p286 = scmp.ne.s32.totalorder %s277, %s278
    %p287 = scmp.eq.s32.totalorder %s78, 0
    %p288 = por %p286, %p287
    %p289 = scmp.ne.s32.totalorder %s277, %s278
    %p290 = scmp.eq.s32.totalorder %s79, 1
    %p291 = por %p289, %p290
    %p293 = scmp.ne.s32.totalorder %s278, %s292
    %p294 = scmp.eq.s32.totalorder %s79, 0
    %p295 = por %p293, %p294
    %s297 = sadd.s32 %s296, 1
    %p300 = scmp.eq.s32.totalorder %s73, 1
    %p301 = scmp.ne.s32.totalorder %s296, %s298
    %p302 = scmp.eq.s32.totalorder %s73, 0
    %p303 = por %p301, %p302
    %p304 = scmp.ne.s32.totalorder %s296, %s298
    %p305 = scmp.eq.s32.totalorder %s78, 1
    %p306 = por %p304, %p305
    %p307 = scmp.ne.s32.totalorder %s298, %s299
    %p308 = scmp.eq.s32.totalorder %s78, 0
    %p309 = por %p307, %p308
    %p310 = scmp.ne.s32.totalorder %s298, %s299
    %p311 = scmp.eq.s32.totalorder %s79, 1
    %p312 = por %p310, %p311
    %p314 = scmp.ne.s32.totalorder %s299, %s313
    %p315 = scmp.eq.s32.totalorder %s79, 0
    %p316 = por %p314, %p315
    %s318 = sadd.s32 %s317, 1
    %p321 = scmp.eq.s32.totalorder %s73, 1
    %p322 = scmp.ne.s32.totalorder %s317, %s319
    %p323 = scmp.eq.s32.totalorder %s73, 0
    %p324 = por %p322, %p323
    %p325 = scmp.ne.s32.totalorder %s317, %s319
    %p326 = scmp.eq.s32.totalorder %s78, 1
    %p327 = por %p325, %p326
    %p328 = scmp.ne.s32.totalorder %s319, %s320
    %p329 = scmp.eq.s32.totalorder %s78, 0
    %p330 = por %p328, %p329
    %p331 = scmp.ne.s32.totalorder %s319, %s320
    %p332 = scmp.eq.s32.totalorder %s79, 1
    %p333 = por %p331, %p332
    %p335 = scmp.ne.s32.totalorder %s320, %s334
    %p336 = scmp.eq.s32.totalorder %s79, 0
    %p337 = por %p335, %p336
    %s339 = sadd.s32 %s338, 1
    %p342 = scmp.eq.s32.totalorder %s73, 1
    %p343 = scmp.ne.s32.totalorder %s338, %s340
    %p344 = scmp.eq.s32.totalorder %s73, 0
    %p345 = por %p343, %p344
    %p346 = scmp.ne.s32.totalorder %s338, %s340
    %p347 = scmp.eq.s32.totalorder %s78, 1
    %p348 = por %p346, %p347
    %p349 = scmp.ne.s32.totalorder %s340, %s341
    %p350 = scmp.eq.s32.totalorder %s78, 0
    %p351 = por %p349, %p350
    %p352 = scmp.ne.s32.totalorder %s340, %s341
    %p353 = scmp.eq.s32.totalorder %s79, 1
    %p354 = por %p352, %p353
    %p356 = scmp.ne.s32.totalorder %s341, %s355
    %p357 = scmp.eq.s32.totalorder %s79, 0
    %p358 = por %p356, %p357
    %s360 = sadd.s32 %s359, 1
    %p363 = scmp.eq.s32.totalorder %s73, 1
    %p364 = scmp.ne.s32.totalorder %s359, %s361
    %p365 = scmp.eq.s32.totalorder %s73, 0
    %p366 = por %p364, %p365
    %p367 = scmp.ne.s32.totalorder %s359, %s361
    %p368 = scmp.eq.s32.totalorder %s78, 1
    %p369 = por %p367, %p368
    %p370 = scmp.ne.s32.totalorder %s361, %s362
    %p371 = scmp.eq.s32.totalorder %s78, 0
    %p372 = por %p370, %p371
    %p373 = scmp.ne.s32.totalorder %s361, %s362
    %p374 = scmp.eq.s32.totalorder %s79, 1
    %p375 = por %p373, %p374
    %p377 = scmp.ne.s32.totalorder %s362, %s376
    %p378 = scmp.eq.s32.totalorder %s79, 0
    %p379 = por %p377, %p378
    %s381 = sadd.s32 %s380, 1
    %p384 = scmp.eq.s32.totalorder %s73, 1
    %p385 = scmp.ne.s32.totalorder %s380, %s382
    %p386 = scmp.eq.s32.totalorder %s73, 0
    %p387 = por %p385, %p386
    %p388 = scmp.ne.s32.totalorder %s380, %s382
    %p389 = scmp.eq.s32.totalorder %s78, 1
    %p390 = por %p388, %p389
    %p391 = scmp.ne.s32.totalorder %s382, %s383
    %p392 = scmp.eq.s32.totalorder %s78, 0
    %p393 = por %p391, %p392
    %p394 = scmp.ne.s32.totalorder %s382, %s383
    %p395 = scmp.eq.s32.totalorder %s79, 1
    %p396 = por %p394, %p395
    %p398 = scmp.ne.s32.totalorder %s383, %s397
    %p399 = scmp.eq.s32.totalorder %s79, 0
    %p400 = por %p398, %p399
    %s402 = sadd.s32 %s401, 1
    %p405 = scmp.eq.s32.totalorder %s73, 1
    %p406 = scmp.ne.s32.totalorder %s401, %s403
    %p407 = scmp.eq.s32.totalorder %s73, 0
    %p408 = por %p406, %p407
    %p409 = scmp.ne.s32.totalorder %s401, %s403
    %p410 = scmp.eq.s32.totalorder %s78, 1
    %p411 = por %p409, %p410
    %p412 = scmp.ne.s32.totalorder %s403, %s404
    %p413 = scmp.eq.s32.totalorder %s78, 0
    %p414 = por %p412, %p413
    %p415 = scmp.ne.s32.totalorder %s403, %s404
    %p416 = scmp.eq.s32.totalorder %s79, 1
    %p417 = por %p415, %p416
    %p419 = scmp.ne.s32.totalorder %s404, %s418
    %p420 = scmp.eq.s32.totalorder %s79, 0
    %p421 = por %p419, %p420
    %s423 = sadd.s32 %s422, 1
    %p426 = scmp.eq.s32.totalorder %s73, 1
    %p427 = scmp.ne.s32.totalorder %s422, %s424
    %p428 = scmp.eq.s32.totalorder %s73, 0
    %p429 = por %p427, %p428
    %p430 = scmp.ne.s32.totalorder %s422, %s424
    %p431 = scmp.eq.s32.totalorder %s78, 1
    %p432 = por %p430, %p431
    %p433 = scmp.ne.s32.totalorder %s424, %s425
    %p434 = scmp.eq.s32.totalorder %s78, 0
    %p435 = por %p433, %p434
    %p436 = scmp.ne.s32.totalorder %s424, %s425
    %p437 = scmp.eq.s32.totalorder %s79, 1
    %p438 = por %p436, %p437
    %p440 = scmp.ne.s32.totalorder %s425, %s439
    %p441 = scmp.eq.s32.totalorder %s79, 0
    %p442 = por %p440, %p441
    %s444 = sadd.s32 %s443, 1
    %p447 = scmp.eq.s32.totalorder %s73, 1
    %p448 = scmp.ne.s32.totalorder %s443, %s445
    %p449 = scmp.eq.s32.totalorder %s73, 0
    %p450 = por %p448, %p449
    %p451 = scmp.ne.s32.totalorder %s443, %s445
    %p452 = scmp.eq.s32.totalorder %s78, 1
    %p453 = por %p451, %p452
    %p454 = scmp.ne.s32.totalorder %s445, %s446
    %p455 = scmp.eq.s32.totalorder %s78, 0
    %p456 = por %p454, %p455
    %p457 = scmp.ne.s32.totalorder %s445, %s446
    %p458 = scmp.eq.s32.totalorder %s79, 1
    %p459 = por %p457, %p458
    %p461 = scmp.ne.s32.totalorder %s446, %s460
    %p462 = scmp.eq.s32.totalorder %s79, 0
    %p463 = por %p461, %p462
    %s465 = sadd.s32 %s464, 1
    %p468 = scmp.eq.s32.totalorder %s73, 1
    %p469 = scmp.ne.s32.totalorder %s464, %s466
    %p470 = scmp.eq.s32.totalorder %s73, 0
    %p471 = por %p469, %p470
    %p472 = scmp.ne.s32.totalorder %s464, %s466
    %p473 = scmp.eq.s32.totalorder %s78, 1
    %p474 = por %p472, %p473
    %p475 = scmp.ne.s32.totalorder %s466, %s467
    %p476 = scmp.eq.s32.totalorder %s78, 0
    %p477 = por %p475, %p476
    %p478 = scmp.ne.s32.totalorder %s466, %s467
    %p479 = scmp.eq.s32.totalorder %s79, 1
    %p480 = por %p478, %p479
    %p482 = scmp.ne.s32.totalorder %s467, %s481
    %p483 = scmp.eq.s32.totalorder %s79, 0
    %p484 = por %p482, %p483
    %s486 = sadd.s32 %s485, 1
    %p489 = scmp.eq.s32.totalorder %s73, 1
    %p490 = scmp.ne.s32.totalorder %s485, %s487
    %p491 = scmp.eq.s32.totalorder %s73, 0
    %p492 = por %p490, %p491
    %p493 = scmp.ne.s32.totalorder %s485, %s487
    %p494 = scmp.eq.s32.totalorder %s78, 1
    %p495 = por %p493, %p494
    %p496 = scmp.ne.s32.totalorder %s487, %s488
    %p497 = scmp.eq.s32.totalorder %s78, 0
    %p498 = por %p496, %p497
    %p499 = scmp.ne.s32.totalorder %s487, %s488
    %p500 = scmp.eq.s32.totalorder %s79, 1
    %p501 = por %p499, %p500
    %p503 = scmp.ne.s32.totalorder %s488, %s502
    %p504 = scmp.eq.s32.totalorder %s79, 0
    %p505 = por %p503, %p504
    %s507 = sadd.s32 %s506, 1
    %p510 = scmp.eq.s32.totalorder %s73, 1
    %p511 = scmp.ne.s32.totalorder %s506, %s508
    %p512 = scmp.eq.s32.totalorder %s73, 0
    %p513 = por %p511, %p512
    %p514 = scmp.ne.s32.totalorder %s506, %s508
    %p515 = scmp.eq.s32.totalorder %s78, 1
    %p516 = por %p514, %p515
    %p517 = scmp.ne.s32.totalorder %s508, %s509
    %p518 = scmp.eq.s32.totalorder %s78, 0
    %p519 = por %p517, %p518
    %p520 = scmp.ne.s32.totalorder %s508, %s509
    %p521 = scmp.eq.s32.totalorder %s79, 1
    %p522 = por %p520, %p521
    %p524 = scmp.ne.s32.totalorder %s509, %s523
    %p525 = scmp.eq.s32.totalorder %s79, 0
    %p526 = por %p524, %p525
    %s528 = sadd.s32 %s527, 1
    %p531 = scmp.eq.s32.totalorder %s73, 1
    %p532 = scmp.ne.s32.totalorder %s527, %s529
    %p533 = scmp.eq.s32.totalorder %s73, 0
    %p534 = por %p532, %p533
    %p535 = scmp.ne.s32.totalorder %s527, %s529
    %p536 = scmp.eq.s32.totalorder %s78, 1
    %p537 = por %p535, %p536
    %p538 = scmp.ne.s32.totalorder %s529, %s530
    %p539 = scmp.eq.s32.totalorder %s78, 0
    %p540 = por %p538, %p539
    %p541 = scmp.ne.s32.totalorder %s529, %s530
    %p542 = scmp.eq.s32.totalorder %s79, 1
    %p543 = por %p541, %p542
    %p545 = scmp.ne.s32.totalorder %s530, %s544
    %p546 = scmp.eq.s32.totalorder %s79, 0
    %p547 = por %p545, %p546
    %s549 = sadd.s32 %s548, 1
    %p552 = scmp.eq.s32.totalorder %s73, 1
    %p553 = scmp.ne.s32.totalorder %s548, %s550
    %p554 = scmp.eq.s32.totalorder %s73, 0
    %p555 = por %p553, %p554
    %p556 = scmp.ne.s32.totalorder %s548, %s550
    %p557 = scmp.eq.s32.totalorder %s78, 1
    %p558 = por %p556, %p557
    %p559 = scmp.ne.s32.totalorder %s550, %s551
    %p560 = scmp.eq.s32.totalorder %s78, 0
    %p561 = por %p559, %p560
    %p562 = scmp.ne.s32.totalorder %s550, %s551
    %p563 = scmp.eq.s32.totalorder %s79, 1
    %p564 = por %p562, %p563
    %p566 = scmp.ne.s32.totalorder %s551, %s565
    %p567 = scmp.eq.s32.totalorder %s79, 0
    %p568 = por %p566, %p567
    %s570 = sadd.s32 %s569, 1
    %p573 = scmp.eq.s32.totalorder %s73, 1
    %p574 = scmp.ne.s32.totalorder %s569, %s571
    %p575 = scmp.eq.s32.totalorder %s73, 0
    %p576 = por %p574, %p575
    %p577 = scmp.ne.s32.totalorder %s569, %s571
    %p578 = scmp.eq.s32.totalorder %s78, 1
    %p579 = por %p577, %p578
    %p580 = scmp.ne.s32.totalorder %s571, %s572
    %p581 = scmp.eq.s32.totalorder %s78, 0
    %p582 = por %p580, %p581
    %p583 = scmp.ne.s32.totalorder %s571, %s572
    %p584 = scmp.eq.s32.totalorder %s79, 1
    %p585 = por %p583, %p584
    %p587 = scmp.ne.s32.totalorder %s572, %s586
    %p588 = scmp.eq.s32.totalorder %s79, 0
    %p589 = por %p587, %p588
    %s591 = sadd.s32 %s590, 1
    %p594 = scmp.eq.s32.totalorder %s73, 1
    %p595 = scmp.ne.s32.totalorder %s590, %s592
    %p596 = scmp.eq.s32.totalorder %s73, 0
    %p597 = por %p595, %p596
    %p598 = scmp.ne.s32.totalorder %s590, %s592
    %p599 = scmp.eq.s32.totalorder %s78, 1
    %p600 = por %p598, %p599
    %p601 = scmp.ne.s32.totalorder %s592, %s593
    %p602 = scmp.eq.s32.totalorder %s78, 0
    %p603 = por %p601, %p602
    %p604 = scmp.ne.s32.totalorder %s592, %s593
    %p605 = scmp.eq.s32.totalorder %s79, 1
    %p606 = por %p604, %p605
    %p608 = scmp.ne.s32.totalorder %s593, %s607
    %p609 = scmp.eq.s32.totalorder %s79, 0
    %p610 = por %p608, %p609
    %s612 = sadd.s32 %s611, 1
    %p615 = scmp.eq.s32.totalorder %s73, 1
    %p616 = scmp.ne.s32.totalorder %s611, %s613
    %p617 = scmp.eq.s32.totalorder %s73, 0
    %p618 = por %p616, %p617
    %p619 = scmp.ne.s32.totalorder %s611, %s613
    %p620 = scmp.eq.s32.totalorder %s78, 1
    %p621 = por %p619, %p620
    %p622 = scmp.ne.s32.totalorder %s613, %s614
    %p623 = scmp.eq.s32.totalorder %s78, 0
    %p624 = por %p622, %p623
    %p625 = scmp.ne.s32.totalorder %s613, %s614
    %p626 = scmp.eq.s32.totalorder %s79, 1
    %p627 = por %p625, %p626
    %p629 = scmp.ne.s32.totalorder %s614, %s628
    %p630 = scmp.eq.s32.totalorder %s79, 0
    %p631 = por %p629, %p630
    %s633 = sadd.s32 %s632, 1
    %p636 = scmp.eq.s32.totalorder %s73, 1
    %p637 = scmp.ne.s32.totalorder %s632, %s634
    %p638 = scmp.eq.s32.totalorder %s73, 0
    %p639 = por %p637, %p638
    %p640 = scmp.ne.s32.totalorder %s632, %s634
    %p641 = scmp.eq.s32.totalorder %s78, 1
    %p642 = por %p640, %p641
    %p643 = scmp.ne.s32.totalorder %s634, %s635
    %p644 = scmp.eq.s32.totalorder %s78, 0
    %p645 = por %p643, %p644
    %p646 = scmp.ne.s32.totalorder %s634, %s635
    %p647 = scmp.eq.s32.totalorder %s79, 1
    %p648 = por %p646, %p647
    %p650 = scmp.ne.s32.totalorder %s635, %s649
    %p651 = scmp.eq.s32.totalorder %s79, 0
    %p652 = por %p650, %p651
    %s654 = sadd.s32 %s653, 1
    %p657 = scmp.eq.s32.totalorder %s73, 1
    %p658 = scmp.ne.s32.totalorder %s653, %s655
    %p659 = scmp.eq.s32.totalorder %s73, 0
    %p660 = por %p658, %p659
    %p661 = scmp.ne.s32.totalorder %s653, %s655
    %p662 = scmp.eq.s32.totalorder %s78, 1
    %p663 = por %p661, %p662
    %p664 = scmp.ne.s32.totalorder %s655, %s656
    %p665 = scmp.eq.s32.totalorder %s78, 0
    %p666 = por %p664, %p665
    %p667 = scmp.ne.s32.totalorder %s655, %s656
    %p668 = scmp.eq.s32.totalorder %s79, 1
    %p669 = por %p667, %p668
    %p671 = scmp.ne.s32.totalorder %s656, %s670
    %p672 = scmp.eq.s32.totalorder %s79, 0
    %p673 = por %p671, %p672
    %s675 = sadd.s32 %s674, 1
    %p678 = scmp.eq.s32.totalorder %s73, 1
    %p679 = scmp.ne.s32.totalorder %s674, %s676
    %p680 = scmp.eq.s32.totalorder %s73, 0
    %p681 = por %p679, %p680
    %p682 = scmp.ne.s32.totalorder %s674, %s676
    %p683 = scmp.eq.s32.totalorder %s78, 1
    %p684 = por %p682, %p683
    %p685 = scmp.ne.s32.totalorder %s676, %s677
    %p686 = scmp.eq.s32.totalorder %s78, 0
    %p687 = por %p685, %p686
    %p688 = scmp.ne.s32.totalorder %s676, %s677
    %p689 = scmp.eq.s32.totalorder %s79, 1
    %p690 = por %p688, %p689
    %p692 = scmp.ne.s32.totalorder %s677, %s691
    %p693 = scmp.eq.s32.totalorder %s79, 0
    %p694 = por %p692, %p693
    %s696 = sadd.s32 %s695, 1
    %p699 = scmp.eq.s32.totalorder %s73, 1
    %p700 = scmp.ne.s32.totalorder %s695, %s697
    %p701 = scmp.eq.s32.totalorder %s73, 0
    %p702 = por %p700, %p701
    %p703 = scmp.ne.s32.totalorder %s695, %s697
    %p704 = scmp.eq.s32.totalorder %s78, 1
    %p705 = por %p703, %p704
    %p706 = scmp.ne.s32.totalorder %s697, %s698
    %p707 = scmp.eq.s32.totalorder %s78, 0
    %p708 = por %p706, %p707
    %p709 = scmp.ne.s32.totalorder %s697, %s698
    %p710 = scmp.eq.s32.totalorder %s79, 1
    %p711 = por %p709, %p710
    %p713 = scmp.ne.s32.totalorder %s698, %s712
    %p714 = scmp.eq.s32.totalorder %s79, 0
    %p715 = por %p713, %p714
    %s717 = sadd.s32 %s716, 1
    %p720 = scmp.eq.s32.totalorder %s73, 1
    %p721 = scmp.ne.s32.totalorder %s716, %s718
    %p722 = scmp.eq.s32.totalorder %s73, 0
    %p723 = por %p721, %p722
    %p724 = scmp.ne.s32.totalorder %s716, %s718
    %p725 = scmp.eq.s32.totalorder %s78, 1
    %p726 = por %p724, %p725
    %p727 = scmp.ne.s32.totalorder %s718, %s719
    %p728 = scmp.eq.s32.totalorder %s78, 0
    %p729 = por %p727, %p728
    %p730 = scmp.ne.s32.totalorder %s718, %s719
    %p731 = scmp.eq.s32.totalorder %s79, 1
    %p732 = por %p730, %p731
    %p734 = scmp.ne.s32.totalorder %s719, %s733
    %p735 = scmp.eq.s32.totalorder %s79, 0
    %p736 = por %p734, %p735
    %s738 = sadd.s32 %s737, 1
    %p741 = scmp.eq.s32.totalorder %s73, 1
    %p742 = scmp.ne.s32.totalorder %s737, %s739
    %p743 = scmp.eq.s32.totalorder %s73, 0
    %p744 = por %p742, %p743
    %p745 = scmp.ne.s32.totalorder %s737, %s739
    %p746 = scmp.eq.s32.totalorder %s78, 1
    %p747 = por %p745, %p746
    %p748 = scmp.ne.s32.totalorder %s739, %s740
    %p749 = scmp.eq.s32.totalorder %s78, 0
    %p750 = por %p748, %p749
    %p751 = scmp.ne.s32.totalorder %s739, %s740
    %p752 = scmp.eq.s32.totalorder %s79, 1
    %p753 = por %p751, %p752
    %p755 = scmp.ne.s32.totalorder %s740, %s754
    %p756 = scmp.eq.s32.totalorder %s79, 0
    %p757 = por %p755, %p756
    %s759 = sadd.s32 %s758, 1
    %p762 = scmp.eq.s32.totalorder %s73, 1
    %p763 = scmp.ne.s32.totalorder %s758, %s760
    %p764 = scmp.eq.s32.totalorder %s73, 0
    %p765 = por %p763, %p764
    %p766 = scmp.ne.s32.totalorder %s758, %s760
    %p767 = scmp.eq.s32.totalorder %s78, 1
    %p768 = por %p766, %p767
    %p769 = scmp.ne.s32.totalorder %s760, %s761
    %p770 = scmp.eq.s32.totalorder %s78, 0
    %p771 = por %p769, %p770
    %p772 = scmp.ne.s32.totalorder %s760, %s761
    %p773 = scmp.eq.s32.totalorder %s79, 1
    %p774 = por %p772, %p773
    %p776 = scmp.ne.s32.totalorder %s761, %s775
    %p777 = scmp.eq.s32.totalorder %s79, 0
    %p778 = por %p776, %p777
    %s779 = ssub.s32 %s73, %s80
    %p780 = scmp.eq.s32.totalorder %s779, 0
    %s782 = sadd.s32 %s781, 1
    %s783 = scalar_select %p780, %s781, %s782
    %p786 = pneg %p780
    %p787 = scmp.eq.s32.totalorder %s73, 1
    %p788 = por %p786, %p787
    %p789 = scmp.ne.s32.totalorder %s781, %s784
    %p790 = scmp.eq.s32.totalorder %s73, 0
    %p791 = por %p789, %p790
    %p792 = scmp.ne.s32.totalorder %s781, %s784
    %p793 = scmp.eq.s32.totalorder %s78, 1
    %p794 = por %p792, %p793
    %p795 = scmp.ne.s32.totalorder %s784, %s785
    %p796 = scmp.eq.s32.totalorder %s78, 0
    %p797 = por %p795, %p796
    %p798 = scmp.ne.s32.totalorder %s784, %s785
    %p799 = scmp.eq.s32.totalorder %s79, 1
    %p800 = por %p798, %p799
    %p802 = scmp.ne.s32.totalorder %s785, %s801
    %p803 = scmp.eq.s32.totalorder %s79, 0
    %p804 = por %p802, %p803
    %p805 = scmp.le.s32.totalorder 1, %s73
    %p806 = scmp.lt.s32.totalorder %s73, 3
    %p807 = pnand %p805, %p806
    %p808 = pneg %p807
    // Predicated region
    $region9: #{dwrsu4f_forward.1} parent=5 // pred_check
      _
    $region10: #{dwrsu4f_forward.1} parent=5 // pred_check_branch
      %810 = sbr.rel (%p807) target = $region12
    $region11: #{dwrsu4f_forward.1} parent=5 // pred_region
      %s811 = ssub.s32 %s73, 1
      // Predicated region
      $region13: #{dwrsu4f_forward.1} parent=11 // pred_check
        %p812 = pneg %p120
      $region14: #{dwrsu4f_forward.1} parent=11 // pred_check_branch
        %814 = sbr.rel (%p812) target = $region16
      $region15: #{dwrsu4f_forward.1} parent=11 // pred_region
        _
      $region16: #{dwrsu4f_forward.1} parent=11 // pred_fallthru
        _
      // Predicated region
      $region17: #{dwrsu4f_forward.1} parent=11 // pred_check
        %p815 = pneg %p141
      $region18: #{dwrsu4f_forward.1} parent=11 // pred_check_branch
        %817 = sbr.rel (%p815) target = $region20
      $region19: #{dwrsu4f_forward.1} parent=11 // pred_region
        _
      $region20: #{dwrsu4f_forward.1} parent=11 // pred_fallthru
        _
      // Predicated region
      $region21: #{dwrsu4f_forward.1} parent=11 // pred_check
        %p818 = pneg %p162
      $region22: #{dwrsu4f_forward.1} parent=11 // pred_check_branch
        %820 = sbr.rel (%p818) target = $region24
      $region23: #{dwrsu4f_forward.1} parent=11 // pred_region
        _
      $region24: #{dwrsu4f_forward.1} parent=11 // pred_fallthru
        _
      // Predicated region
      $region25: #{dwrsu4f_forward.1} parent=11 // pred_check
        %p821 = pneg %p183
      $region26: #{dwrsu4f_forward.1} parent=11 // pred_check_branch
        %823 = sbr.rel (%p821) target = $region28
      $region27: #{dwrsu4f_forward.1} parent=11 // pred_region
        _
      $region28: #{dwrsu4f_forward.1} parent=11 // pred_fallthru
        _
      // Predicated region
      $region29: #{dwrsu4f_forward.1} parent=11 // pred_check
        %p824 = pneg %p204
      $region30: #{dwrsu4f_forward.1} parent=11 // pred_check_branch
        %826 = sbr.rel (%p824) target = $region32
      $region31: #{dwrsu4f_forward.1} parent=11 // pred_region
        _
      $region32: #{dwrsu4f_forward.1} parent=11 // pred_fallthru
        _
      // Predicated region
      $region33: #{dwrsu4f_forward.1} parent=11 // pred_check
        %p827 = pneg %p225
      $region34: #{dwrsu4f_forward.1} parent=11 // pred_check_branch
        %829 = sbr.rel (%p827) target = $region36
      $region35: #{dwrsu4f_forward.1} parent=11 // pred_region
        _
      $region36: #{dwrsu4f_forward.1} parent=11 // pred_fallthru
        _
      // Predicated region
      $region37: #{dwrsu4f_forward.1} parent=11 // pred_check
        %p830 = pneg %p246
      $region38: #{dwrsu4f_forward.1} parent=11 // pred_check_branch
        %832 = sbr.rel (%p830) target = $region40
      $region39: #{dwrsu4f_forward.1} parent=11 // pred_region
        _
      $region40: #{dwrsu4f_forward.1} parent=11 // pred_fallthru
        _
      // Predicated region
      $region41: #{dwrsu4f_forward.1} parent=11 // pred_check
        %p833 = pneg %p267
      $region42: #{dwrsu4f_forward.1} parent=11 // pred_check_branch
        %835 = sbr.rel (%p833) target = $region44
      $region43: #{dwrsu4f_forward.1} parent=11 // pred_region
        _
      $region44: #{dwrsu4f_forward.1} parent=11 // pred_fallthru
        _
      // Predicated region
      $region45: #{dwrsu4f_forward.1} parent=11 // pred_check
        %p836 = pneg %p288
      $region46: #{dwrsu4f_forward.1} parent=11 // pred_check_branch
        %838 = sbr.rel (%p836) target = $region48
      $region47: #{dwrsu4f_forward.1} parent=11 // pred_region
        _
      $region48: #{dwrsu4f_forward.1} parent=11 // pred_fallthru
        _
      // Predicated region
      $region49: #{dwrsu4f_forward.1} parent=11 // pred_check
        %p839 = pneg %p309
      $region50: #{dwrsu4f_forward.1} parent=11 // pred_check_branch
        %841 = sbr.rel (%p839) target = $region52
      $region51: #{dwrsu4f_forward.1} parent=11 // pred_region
        _
      $region52: #{dwrsu4f_forward.1} parent=11 // pred_fallthru
        _
      // Predicated region
      $region53: #{dwrsu4f_forward.1} parent=11 // pred_check
        %p842 = pneg %p330
      $region54: #{dwrsu4f_forward.1} parent=11 // pred_check_branch
        %844 = sbr.rel (%p842) target = $region56
      $region55: #{dwrsu4f_forward.1} parent=11 // pred_region
        _
      $region56: #{dwrsu4f_forward.1} parent=11 // pred_fallthru
        _
      // Predicated region
      $region57: #{dwrsu4f_forward.1} parent=11 // pred_check
        %p845 = pneg %p351
      $region58: #{dwrsu4f_forward.1} parent=11 // pred_check_branch
        %847 = sbr.rel (%p845) target = $region60
      $region59: #{dwrsu4f_forward.1} parent=11 // pred_region
        _
      $region60: #{dwrsu4f_forward.1} parent=11 // pred_fallthru
        _
      // Predicated region
      $region61: #{dwrsu4f_forward.1} parent=11 // pred_check
        %p848 = pneg %p372
      $region62: #{dwrsu4f_forward.1} parent=11 // pred_check_branch
        %850 = sbr.rel (%p848) target = $region64
      $region63: #{dwrsu4f_forward.1} parent=11 // pred_region
        _
      $region64: #{dwrsu4f_forward.1} parent=11 // pred_fallthru
        _
      // Predicated region
      $region65: #{dwrsu4f_forward.1} parent=11 // pred_check
        %p851 = pneg %p393
      $region66: #{dwrsu4f_forward.1} parent=11 // pred_check_branch
        %853 = sbr.rel (%p851) target = $region68
      $region67: #{dwrsu4f_forward.1} parent=11 // pred_region
        _
      $region68: #{dwrsu4f_forward.1} parent=11 // pred_fallthru
        _
      // Predicated region
      $region69: #{dwrsu4f_forward.1} parent=11 // pred_check
        %p854 = pneg %p414
      $region70: #{dwrsu4f_forward.1} parent=11 // pred_check_branch
        %856 = sbr.rel (%p854) target = $region72
      $region71: #{dwrsu4f_forward.1} parent=11 // pred_region
        _
      $region72: #{dwrsu4f_forward.1} parent=11 // pred_fallthru
        _
      // Predicated region
      $region73: #{dwrsu4f_forward.1} parent=11 // pred_check
        %p857 = pneg %p435
      $region74: #{dwrsu4f_forward.1} parent=11 // pred_check_branch
        %859 = sbr.rel (%p857) target = $region76
      $region75: #{dwrsu4f_forward.1} parent=11 // pred_region
        _
      $region76: #{dwrsu4f_forward.1} parent=11 // pred_fallthru
        _
      // Predicated region
      $region77: #{dwrsu4f_forward.1} parent=11 // pred_check
        %p860 = pneg %p456
      $region78: #{dwrsu4f_forward.1} parent=11 // pred_check_branch
        %862 = sbr.rel (%p860) target = $region80
      $region79: #{dwrsu4f_forward.1} parent=11 // pred_region
        _
      $region80: #{dwrsu4f_forward.1} parent=11 // pred_fallthru
        _
      // Predicated region
      $region81: #{dwrsu4f_forward.1} parent=11 // pred_check
        %p863 = pneg %p477
      $region82: #{dwrsu4f_forward.1} parent=11 // pred_check_branch
        %865 = sbr.rel (%p863) target = $region84
      $region83: #{dwrsu4f_forward.1} parent=11 // pred_region
        _
      $region84: #{dwrsu4f_forward.1} parent=11 // pred_fallthru
        _
      // Predicated region
      $region85: #{dwrsu4f_forward.1} parent=11 // pred_check
        %p866 = pneg %p498
      $region86: #{dwrsu4f_forward.1} parent=11 // pred_check_branch
        %868 = sbr.rel (%p866) target = $region88
      $region87: #{dwrsu4f_forward.1} parent=11 // pred_region
        _
      $region88: #{dwrsu4f_forward.1} parent=11 // pred_fallthru
        _
      // Predicated region
      $region89: #{dwrsu4f_forward.1} parent=11 // pred_check
        %p869 = pneg %p519
      $region90: #{dwrsu4f_forward.1} parent=11 // pred_check_branch
        %871 = sbr.rel (%p869) target = $region92
      $region91: #{dwrsu4f_forward.1} parent=11 // pred_region
        _
      $region92: #{dwrsu4f_forward.1} parent=11 // pred_fallthru
        _
      // Predicated region
      $region93: #{dwrsu4f_forward.1} parent=11 // pred_check
        %p872 = pneg %p540
      $region94: #{dwrsu4f_forward.1} parent=11 // pred_check_branch
        %874 = sbr.rel (%p872) target = $region96
      $region95: #{dwrsu4f_forward.1} parent=11 // pred_region
        _
      $region96: #{dwrsu4f_forward.1} parent=11 // pred_fallthru
        _
      // Predicated region
      $region97: #{dwrsu4f_forward.1} parent=11 // pred_check
        %p875 = pneg %p561
      $region98: #{dwrsu4f_forward.1} parent=11 // pred_check_branch
        %877 = sbr.rel (%p875) target = $region100
      $region99: #{dwrsu4f_forward.1} parent=11 // pred_region
        _
      $region100: #{dwrsu4f_forward.1} parent=11 // pred_fallthru
        _
      // Predicated region
      $region101: #{dwrsu4f_forward.1} parent=11 // pred_check
        %p878 = pneg %p582
      $region102: #{dwrsu4f_forward.1} parent=11 // pred_check_branch
        %880 = sbr.rel (%p878) target = $region104
      $region103: #{dwrsu4f_forward.1} parent=11 // pred_region
        _
      $region104: #{dwrsu4f_forward.1} parent=11 // pred_fallthru
        _
      // Predicated region
      $region105: #{dwrsu4f_forward.1} parent=11 // pred_check
        %p881 = pneg %p603
      $region106: #{dwrsu4f_forward.1} parent=11 // pred_check_branch
        %883 = sbr.rel (%p881) target = $region108
      $region107: #{dwrsu4f_forward.1} parent=11 // pred_region
        _
      $region108: #{dwrsu4f_forward.1} parent=11 // pred_fallthru
        _
      // Predicated region
      $region109: #{dwrsu4f_forward.1} parent=11 // pred_check
        %p884 = pneg %p624
      $region110: #{dwrsu4f_forward.1} parent=11 // pred_check_branch
        %886 = sbr.rel (%p884) target = $region112
      $region111: #{dwrsu4f_forward.1} parent=11 // pred_region
        _
      $region112: #{dwrsu4f_forward.1} parent=11 // pred_fallthru
        _
      // Predicated region
      $region113: #{dwrsu4f_forward.1} parent=11 // pred_check
        %p887 = pneg %p645
      $region114: #{dwrsu4f_forward.1} parent=11 // pred_check_branch
        %889 = sbr.rel (%p887) target = $region116
      $region115: #{dwrsu4f_forward.1} parent=11 // pred_region
        _
      $region116: #{dwrsu4f_forward.1} parent=11 // pred_fallthru
        _
      // Predicated region
      $region117: #{dwrsu4f_forward.1} parent=11 // pred_check
        %p890 = pneg %p666
      $region118: #{dwrsu4f_forward.1} parent=11 // pred_check_branch
        %892 = sbr.rel (%p890) target = $region120
      $region119: #{dwrsu4f_forward.1} parent=11 // pred_region
        _
      $region120: #{dwrsu4f_forward.1} parent=11 // pred_fallthru
        _
      // Predicated region
      $region121: #{dwrsu4f_forward.1} parent=11 // pred_check
        %p893 = pneg %p687
      $region122: #{dwrsu4f_forward.1} parent=11 // pred_check_branch
        %895 = sbr.rel (%p893) target = $region124
      $region123: #{dwrsu4f_forward.1} parent=11 // pred_region
        _
      $region124: #{dwrsu4f_forward.1} parent=11 // pred_fallthru
        _
      // Predicated region
      $region125: #{dwrsu4f_forward.1} parent=11 // pred_check
        %p896 = pneg %p708
      $region126: #{dwrsu4f_forward.1} parent=11 // pred_check_branch
        %898 = sbr.rel (%p896) target = $region128
      $region127: #{dwrsu4f_forward.1} parent=11 // pred_region
        _
      $region128: #{dwrsu4f_forward.1} parent=11 // pred_fallthru
        _
      // Predicated region
      $region129: #{dwrsu4f_forward.1} parent=11 // pred_check
        %p899 = pneg %p729
      $region130: #{dwrsu4f_forward.1} parent=11 // pred_check_branch
        %901 = sbr.rel (%p899) target = $region132
      $region131: #{dwrsu4f_forward.1} parent=11 // pred_region
        _
      $region132: #{dwrsu4f_forward.1} parent=11 // pred_fallthru
        _
      // Predicated region
      $region133: #{dwrsu4f_forward.1} parent=11 // pred_check
        %p902 = pneg %p750
      $region134: #{dwrsu4f_forward.1} parent=11 // pred_check_branch
        %904 = sbr.rel (%p902) target = $region136
      $region135: #{dwrsu4f_forward.1} parent=11 // pred_region
        _
      $region136: #{dwrsu4f_forward.1} parent=11 // pred_fallthru
        _
      // Predicated region
      $region137: #{dwrsu4f_forward.1} parent=11 // pred_check
        %p905 = pneg %p771
      $region138: #{dwrsu4f_forward.1} parent=11 // pred_check_branch
        %907 = sbr.rel (%p905) target = $region140
      $region139: #{dwrsu4f_forward.1} parent=11 // pred_region
        _
      $region140: #{dwrsu4f_forward.1} parent=11 // pred_fallthru
        _
    $region12: #{dwrsu4f_forward.1} parent=5 // pred_fallthru
      _
    %p908 = scmp.lt.s32.totalorder %s73, 2
    // Predicated region
    $region141: #{dwrsu4f_forward.1} parent=5 // pred_check
      %p909 = pneg %p908
    $region142: #{dwrsu4f_forward.1} parent=5 // pred_check_branch
      %911 = sbr.rel (%p909) target = $region144
    $region143: #{dwrsu4f_forward.1} parent=5 // pred_region
      // Predicated region
      $region145: #{dwrsu4f_forward.1} parent=143 // pred_check
        %p912 = pneg %p93
      $region146: #{dwrsu4f_forward.1} parent=143 // pred_check_branch
        %914 = sbr.rel (%p912) target = $region148
      $region147: #{dwrsu4f_forward.1} parent=143 // pred_region
        %p915 = scmp.lt.s32.totalorder %s73, 1
        %s916 = scalar_select %p915, %s73, 1
        %s917 = smul.addr %s916, 3
        %s918 = smul.addr %s917, 4
        %s919 = scalar_lea.vmem %s1, %s918
      $region148: #{dwrsu4f_forward.1} parent=143 // pred_fallthru
        _
    $region144: #{dwrsu4f_forward.1} parent=5 // pred_fallthru
      _
    %p920 = scmp.le.s32.totalorder 1, %s73
    %p921 = scmp.lt.s32.totalorder %s73, 3
    %p922 = pnand %p920, %p921
    %p923 = pneg %p922
    // Predicated region
    $region149: #{dwrsu4f_forward.1} parent=5 // pred_check
      _
    $region150: #{dwrsu4f_forward.1} parent=5 // pred_check_branch
      %925 = sbr.rel (%p922) target = $region152
    $region151: #{dwrsu4f_forward.1} parent=5 // pred_region
      %s926 = ssub.s32 %s73, 1
      %p927 = scmp.lt.s32.totalorder %s78, 1
      %s928 = scalar_select %p927, %s78, 1
      %s929 = smul.addr %s928, 3
      %s930 = smul.addr %s929, 4
      %s931 = scalar_lea.vmem %s1, %s930
      %p932 = pneg %p99
      %p933 = pneg %p96
      %p934 = pneg %p120
      %p935 = pneg %p117
      %p936 = pneg %p141
      %p937 = pneg %p138
      %p938 = pneg %p162
      %p939 = pneg %p159
      %p940 = pneg %p183
      %p941 = pneg %p180
      %p942 = pneg %p204
      %p943 = pneg %p201
      %p944 = pneg %p225
      %p945 = pneg %p222
      %p946 = pneg %p246
      %p947 = pneg %p243
      %p948 = pneg %p267
      %p949 = pneg %p264
      %p950 = pneg %p288
      %p951 = pneg %p285
      %p952 = pneg %p309
      %p953 = pneg %p306
      %p954 = pneg %p330
      %p955 = pneg %p327
      %p956 = pneg %p351
      %p957 = pneg %p348
      %p958 = pneg %p372
      %p959 = pneg %p369
      %p960 = pneg %p393
      %p961 = pneg %p390
      %p962 = pneg %p414
      %p963 = pneg %p411
      %p964 = pneg %p435
      %p965 = pneg %p432
      %p966 = pneg %p456
      %p967 = pneg %p453
      %p968 = pneg %p477
      %p969 = pneg %p474
      %p970 = pneg %p498
      %p971 = pneg %p495
      %p972 = pneg %p519
      %p973 = pneg %p516
      %p974 = pneg %p540
      %p975 = pneg %p537
      %p976 = pneg %p561
      %p977 = pneg %p558
      %p978 = pneg %p582
      %p979 = pneg %p579
      %p980 = pneg %p603
      %p981 = pneg %p600
      %p982 = pneg %p624
      %p983 = pneg %p621
      %p984 = pneg %p645
      %p985 = pneg %p642
      %p986 = pneg %p666
      %p987 = pneg %p663
      %p988 = pneg %p687
      %p989 = pneg %p684
      %p990 = pneg %p708
      %p991 = pneg %p705
      %p992 = pneg %p729
      %p993 = pneg %p726
      %p994 = pneg %p750
      %p995 = pneg %p747
      %p996 = pneg %p771
      %p997 = pneg %p768
      %p998 = pneg %p797
      %p999 = pneg %p794
      %p1000 = scmp.lt.s32.totalorder %s78, 1
      %s1001 = scalar_select %p1000, %s78, 1
      %s1002 = smul.addr %s1001, 3
      %s1003 = smul.addr %s1002, 8
      %s1004 = scalar_lea.vmem %s67, %s1003
      %p1005 = scmp.lt.s32.totalorder %s78, 1
      %s1006 = scalar_select %p1005, %s78, 1
      %s1007 = smul.addr %s1006, 3
      %s1008 = smul.addr %s1007, 4
      %s1009 = scalar_lea.vmem %s1, %s1008
      %p1010 = scmp.lt.s32.totalorder %s78, 1
      %s1011 = scalar_select %p1010, %s78, 1
      %s1012 = smul.addr %s1011, 3
      %s1013 = smul.addr %s1012, 8
      %s1014 = scalar_lea.vmem %s67, %s1013
      %v1015 = vld [vmem:[%s3] sm:$0x7]
      %v1016 = vld [vmem:[%s1009] sm:$0xff]
      %v1017 = vld [vmem:[%s1009 + $0x8] sm:$0xf]
      %v1018 = vld [vmem:[%s5] sm:$0xf]
      %v1019 = vld [vmem:[%s7] sm:$0xff]
      %v1020 = vld [vmem:[%s9] sm:$0xff]
      %v1021 = vld [vmem:[%s11] sm:$0xff]
      %1023 = vset.pattern.permute.xlu0 4
      %1024 = vperm.xlu0 %1023, %v1018
      %v1025 = vpop.permute.xlu0 %1024
      %v1027 = vunpack.c.l.s4 839922192
      %v1028 = vunpack.c.0.s8 %v1027
      %v1029 = vlaneseq
      %v1030 = vshrl.u32 %v1029, 7
      %v1031 = vsub.s32 %v1028, %v1030
      %v1032 = vrot.slane %v1025, %v1031
      %v1034 = vmul.f32 %v1016, %v1032
      %v1035 = vmul.f32 %v1017, %v1032
      %v1038 = vcombine.high %v1016, %v1016
      %1039 = vrot.lane.b32.xlu0 %v1016, 21
      %v1040 = vpop.permute.xlu0 %1039
      %1041 = vrot.lane.b32.xlu0 %v1038, 21
      %v1042 = vpop.permute.xlu0 %1041
      %1043 = vrot.lane.b32.xlu0 %v1017, 21
      %v1044 = vpop.permute.xlu0 %1043
      %vm1045 = vcmask 171008
      %v1046 = vsel %vm1045, %v1040, %v1042
      %v1047 = vsel %vm1045, %v1042, %v1044
      %v1051 = vsel %vm1045, 0.0, %v1040
      %1052 = vset.pattern.permute.xlu0 0
      %1053 = vperm.xlu0 %1052, %v1018
      %v1054 = vpop.permute.xlu0 %1053
      %v1056 = vmul.f32 %v1051, %v1054
      %v1057 = vmul.f32 %v1046, %v1054
      %v1058 = vmul.f32 %v1047, %v1054
      %v1061 = vcombine.low %v1056, %v1057
      %v1063 = vadd.f32 %v1034, %v1061
      %v1064 = vadd.f32 %v1035, %v1058
      %1065 = vrot.lane.b32.xlu0 %v1016, 20
      %v1066 = vpop.permute.xlu0 %1065
      %1067 = vrot.lane.b32.xlu0 %v1038, 20
      %v1068 = vpop.permute.xlu0 %1067
      %1069 = vrot.lane.b32.xlu0 %v1017, 20
      %v1070 = vpop.permute.xlu0 %1069
      %vm1071 = vcmask 162816
      %v1072 = vsel %vm1071, %v1066, %v1068
      %v1073 = vsel %vm1071, %v1068, %v1070
      %v1077 = vsel %vm1071, 0.0, %v1066
      %1078 = vset.pattern.permute.xlu0 1
      %1079 = vperm.xlu0 %1078, %v1018
      %v1080 = vpop.permute.xlu0 %1079
      %v1082 = vmul.f32 %v1077, %v1080
      %v1083 = vmul.f32 %v1072, %v1080
      %v1084 = vmul.f32 %v1073, %v1080
      %v1087 = vcombine.low %v1082, %v1083
      %v1089 = vadd.f32 %v1063, %v1087
      %v1090 = vadd.f32 %v1064, %v1084
      %1091 = vrot.lane.b32.xlu0 %v1016, 19
      %v1092 = vpop.permute.xlu0 %1091
      %1093 = vrot.lane.b32.xlu0 %v1038, 19
      %v1094 = vpop.permute.xlu0 %1093
      %1095 = vrot.lane.b32.xlu0 %v1017, 19
      %v1096 = vpop.permute.xlu0 %1095
      %vm1097 = vcmask 154624
      %v1098 = vsel %vm1097, %v1092, %v1094
      %v1099 = vsel %vm1097, %v1094, %v1096
      %v1103 = vsel %vm1097, 0.0, %v1092
      %1104 = vset.pattern.permute.xlu0 2
      %1105 = vperm.xlu0 %1104, %v1018
      %v1106 = vpop.permute.xlu0 %1105
      %v1108 = vmul.f32 %v1103, %v1106
      %v1109 = vmul.f32 %v1098, %v1106
      %v1110 = vmul.f32 %v1099, %v1106
      %v1113 = vcombine.low %v1108, %v1109
      %v1115 = vadd.f32 %v1089, %v1113
      %v1116 = vadd.f32 %v1090, %v1110
      %1117 = vrot.lane.b32.xlu0 %v1016, 1
      %v1118 = vpop.permute.xlu0 %1117
      %1119 = vrot.lane.b32.xlu0 %v1038, 1
      %v1120 = vpop.permute.xlu0 %1119
      %1121 = vrot.lane.b32.xlu0 %v1017, 1
      %v1122 = vpop.permute.xlu0 %1121
      %vm1123 = vcmask 7168
      %v1124 = vsel %vm1123, %v1118, %v1120
      %v1125 = vsel %vm1123, %v1120, %v1122
      %v1129 = vsel %vm1123, 0.0, %v1118
      %1130 = vset.pattern.permute.xlu0 3
      %1131 = vperm.xlu0 %1130, %v1018
      %v1132 = vpop.permute.xlu0 %1131
      %v1134 = vmul.f32 %v1129, %v1132
      %v1135 = vmul.f32 %v1124, %v1132
      %v1136 = vmul.f32 %v1125, %v1132
      %v1139 = vcombine.low %v1134, %v1135
      %v1141 = vadd.f32 %v1115, %v1139
      %v1142 = vadd.f32 %v1116, %v1136
      %1143 = vrot.lane.b32.xlu0 %v1016, 127
      %v1144 = vpop.permute.xlu0 %1143
      %1145 = vrot.lane.b32.xlu0 %v1038, 127
      %v1146 = vpop.permute.xlu0 %1145
      %1147 = vrot.lane.b32.xlu0 %v1017, 127
      %v1148 = vpop.permute.xlu0 %1147
      %vm1149 = vcmask 1039360
      %v1150 = vsel %vm1149, %v1144, %v1146
      %v1151 = vsel %vm1149, %v1146, %v1148
      %vm1155 = vcmask 515072
      %v1156 = vsel %vm1155, %v1148, 0.0
      %1157 = vset.pattern.permute.xlu0 5
      %1158 = vperm.xlu0 %1157, %v1018
      %v1159 = vpop.permute.xlu0 %1158
      %v1161 = vmul.f32 %v1150, %v1159
      %v1162 = vmul.f32 %v1151, %v1159
      %v1163 = vmul.f32 %v1156, %v1159
      %v1166 = vcombine.low %v1161, %v1162
      %v1168 = vadd.f32 %v1141, %v1166
      %v1169 = vadd.f32 %v1142, %v1163
      %1170 = vrot.lane.b32.xlu0 %v1016, 109
      %v1171 = vpop.permute.xlu0 %1170
      %1172 = vrot.lane.b32.xlu0 %v1038, 109
      %v1173 = vpop.permute.xlu0 %1172
      %1174 = vrot.lane.b32.xlu0 %v1017, 109
      %v1175 = vpop.permute.xlu0 %1174
      %vm1176 = vcmask 891904
      %v1177 = vsel %vm1176, %v1171, %v1173
      %v1178 = vsel %vm1176, %v1173, %v1175
      %vm1182 = vcmask 367616
      %v1183 = vsel %vm1182, %v1175, 0.0
      %1184 = vset.pattern.permute.xlu0 6
      %1185 = vperm.xlu0 %1184, %v1018
      %v1186 = vpop.permute.xlu0 %1185
      %v1188 = vmul.f32 %v1177, %v1186
      %v1189 = vmul.f32 %v1178, %v1186
      %v1190 = vmul.f32 %v1183, %v1186
      %v1193 = vcombine.low %v1188, %v1189
      %v1195 = vadd.f32 %v1168, %v1193
      %v1196 = vadd.f32 %v1169, %v1190
      %1197 = vrot.lane.b32.xlu0 %v1016, 108
      %v1198 = vpop.permute.xlu0 %1197
      %1199 = vrot.lane.b32.xlu0 %v1038, 108
      %v1200 = vpop.permute.xlu0 %1199
      %1201 = vrot.lane.b32.xlu0 %v1017, 108
      %v1202 = vpop.permute.xlu0 %1201
      %vm1203 = vcmask 883712
      %v1204 = vsel %vm1203, %v1198, %v1200
      %v1205 = vsel %vm1203, %v1200, %v1202
      %vm1209 = vcmask 359424
      %v1210 = vsel %vm1209, %v1202, 0.0
      %1211 = vset.pattern.permute.xlu0 7
      %1212 = vperm.xlu0 %1211, %v1018
      %v1213 = vpop.permute.xlu0 %1212
      %v1215 = vmul.f32 %v1204, %v1213
      %v1216 = vmul.f32 %v1205, %v1213
      %v1217 = vmul.f32 %v1210, %v1213
      %v1220 = vcombine.low %v1215, %v1216
      %v1222 = vadd.f32 %v1195, %v1220
      %v1223 = vadd.f32 %v1196, %v1217
      %1224 = vrot.lane.b32.xlu0 %v1016, 107
      %v1225 = vpop.permute.xlu0 %1224
      %1226 = vrot.lane.b32.xlu0 %v1038, 107
      %v1227 = vpop.permute.xlu0 %1226
      %1228 = vrot.lane.b32.xlu0 %v1017, 107
      %v1229 = vpop.permute.xlu0 %1228
      %vm1230 = vcmask 875520
      %v1231 = vsel %vm1230, %v1225, %v1227
      %v1232 = vsel %vm1230, %v1227, %v1229
      %vm1236 = vcmask 351232
      %v1237 = vsel %vm1236, %v1229, 0.0
      %1238 = vset.pattern.permute.xlu0 8
      %1239 = vperm.xlu0 %1238, %v1018
      %v1240 = vpop.permute.xlu0 %1239
      %v1242 = vmul.f32 %v1231, %v1240
      %v1243 = vmul.f32 %v1232, %v1240
      %v1244 = vmul.f32 %v1237, %v1240
      %v1247 = vcombine.low %v1242, %v1243
      %v1249 = vadd.f32 %v1222, %v1247
      %v1250 = vadd.f32 %v1223, %v1244
      %v1253 = vcombine.high %v1249, %v1249
      %vm1254 = vcmask 31744
      %v1256 = vsel %vm1254, %v1019, 0
      %vm1258 = vcmask 1043456
      %v1259 = vsel %vm1258, %v1249, 0
      %v1261 = vsel %vm1258, %v1253, 0
      %v1263 = vsel %vm1258, %v1250, 0
      %1265 = vmatprep.subr.mxu0 %v1261
      %1266 = vmatpush1.msra.mxu0 %v1259
      %1267 = vmatprep.subr.mxu0 0.0
      %1268 = vmatpush1.msra.mxu0 0.0
      %1269 = vmatprep.subr.mxu0 0.0
      %1270 = vmatpush1.msra.mxu0 0.0
      %1271 = vmatprep.subr.mxu0 0.0
      %1272 = vmatpush1.msra.mxu0 0.0
      %1273 = vmatprep.subr.mxu0 0.0
      %1274 = vmatpush1.msra.mxu0 0.0
      %1275 = vmatprep.subr.mxu0 0.0
      %1276 = vmatpush1.msra.mxu0 0.0
      %1277 = vmatprep.subr.mxu0 0.0
      %1278 = vmatpush1.msra.mxu0 0.0
      %1279 = vmatprep.subr.mxu0 0.0
      %1280 = vmatpush1.msra.mxu0 0.0
      %1281 = vmatprep.subr.mxu0 0.0
      %1282 = vmatpush1.msra.mxu0 0.0
      %1283 = vmatprep.subr.mxu0 0.0
      %1284 = vmatpush1.msra.mxu0 0.0
      %1285 = vmatprep.subr.mxu0 0.0
      %1286 = vmatpush1.msra.mxu0 0.0
      %1287 = vmatprep.subr.mxu0 0.0
      %1288 = vmatpush1.msra.mxu0 0.0
      %1289 = vmatprep.subr.mxu0 0.0
      %1290 = vmatpush1.msra.mxu0 0.0
      %1291 = vmatprep.subr.mxu0 0.0
      %1292 = vmatpush1.msra.mxu0 0.0
      %1293 = vmatprep.subr.mxu0 0.0
      %1294 = vmatpush1.msra.mxu0 0.0
      %1295 = vmatprep.subr.mxu0 0.0
      %1296 = vmatpush1.msra.mxu0 0.0
      %1297 = vmatprep.subr.mxu0 0.0
      %1298 = vmatpush1.msra.mxu0 0.0
      %1299 = vmatprep.subr.mxu0 0.0
      %1300 = vmatpush1.msra.mxu0 0.0
      %1301 = vmatprep.subr.mxu0 0.0
      %1302 = vmatpush1.msra.mxu0 0.0
      %1303 = vmatprep.subr.mxu0 0.0
      %1304 = vmatpush1.msra.mxu0 0.0
      %1305 = vmatprep.subr.mxu0 0.0
      %1306 = vmatpush1.msra.mxu0 0.0
      %1307 = vmatprep.subr.mxu0 0.0
      %1308 = vmatpush1.msra.mxu0 0.0
      %1309 = vmatprep.subr.mxu0 0.0
      %1310 = vmatpush1.msra.mxu0 0.0
      %1311 = vmatprep.subr.mxu0 0.0
      %1312 = vmatpush1.msra.mxu0 0.0
      %1313 = vmatprep.subr.mxu0 0.0
      %1314 = vmatpush1.msra.mxu0 0.0
      %1315 = vmatprep.subr.mxu0 0.0
      %1316 = vmatpush1.msra.mxu0 0.0
      %1317 = vmatprep.subr.mxu0 0.0
      %1318 = vmatpush1.msra.mxu0 0.0
      %1319 = vmatprep.subr.mxu0 0.0
      %1320 = vmatpush1.msra.mxu0 0.0
      %1321 = vmatprep.subr.mxu0 0.0
      %1322 = vmatpush1.msra.mxu0 0.0
      %1323 = vmatprep.subr.mxu0 0.0
      %1324 = vmatpush1.msra.mxu0 0.0
      %1325 = vmatprep.subr.mxu0 0.0
      %1326 = vmatpush1.msra.mxu0 0.0
      %1327 = vmatprep.subr.mxu0 0.0
      %1328 = vmatpush1.msra.mxu0 0.0
      %1329 = vmatprep.mubr.f32.mxu0 0.0
      %1330 = vmatmul.mubr.f32.gmra.mrb[0].mxu0 %v1256
      %v1331 = vpop.f32.mrb[0].mxu0
      %v1332 = vadd.f32 0.0, %v1331
      %v1333 = vpop.f32.mrb[0].mxu0
      %v1334 = vadd.f32 0.0, %v1333
      %1335 = vdwg.mxu0
      %1336 = vmatprep.subr.mxu0 0.0
      %1337 = vmatpush1.msra.mxu0 %v1263
      %1338 = vmatprep.subr.mxu0 0.0
      %1339 = vmatpush1.msra.mxu0 0.0
      %1340 = vmatprep.subr.mxu0 0.0
      %1341 = vmatpush1.msra.mxu0 0.0
      %1342 = vmatprep.subr.mxu0 0.0
      %1343 = vmatpush1.msra.mxu0 0.0
      %1344 = vmatprep.subr.mxu0 0.0
      %1345 = vmatpush1.msra.mxu0 0.0
      %1346 = vmatprep.subr.mxu0 0.0
      %1347 = vmatpush1.msra.mxu0 0.0
      %1348 = vmatprep.subr.mxu0 0.0
      %1349 = vmatpush1.msra.mxu0 0.0
      %1350 = vmatprep.subr.mxu0 0.0
      %1351 = vmatpush1.msra.mxu0 0.0
      %1352 = vmatprep.subr.mxu0 0.0
      %1353 = vmatpush1.msra.mxu0 0.0
      %1354 = vmatprep.subr.mxu0 0.0
      %1355 = vmatpush1.msra.mxu0 0.0
      %1356 = vmatprep.subr.mxu0 0.0
      %1357 = vmatpush1.msra.mxu0 0.0
      %1358 = vmatprep.subr.mxu0 0.0
      %1359 = vmatpush1.msra.mxu0 0.0
      %1360 = vmatprep.subr.mxu0 0.0
      %1361 = vmatpush1.msra.mxu0 0.0
      %1362 = vmatprep.subr.mxu0 0.0
      %1363 = vmatpush1.msra.mxu0 0.0
      %1364 = vmatprep.subr.mxu0 0.0
      %1365 = vmatpush1.msra.mxu0 0.0
      %1366 = vmatprep.subr.mxu0 0.0
      %1367 = vmatpush1.msra.mxu0 0.0
      %1368 = vmatprep.subr.mxu0 0.0
      %1369 = vmatpush1.msra.mxu0 0.0
      %1370 = vmatprep.subr.mxu0 0.0
      %1371 = vmatpush1.msra.mxu0 0.0
      %1372 = vmatprep.subr.mxu0 0.0
      %1373 = vmatpush1.msra.mxu0 0.0
      %1374 = vmatprep.subr.mxu0 0.0
      %1375 = vmatpush1.msra.mxu0 0.0
      %1376 = vmatprep.subr.mxu0 0.0
      %1377 = vmatpush1.msra.mxu0 0.0
      %1378 = vmatprep.subr.mxu0 0.0
      %1379 = vmatpush1.msra.mxu0 0.0
      %1380 = vmatprep.subr.mxu0 0.0
      %1381 = vmatpush1.msra.mxu0 0.0
      %1382 = vmatprep.subr.mxu0 0.0
      %1383 = vmatpush1.msra.mxu0 0.0
      %1384 = vmatprep.subr.mxu0 0.0
      %1385 = vmatpush1.msra.mxu0 0.0
      %1386 = vmatprep.subr.mxu0 0.0
      %1387 = vmatpush1.msra.mxu0 0.0
      %1388 = vmatprep.subr.mxu0 0.0
      %1389 = vmatpush1.msra.mxu0 0.0
      %1390 = vmatprep.subr.mxu0 0.0
      %1391 = vmatpush1.msra.mxu0 0.0
      %1392 = vmatprep.subr.mxu0 0.0
      %1393 = vmatpush1.msra.mxu0 0.0
      %1394 = vmatprep.subr.mxu0 0.0
      %1395 = vmatpush1.msra.mxu0 0.0
      %1396 = vmatprep.subr.mxu0 0.0
      %1397 = vmatpush1.msra.mxu0 0.0
      %1398 = vmatprep.subr.mxu0 0.0
      %1399 = vmatpush1.msra.mxu0 0.0
      %1400 = vmatprep.mubr.f32.mxu0 0.0
      %1401 = vmatmul.mubr.f32.gmra.mrb[0].mxu0 %v1256
      %v1402 = vpop.f32.mrb[0].mxu0
      %v1403 = vadd.f32 0.0, %v1402
      %v1404 = vpop.f32.mrb[0].mxu0
      %1405 = vdwg.mxu0
      %1407 = vset.pattern.permute.xlu0 0
      %1408 = vperm.xlu0 %1407, %v1020
      %v1409 = vpop.permute.xlu0 %1408
      %v1411 = vmul.f32 %v1332, %v1409
      %v1412 = vmul.f32 %v1334, %v1409
      %v1413 = vmul.f32 %v1403, %v1409
      %1415 = vset.pattern.permute.xlu0 0
      %1416 = vperm.xlu0 %1415, %v1021
      %v1417 = vpop.permute.xlu0 %1416
      %v1419 = vadd.f32 %v1411, %v1417
      %v1420 = vadd.f32 %v1412, %v1417
      %v1421 = vadd.f32 %v1413, %v1417
      %v1422 = vmax.f32 %v1419, 0.0
      %v1423 = vmax.f32 %v1420, 0.0
      %v1424 = vmax.f32 %v1421, 0.0
      %v1426 = vlaneseq
      %v1427 = vshrl.u32 %v1426, 7
      %v1428 = vsub.s32 0, %v1427
      %v1429 = vrot.slane %v1015, %v1428
      %v1430 = vlaneseq
      %v1431 = vshrl.u32 %v1430, 7
      %v1432 = vsub.s32 1, %v1431
      %v1433 = vrot.slane %v1015, %v1432
      %v1434 = vlaneseq
      %v1435 = vshrl.u32 %v1434, 7
      %v1436 = vsub.s32 2, %v1435
      %v1437 = vrot.slane %v1015, %v1436
      %v1441 = vmul.f32 %v1422, %v1429
      %v1442 = vmul.f32 %v1423, %v1433
      %v1443 = vmul.f32 %v1424, %v1437
      %v1444 = vld [vmem:[%s13] sm:$0xff]
      %v1445 = vld [vmem:[%s15] sm:$0xff]
      %v1446 = vld [vmem:[%s17] sm:$0xff]
      %v1447 = vld [vmem:[%s19] sm:$0xff]
      %1449 = vset.pattern.permute.xlu0 4
      %1450 = vperm.xlu0 %1449, %v1444
      %v1451 = vpop.permute.xlu0 %1450
      %v1453 = vmul.f32 %v1441, %v1451
      %v1454 = vmul.f32 %v1442, %v1451
      %v1455 = vmul.f32 %v1443, %v1451
      %1459 = vrot.lane.b32.xlu0 %v1441, 21
      %v1460 = vpop.permute.xlu0 %1459
      %1461 = vrot.lane.b32.xlu0 %v1442, 21
      %v1462 = vpop.permute.xlu0 %1461
      %1463 = vrot.lane.b32.xlu0 %v1443, 21
      %v1464 = vpop.permute.xlu0 %1463
      %v1465 = vsel %vm1045, %v1460, %v1462
      %v1466 = vsel %vm1045, %v1462, %v1464
      %v1470 = vsel %vm1045, 0.0, %v1460
      %1471 = vset.pattern.permute.xlu0 0
      %1472 = vperm.xlu0 %1471, %v1444
      %v1473 = vpop.permute.xlu0 %1472
      %v1475 = vmul.f32 %v1470, %v1473
      %v1476 = vmul.f32 %v1465, %v1473
      %v1477 = vmul.f32 %v1466, %v1473
      %v1478 = vadd.f32 %v1453, %v1475
      %v1479 = vadd.f32 %v1454, %v1476
      %v1480 = vadd.f32 %v1455, %v1477
      %1481 = vrot.lane.b32.xlu0 %v1441, 20
      %v1482 = vpop.permute.xlu0 %1481
      %1483 = vrot.lane.b32.xlu0 %v1442, 20
      %v1484 = vpop.permute.xlu0 %1483
      %1485 = vrot.lane.b32.xlu0 %v1443, 20
      %v1486 = vpop.permute.xlu0 %1485
      %v1487 = vsel %vm1071, %v1482, %v1484
      %v1488 = vsel %vm1071, %v1484, %v1486
      %v1492 = vsel %vm1071, 0.0, %v1482
      %1493 = vset.pattern.permute.xlu0 1
      %1494 = vperm.xlu0 %1493, %v1444
      %v1495 = vpop.permute.xlu0 %1494
      %v1497 = vmul.f32 %v1492, %v1495
      %v1498 = vmul.f32 %v1487, %v1495
      %v1499 = vmul.f32 %v1488, %v1495
      %v1500 = vadd.f32 %v1478, %v1497
      %v1501 = vadd.f32 %v1479, %v1498
      %v1502 = vadd.f32 %v1480, %v1499
      %1503 = vrot.lane.b32.xlu0 %v1441, 19
      %v1504 = vpop.permute.xlu0 %1503
      %1505 = vrot.lane.b32.xlu0 %v1442, 19
      %v1506 = vpop.permute.xlu0 %1505
      %1507 = vrot.lane.b32.xlu0 %v1443, 19
      %v1508 = vpop.permute.xlu0 %1507
      %v1509 = vsel %vm1097, %v1504, %v1506
      %v1510 = vsel %vm1097, %v1506, %v1508
      %v1514 = vsel %vm1097, 0.0, %v1504
      %1515 = vset.pattern.permute.xlu0 2
      %1516 = vperm.xlu0 %1515, %v1444
      %v1517 = vpop.permute.xlu0 %1516
      %v1519 = vmul.f32 %v1514, %v1517
      %v1520 = vmul.f32 %v1509, %v1517
      %v1521 = vmul.f32 %v1510, %v1517
      %v1522 = vadd.f32 %v1500, %v1519
      %v1523 = vadd.f32 %v1501, %v1520
      %v1524 = vadd.f32 %v1502, %v1521
      %1525 = vrot.lane.b32.xlu0 %v1441, 1
      %v1526 = vpop.permute.xlu0 %1525
      %1527 = vrot.lane.b32.xlu0 %v1442, 1
      %v1528 = vpop.permute.xlu0 %1527
      %1529 = vrot.lane.b32.xlu0 %v1443, 1
      %v1530 = vpop.permute.xlu0 %1529
      %v1531 = vsel %vm1123, %v1526, %v1528
      %v1532 = vsel %vm1123, %v1528, %v1530
      %v1536 = vsel %vm1123, 0.0, %v1526
      %1537 = vset.pattern.permute.xlu0 3
      %1538 = vperm.xlu0 %1537, %v1444
      %v1539 = vpop.permute.xlu0 %1538
      %v1541 = vmul.f32 %v1536, %v1539
      %v1542 = vmul.f32 %v1531, %v1539
      %v1543 = vmul.f32 %v1532, %v1539
      %v1544 = vadd.f32 %v1522, %v1541
      %v1545 = vadd.f32 %v1523, %v1542
      %v1546 = vadd.f32 %v1524, %v1543
      %1547 = vrot.lane.b32.xlu0 %v1441, 127
      %v1548 = vpop.permute.xlu0 %1547
      %1549 = vrot.lane.b32.xlu0 %v1442, 127
      %v1550 = vpop.permute.xlu0 %1549
      %1551 = vrot.lane.b32.xlu0 %v1443, 127
      %v1552 = vpop.permute.xlu0 %1551
      %v1553 = vsel %vm1149, %v1548, %v1550
      %v1554 = vsel %vm1149, %v1550, %v1552
      %v1558 = vsel %vm1155, %v1552, 0.0
      %1559 = vset.pattern.permute.xlu0 5
      %1560 = vperm.xlu0 %1559, %v1444
      %v1561 = vpop.permute.xlu0 %1560
      %v1563 = vmul.f32 %v1553, %v1561
      %v1564 = vmul.f32 %v1554, %v1561
      %v1565 = vmul.f32 %v1558, %v1561
      %v1566 = vadd.f32 %v1544, %v1563
      %v1567 = vadd.f32 %v1545, %v1564
      %v1568 = vadd.f32 %v1546, %v1565
      %1569 = vrot.lane.b32.xlu0 %v1441, 109
      %v1570 = vpop.permute.xlu0 %1569
      %1571 = vrot.lane.b32.xlu0 %v1442, 109
      %v1572 = vpop.permute.xlu0 %1571
      %1573 = vrot.lane.b32.xlu0 %v1443, 109
      %v1574 = vpop.permute.xlu0 %1573
      %v1575 = vsel %vm1176, %v1570, %v1572
      %v1576 = vsel %vm1176, %v1572, %v1574
      %v1580 = vsel %vm1182, %v1574, 0.0
      %1581 = vset.pattern.permute.xlu0 6
      %1582 = vperm.xlu0 %1581, %v1444
      %v1583 = vpop.permute.xlu0 %1582
      %v1585 = vmul.f32 %v1575, %v1583
      %v1586 = vmul.f32 %v1576, %v1583
      %v1587 = vmul.f32 %v1580, %v1583
      %v1588 = vadd.f32 %v1566, %v1585
      %v1589 = vadd.f32 %v1567, %v1586
      %v1590 = vadd.f32 %v1568, %v1587
      %1591 = vrot.lane.b32.xlu0 %v1441, 108
      %v1592 = vpop.permute.xlu0 %1591
      %1593 = vrot.lane.b32.xlu0 %v1442, 108
      %v1594 = vpop.permute.xlu0 %1593
      %1595 = vrot.lane.b32.xlu0 %v1443, 108
      %v1596 = vpop.permute.xlu0 %1595
      %v1597 = vsel %vm1203, %v1592, %v1594
      %v1598 = vsel %vm1203, %v1594, %v1596
      %v1602 = vsel %vm1209, %v1596, 0.0
      %1603 = vset.pattern.permute.xlu0 7
      %1604 = vperm.xlu0 %1603, %v1444
      %v1605 = vpop.permute.xlu0 %1604
      %v1607 = vmul.f32 %v1597, %v1605
      %v1608 = vmul.f32 %v1598, %v1605
      %v1609 = vmul.f32 %v1602, %v1605
      %v1610 = vadd.f32 %v1588, %v1607
      %v1611 = vadd.f32 %v1589, %v1608
      %v1612 = vadd.f32 %v1590, %v1609
      %1613 = vrot.lane.b32.xlu0 %v1441, 107
      %v1614 = vpop.permute.xlu0 %1613
      %1615 = vrot.lane.b32.xlu0 %v1442, 107
      %v1616 = vpop.permute.xlu0 %1615
      %1617 = vrot.lane.b32.xlu0 %v1443, 107
      %v1618 = vpop.permute.xlu0 %1617
      %v1619 = vsel %vm1230, %v1614, %v1616
      %v1620 = vsel %vm1230, %v1616, %v1618
      %v1624 = vsel %vm1236, %v1618, 0.0
      %1625 = vset.pattern.permute.xlu0 8
      %1626 = vperm.xlu0 %1625, %v1444
      %v1627 = vpop.permute.xlu0 %1626
      %v1629 = vmul.f32 %v1619, %v1627
      %v1630 = vmul.f32 %v1620, %v1627
      %v1631 = vmul.f32 %v1624, %v1627
      %v1632 = vadd.f32 %v1610, %v1629
      %v1633 = vadd.f32 %v1611, %v1630
      %v1634 = vadd.f32 %v1612, %v1631
      %vm1635 = vcmask 64512
      %v1637 = vsel %vm1635, %v1445, 0
      %1639 = vmatprep.subr.mxu0 %v1633
      %1640 = vmatpush1.msra.mxu0 %v1632
      %1641 = vmatprep.subr.mxu0 0.0
      %1642 = vmatpush1.msra.mxu0 0.0
      %1643 = vmatprep.subr.mxu0 0.0
      %1644 = vmatpush1.msra.mxu0 0.0
      %1645 = vmatprep.subr.mxu0 0.0
      %1646 = vmatpush1.msra.mxu0 0.0
      %1647 = vmatprep.subr.mxu0 0.0
      %1648 = vmatpush1.msra.mxu0 0.0
      %1649 = vmatprep.subr.mxu0 0.0
      %1650 = vmatpush1.msra.mxu0 0.0
      %1651 = vmatprep.subr.mxu0 0.0
      %1652 = vmatpush1.msra.mxu0 0.0
      %1653 = vmatprep.subr.mxu0 0.0
      %1654 = vmatpush1.msra.mxu0 0.0
      %1655 = vmatprep.subr.mxu0 0.0
      %1656 = vmatpush1.msra.mxu0 0.0
      %1657 = vmatprep.subr.mxu0 0.0
      %1658 = vmatpush1.msra.mxu0 0.0
      %1659 = vmatprep.subr.mxu0 0.0
      %1660 = vmatpush1.msra.mxu0 0.0
      %1661 = vmatprep.subr.mxu0 0.0
      %1662 = vmatpush1.msra.mxu0 0.0
      %1663 = vmatprep.subr.mxu0 0.0
      %1664 = vmatpush1.msra.mxu0 0.0
      %1665 = vmatprep.subr.mxu0 0.0
      %1666 = vmatpush1.msra.mxu0 0.0
      %1667 = vmatprep.subr.mxu0 0.0
      %1668 = vmatpush1.msra.mxu0 0.0
      %1669 = vmatprep.subr.mxu0 0.0
      %1670 = vmatpush1.msra.mxu0 0.0
      %1671 = vmatprep.subr.mxu0 0.0
      %1672 = vmatpush1.msra.mxu0 0.0
      %1673 = vmatprep.subr.mxu0 0.0
      %1674 = vmatpush1.msra.mxu0 0.0
      %1675 = vmatprep.subr.mxu0 0.0
      %1676 = vmatpush1.msra.mxu0 0.0
      %1677 = vmatprep.subr.mxu0 0.0
      %1678 = vmatpush1.msra.mxu0 0.0
      %1679 = vmatprep.subr.mxu0 0.0
      %1680 = vmatpush1.msra.mxu0 0.0
      %1681 = vmatprep.subr.mxu0 0.0
      %1682 = vmatpush1.msra.mxu0 0.0
      %1683 = vmatprep.subr.mxu0 0.0
      %1684 = vmatpush1.msra.mxu0 0.0
      %1685 = vmatprep.subr.mxu0 0.0
      %1686 = vmatpush1.msra.mxu0 0.0
      %1687 = vmatprep.subr.mxu0 0.0
      %1688 = vmatpush1.msra.mxu0 0.0
      %1689 = vmatprep.subr.mxu0 0.0
      %1690 = vmatpush1.msra.mxu0 0.0
      %1691 = vmatprep.subr.mxu0 0.0
      %1692 = vmatpush1.msra.mxu0 0.0
      %1693 = vmatprep.subr.mxu0 0.0
      %1694 = vmatpush1.msra.mxu0 0.0
      %1695 = vmatprep.subr.mxu0 0.0
      %1696 = vmatpush1.msra.mxu0 0.0
      %1697 = vmatprep.subr.mxu0 0.0
      %1698 = vmatpush1.msra.mxu0 0.0
      %1699 = vmatprep.subr.mxu0 0.0
      %1700 = vmatpush1.msra.mxu0 0.0
      %1701 = vmatprep.subr.mxu0 0.0
      %1702 = vmatpush1.msra.mxu0 0.0
      %1703 = vmatprep.mubr.f32.mxu0 0.0
      %1704 = vmatmul.mubr.f32.gmra.mrb[0].mxu0 %v1637
      %v1705 = vpop.f32.mrb[0].mxu0
      %v1706 = vadd.f32 0.0, %v1705
      %v1707 = vpop.f32.mrb[0].mxu0
      %v1708 = vadd.f32 0.0, %v1707
      %1709 = vdwg.mxu0
      %1710 = vmatprep.subr.mxu0 0.0
      %1711 = vmatpush1.msra.mxu0 %v1634
      %1712 = vmatprep.subr.mxu0 0.0
      %1713 = vmatpush1.msra.mxu0 0.0
      %1714 = vmatprep.subr.mxu0 0.0
      %1715 = vmatpush1.msra.mxu0 0.0
      %1716 = vmatprep.subr.mxu0 0.0
      %1717 = vmatpush1.msra.mxu0 0.0
      %1718 = vmatprep.subr.mxu0 0.0
      %1719 = vmatpush1.msra.mxu0 0.0
      %1720 = vmatprep.subr.mxu0 0.0
      %1721 = vmatpush1.msra.mxu0 0.0
      %1722 = vmatprep.subr.mxu0 0.0
      %1723 = vmatpush1.msra.mxu0 0.0
      %1724 = vmatprep.subr.mxu0 0.0
      %1725 = vmatpush1.msra.mxu0 0.0
      %1726 = vmatprep.subr.mxu0 0.0
      %1727 = vmatpush1.msra.mxu0 0.0
      %1728 = vmatprep.subr.mxu0 0.0
      %1729 = vmatpush1.msra.mxu0 0.0
      %1730 = vmatprep.subr.mxu0 0.0
      %1731 = vmatpush1.msra.mxu0 0.0
      %1732 = vmatprep.subr.mxu0 0.0
      %1733 = vmatpush1.msra.mxu0 0.0
      %1734 = vmatprep.subr.mxu0 0.0
      %1735 = vmatpush1.msra.mxu0 0.0
      %1736 = vmatprep.subr.mxu0 0.0
      %1737 = vmatpush1.msra.mxu0 0.0
      %1738 = vmatprep.subr.mxu0 0.0
      %1739 = vmatpush1.msra.mxu0 0.0
      %1740 = vmatprep.subr.mxu0 0.0
      %1741 = vmatpush1.msra.mxu0 0.0
      %1742 = vmatprep.subr.mxu0 0.0
      %1743 = vmatpush1.msra.mxu0 0.0
      %1744 = vmatprep.subr.mxu0 0.0
      %1745 = vmatpush1.msra.mxu0 0.0
      %1746 = vmatprep.subr.mxu0 0.0
      %1747 = vmatpush1.msra.mxu0 0.0
      %1748 = vmatprep.subr.mxu0 0.0
      %1749 = vmatpush1.msra.mxu0 0.0
      %1750 = vmatprep.subr.mxu0 0.0
      %1751 = vmatpush1.msra.mxu0 0.0
      %1752 = vmatprep.subr.mxu0 0.0
      %1753 = vmatpush1.msra.mxu0 0.0
      %1754 = vmatprep.subr.mxu0 0.0
      %1755 = vmatpush1.msra.mxu0 0.0
      %1756 = vmatprep.subr.mxu0 0.0
      %1757 = vmatpush1.msra.mxu0 0.0
      %1758 = vmatprep.subr.mxu0 0.0
      %1759 = vmatpush1.msra.mxu0 0.0
      %1760 = vmatprep.subr.mxu0 0.0
      %1761 = vmatpush1.msra.mxu0 0.0
      %1762 = vmatprep.subr.mxu0 0.0
      %1763 = vmatpush1.msra.mxu0 0.0
      %1764 = vmatprep.subr.mxu0 0.0
      %1765 = vmatpush1.msra.mxu0 0.0
      %1766 = vmatprep.subr.mxu0 0.0
      %1767 = vmatpush1.msra.mxu0 0.0
      %1768 = vmatprep.subr.mxu0 0.0
      %1769 = vmatpush1.msra.mxu0 0.0
      %1770 = vmatprep.subr.mxu0 0.0
      %1771 = vmatpush1.msra.mxu0 0.0
      %1772 = vmatprep.subr.mxu0 0.0
      %1773 = vmatpush1.msra.mxu0 0.0
      %1774 = vmatprep.mubr.f32.mxu0 0.0
      %1775 = vmatmul.mubr.f32.gmra.mrb[0].mxu0 %v1637
      %v1776 = vpop.f32.mrb[0].mxu0
      %v1777 = vadd.f32 0.0, %v1776
      %v1778 = vpop.f32.mrb[0].mxu0
      %1779 = vdwg.mxu0
      %1781 = vset.pattern.permute.xlu0 0
      %1782 = vperm.xlu0 %1781, %v1446
      %v1783 = vpop.permute.xlu0 %1782
      %v1785 = vmul.f32 %v1706, %v1783
      %v1786 = vmul.f32 %v1708, %v1783
      %v1787 = vmul.f32 %v1777, %v1783
      %1789 = vset.pattern.permute.xlu0 0
      %1790 = vperm.xlu0 %1789, %v1447
      %v1791 = vpop.permute.xlu0 %1790
      %v1793 = vadd.f32 %v1785, %v1791
      %v1794 = vadd.f32 %v1786, %v1791
      %v1795 = vadd.f32 %v1787, %v1791
      %v1796 = vmax.f32 %v1793, 0.0
      %v1797 = vmax.f32 %v1794, 0.0
      %v1798 = vmax.f32 %v1795, 0.0
      %v1799 = vmul.f32 %v1796, %v1429
      %v1800 = vmul.f32 %v1797, %v1433
      %v1801 = vmul.f32 %v1798, %v1437
      %v1802 = vld [vmem:[%s21] sm:$0xff]
      %v1803 = vld [vmem:[%s23] sm:$0xff]
      %v1804 = vld [vmem:[%s25] sm:$0xff]
      %v1805 = vld [vmem:[%s27] sm:$0xff]
      %1807 = vset.pattern.permute.xlu0 4
      %1808 = vperm.xlu0 %1807, %v1802
      %v1809 = vpop.permute.xlu0 %1808
      %v1811 = vmul.f32 %v1799, %v1809
      %v1812 = vmul.f32 %v1800, %v1809
      %v1813 = vmul.f32 %v1801, %v1809
      %1817 = vrot.lane.b32.xlu0 %v1799, 21
      %v1818 = vpop.permute.xlu0 %1817
      %1819 = vrot.lane.b32.xlu0 %v1800, 21
      %v1820 = vpop.permute.xlu0 %1819
      %1821 = vrot.lane.b32.xlu0 %v1801, 21
      %v1822 = vpop.permute.xlu0 %1821
      %v1823 = vsel %vm1045, %v1818, %v1820
      %v1824 = vsel %vm1045, %v1820, %v1822
      %v1828 = vsel %vm1045, 0.0, %v1818
      %1829 = vset.pattern.permute.xlu0 0
      %1830 = vperm.xlu0 %1829, %v1802
      %v1831 = vpop.permute.xlu0 %1830
      %v1833 = vmul.f32 %v1828, %v1831
      %v1834 = vmul.f32 %v1823, %v1831
      %v1835 = vmul.f32 %v1824, %v1831
      %v1836 = vadd.f32 %v1811, %v1833
      %v1837 = vadd.f32 %v1812, %v1834
      %v1838 = vadd.f32 %v1813, %v1835
      %1839 = vrot.lane.b32.xlu0 %v1799, 20
      %v1840 = vpop.permute.xlu0 %1839
      %1841 = vrot.lane.b32.xlu0 %v1800, 20
      %v1842 = vpop.permute.xlu0 %1841
      %1843 = vrot.lane.b32.xlu0 %v1801, 20
      %v1844 = vpop.permute.xlu0 %1843
      %v1845 = vsel %vm1071, %v1840, %v1842
      %v1846 = vsel %vm1071, %v1842, %v1844
      %v1850 = vsel %vm1071, 0.0, %v1840
      %1851 = vset.pattern.permute.xlu0 1
      %1852 = vperm.xlu0 %1851, %v1802
      %v1853 = vpop.permute.xlu0 %1852
      %v1855 = vmul.f32 %v1850, %v1853
      %v1856 = vmul.f32 %v1845, %v1853
      %v1857 = vmul.f32 %v1846, %v1853
      %v1858 = vadd.f32 %v1836, %v1855
      %v1859 = vadd.f32 %v1837, %v1856
      %v1860 = vadd.f32 %v1838, %v1857
      %1861 = vrot.lane.b32.xlu0 %v1799, 19
      %v1862 = vpop.permute.xlu0 %1861
      %1863 = vrot.lane.b32.xlu0 %v1800, 19
      %v1864 = vpop.permute.xlu0 %1863
      %1865 = vrot.lane.b32.xlu0 %v1801, 19
      %v1866 = vpop.permute.xlu0 %1865
      %v1867 = vsel %vm1097, %v1862, %v1864
      %v1868 = vsel %vm1097, %v1864, %v1866
      %v1872 = vsel %vm1097, 0.0, %v1862
      %1873 = vset.pattern.permute.xlu0 2
      %1874 = vperm.xlu0 %1873, %v1802
      %v1875 = vpop.permute.xlu0 %1874
      %v1877 = vmul.f32 %v1872, %v1875
      %v1878 = vmul.f32 %v1867, %v1875
      %v1879 = vmul.f32 %v1868, %v1875
      %v1880 = vadd.f32 %v1858, %v1877
      %v1881 = vadd.f32 %v1859, %v1878
      %v1882 = vadd.f32 %v1860, %v1879
      %1883 = vrot.lane.b32.xlu0 %v1799, 1
      %v1884 = vpop.permute.xlu0 %1883
      %1885 = vrot.lane.b32.xlu0 %v1800, 1
      %v1886 = vpop.permute.xlu0 %1885
      %1887 = vrot.lane.b32.xlu0 %v1801, 1
      %v1888 = vpop.permute.xlu0 %1887
      %v1889 = vsel %vm1123, %v1884, %v1886
      %v1890 = vsel %vm1123, %v1886, %v1888
      %v1894 = vsel %vm1123, 0.0, %v1884
      %1895 = vset.pattern.permute.xlu0 3
      %1896 = vperm.xlu0 %1895, %v1802
      %v1897 = vpop.permute.xlu0 %1896
      %v1899 = vmul.f32 %v1894, %v1897
      %v1900 = vmul.f32 %v1889, %v1897
      %v1901 = vmul.f32 %v1890, %v1897
      %v1902 = vadd.f32 %v1880, %v1899
      %v1903 = vadd.f32 %v1881, %v1900
      %v1904 = vadd.f32 %v1882, %v1901
      %1905 = vrot.lane.b32.xlu0 %v1799, 127
      %v1906 = vpop.permute.xlu0 %1905
      %1907 = vrot.lane.b32.xlu0 %v1800, 127
      %v1908 = vpop.permute.xlu0 %1907
      %1909 = vrot.lane.b32.xlu0 %v1801, 127
      %v1910 = vpop.permute.xlu0 %1909
      %v1911 = vsel %vm1149, %v1906, %v1908
      %v1912 = vsel %vm1149, %v1908, %v1910
      %v1916 = vsel %vm1155, %v1910, 0.0
      %1917 = vset.pattern.permute.xlu0 5
      %1918 = vperm.xlu0 %1917, %v1802
      %v1919 = vpop.permute.xlu0 %1918
      %v1921 = vmul.f32 %v1911, %v1919
      %v1922 = vmul.f32 %v1912, %v1919
      %v1923 = vmul.f32 %v1916, %v1919
      %v1924 = vadd.f32 %v1902, %v1921
      %v1925 = vadd.f32 %v1903, %v1922
      %v1926 = vadd.f32 %v1904, %v1923
      %1927 = vrot.lane.b32.xlu0 %v1799, 109
      %v1928 = vpop.permute.xlu0 %1927
      %1929 = vrot.lane.b32.xlu0 %v1800, 109
      %v1930 = vpop.permute.xlu0 %1929
      %1931 = vrot.lane.b32.xlu0 %v1801, 109
      %v1932 = vpop.permute.xlu0 %1931
      %v1933 = vsel %vm1176, %v1928, %v1930
      %v1934 = vsel %vm1176, %v1930, %v1932
      %v1938 = vsel %vm1182, %v1932, 0.0
      %1939 = vset.pattern.permute.xlu0 6
      %1940 = vperm.xlu0 %1939, %v1802
      %v1941 = vpop.permute.xlu0 %1940
      %v1943 = vmul.f32 %v1933, %v1941
      %v1944 = vmul.f32 %v1934, %v1941
      %v1945 = vmul.f32 %v1938, %v1941
      %v1946 = vadd.f32 %v1924, %v1943
      %v1947 = vadd.f32 %v1925, %v1944
      %v1948 = vadd.f32 %v1926, %v1945
      %1949 = vrot.lane.b32.xlu0 %v1799, 108
      %v1950 = vpop.permute.xlu0 %1949
      %1951 = vrot.lane.b32.xlu0 %v1800, 108
      %v1952 = vpop.permute.xlu0 %1951
      %1953 = vrot.lane.b32.xlu0 %v1801, 108
      %v1954 = vpop.permute.xlu0 %1953
      %v1955 = vsel %vm1203, %v1950, %v1952
      %v1956 = vsel %vm1203, %v1952, %v1954
      %v1960 = vsel %vm1209, %v1954, 0.0
      %1961 = vset.pattern.permute.xlu0 7
      %1962 = vperm.xlu0 %1961, %v1802
      %v1963 = vpop.permute.xlu0 %1962
      %v1965 = vmul.f32 %v1955, %v1963
      %v1966 = vmul.f32 %v1956, %v1963
      %v1967 = vmul.f32 %v1960, %v1963
      %v1968 = vadd.f32 %v1946, %v1965
      %v1969 = vadd.f32 %v1947, %v1966
      %v1970 = vadd.f32 %v1948, %v1967
      %1971 = vrot.lane.b32.xlu0 %v1799, 107
      %v1972 = vpop.permute.xlu0 %1971
      %1973 = vrot.lane.b32.xlu0 %v1800, 107
      %v1974 = vpop.permute.xlu0 %1973
      %1975 = vrot.lane.b32.xlu0 %v1801, 107
      %v1976 = vpop.permute.xlu0 %1975
      %v1977 = vsel %vm1230, %v1972, %v1974
      %v1978 = vsel %vm1230, %v1974, %v1976
      %v1982 = vsel %vm1236, %v1976, 0.0
      %1983 = vset.pattern.permute.xlu0 8
      %1984 = vperm.xlu0 %1983, %v1802
      %v1985 = vpop.permute.xlu0 %1984
      %v1987 = vmul.f32 %v1977, %v1985
      %v1988 = vmul.f32 %v1978, %v1985
      %v1989 = vmul.f32 %v1982, %v1985
      %v1990 = vadd.f32 %v1968, %v1987
      %v1991 = vadd.f32 %v1969, %v1988
      %v1992 = vadd.f32 %v1970, %v1989
      %v1994 = vsel %vm1635, %v1803, 0
      %1996 = vmatprep.subr.mxu0 %v1991
      %1997 = vmatpush1.msra.mxu0 %v1990
      %1998 = vmatprep.subr.mxu0 0.0
      %1999 = vmatpush1.msra.mxu0 0.0
      %2000 = vmatprep.subr.mxu0 0.0
      %2001 = vmatpush1.msra.mxu0 0.0
      %2002 = vmatprep.subr.mxu0 0.0
      %2003 = vmatpush1.msra.mxu0 0.0
      %2004 = vmatprep.subr.mxu0 0.0
      %2005 = vmatpush1.msra.mxu0 0.0
      %2006 = vmatprep.subr.mxu0 0.0
      %2007 = vmatpush1.msra.mxu0 0.0
      %2008 = vmatprep.subr.mxu0 0.0
      %2009 = vmatpush1.msra.mxu0 0.0
      %2010 = vmatprep.subr.mxu0 0.0
      %2011 = vmatpush1.msra.mxu0 0.0
      %2012 = vmatprep.subr.mxu0 0.0
      %2013 = vmatpush1.msra.mxu0 0.0
      %2014 = vmatprep.subr.mxu0 0.0
      %2015 = vmatpush1.msra.mxu0 0.0
      %2016 = vmatprep.subr.mxu0 0.0
      %2017 = vmatpush1.msra.mxu0 0.0
      %2018 = vmatprep.subr.mxu0 0.0
      %2019 = vmatpush1.msra.mxu0 0.0
      %2020 = vmatprep.subr.mxu0 0.0
      %2021 = vmatpush1.msra.mxu0 0.0
      %2022 = vmatprep.subr.mxu0 0.0
      %2023 = vmatpush1.msra.mxu0 0.0
      %2024 = vmatprep.subr.mxu0 0.0
      %2025 = vmatpush1.msra.mxu0 0.0
      %2026 = vmatprep.subr.mxu0 0.0
      %2027 = vmatpush1.msra.mxu0 0.0
      %2028 = vmatprep.subr.mxu0 0.0
      %2029 = vmatpush1.msra.mxu0 0.0
      %2030 = vmatprep.subr.mxu0 0.0
      %2031 = vmatpush1.msra.mxu0 0.0
      %2032 = vmatprep.subr.mxu0 0.0
      %2033 = vmatpush1.msra.mxu0 0.0
      %2034 = vmatprep.subr.mxu0 0.0
      %2035 = vmatpush1.msra.mxu0 0.0
      %2036 = vmatprep.subr.mxu0 0.0
      %2037 = vmatpush1.msra.mxu0 0.0
      %2038 = vmatprep.subr.mxu0 0.0
      %2039 = vmatpush1.msra.mxu0 0.0
      %2040 = vmatprep.subr.mxu0 0.0
      %2041 = vmatpush1.msra.mxu0 0.0
      %2042 = vmatprep.subr.mxu0 0.0
      %2043 = vmatpush1.msra.mxu0 0.0
      %2044 = vmatprep.subr.mxu0 0.0
      %2045 = vmatpush1.msra.mxu0 0.0
      %2046 = vmatprep.subr.mxu0 0.0
      %2047 = vmatpush1.msra.mxu0 0.0
      %2048 = vmatprep.subr.mxu0 0.0
      %2049 = vmatpush1.msra.mxu0 0.0
      %2050 = vmatprep.subr.mxu0 0.0
      %2051 = vmatpush1.msra.mxu0 0.0
      %2052 = vmatprep.subr.mxu0 0.0
      %2053 = vmatpush1.msra.mxu0 0.0
      %2054 = vmatprep.subr.mxu0 0.0
      %2055 = vmatpush1.msra.mxu0 0.0
      %2056 = vmatprep.subr.mxu0 0.0
      %2057 = vmatpush1.msra.mxu0 0.0
      %2058 = vmatprep.subr.mxu0 0.0
      %2059 = vmatpush1.msra.mxu0 0.0
      %2060 = vmatprep.mubr.f32.mxu0 0.0
      %2061 = vmatmul.mubr.f32.gmra.mrb[0].mxu0 %v1994
      %v2062 = vpop.f32.mrb[0].mxu0
      %v2063 = vadd.f32 0.0, %v2062
      %v2064 = vpop.f32.mrb[0].mxu0
      %v2065 = vadd.f32 0.0, %v2064
      %2066 = vdwg.mxu0
      %2067 = vmatprep.subr.mxu0 0.0
      %2068 = vmatpush1.msra.mxu0 %v1992
      %2069 = vmatprep.subr.mxu0 0.0
      %2070 = vmatpush1.msra.mxu0 0.0
      %2071 = vmatprep.subr.mxu0 0.0
      %2072 = vmatpush1.msra.mxu0 0.0
      %2073 = vmatprep.subr.mxu0 0.0
      %2074 = vmatpush1.msra.mxu0 0.0
      %2075 = vmatprep.subr.mxu0 0.0
      %2076 = vmatpush1.msra.mxu0 0.0
      %2077 = vmatprep.subr.mxu0 0.0
      %2078 = vmatpush1.msra.mxu0 0.0
      %2079 = vmatprep.subr.mxu0 0.0
      %2080 = vmatpush1.msra.mxu0 0.0
      %2081 = vmatprep.subr.mxu0 0.0
      %2082 = vmatpush1.msra.mxu0 0.0
      %2083 = vmatprep.subr.mxu0 0.0
      %2084 = vmatpush1.msra.mxu0 0.0
      %2085 = vmatprep.subr.mxu0 0.0
      %2086 = vmatpush1.msra.mxu0 0.0
      %2087 = vmatprep.subr.mxu0 0.0
      %2088 = vmatpush1.msra.mxu0 0.0
      %2089 = vmatprep.subr.mxu0 0.0
      %2090 = vmatpush1.msra.mxu0 0.0
      %2091 = vmatprep.subr.mxu0 0.0
      %2092 = vmatpush1.msra.mxu0 0.0
      %2093 = vmatprep.subr.mxu0 0.0
      %2094 = vmatpush1.msra.mxu0 0.0
      %2095 = vmatprep.subr.mxu0 0.0
      %2096 = vmatpush1.msra.mxu0 0.0
      %2097 = vmatprep.subr.mxu0 0.0
      %2098 = vmatpush1.msra.mxu0 0.0
      %2099 = vmatprep.subr.mxu0 0.0
      %2100 = vmatpush1.msra.mxu0 0.0
      %2101 = vmatprep.subr.mxu0 0.0
      %2102 = vmatpush1.msra.mxu0 0.0
      %2103 = vmatprep.subr.mxu0 0.0
      %2104 = vmatpush1.msra.mxu0 0.0
      %2105 = vmatprep.subr.mxu0 0.0
      %2106 = vmatpush1.msra.mxu0 0.0
      %2107 = vmatprep.subr.mxu0 0.0
      %2108 = vmatpush1.msra.mxu0 0.0
      %2109 = vmatprep.subr.mxu0 0.0
      %2110 = vmatpush1.msra.mxu0 0.0
      %2111 = vmatprep.subr.mxu0 0.0
      %2112 = vmatpush1.msra.mxu0 0.0
      %2113 = vmatprep.subr.mxu0 0.0
      %2114 = vmatpush1.msra.mxu0 0.0
      %2115 = vmatprep.subr.mxu0 0.0
      %2116 = vmatpush1.msra.mxu0 0.0
      %2117 = vmatprep.subr.mxu0 0.0
      %2118 = vmatpush1.msra.mxu0 0.0
      %2119 = vmatprep.subr.mxu0 0.0
      %2120 = vmatpush1.msra.mxu0 0.0
      %2121 = vmatprep.subr.mxu0 0.0
      %2122 = vmatpush1.msra.mxu0 0.0
      %2123 = vmatprep.subr.mxu0 0.0
      %2124 = vmatpush1.msra.mxu0 0.0
      %2125 = vmatprep.subr.mxu0 0.0
      %2126 = vmatpush1.msra.mxu0 0.0
      %2127 = vmatprep.subr.mxu0 0.0
      %2128 = vmatpush1.msra.mxu0 0.0
      %2129 = vmatprep.subr.mxu0 0.0
      %2130 = vmatpush1.msra.mxu0 0.0
      %2131 = vmatprep.mubr.f32.mxu0 0.0
      %2132 = vmatmul.mubr.f32.gmra.mrb[0].mxu0 %v1994
      %v2133 = vpop.f32.mrb[0].mxu0
      %v2134 = vadd.f32 0.0, %v2133
      %v2135 = vpop.f32.mrb[0].mxu0
      %2136 = vdwg.mxu0
      %2138 = vset.pattern.permute.xlu0 0
      %2139 = vperm.xlu0 %2138, %v1804
      %v2140 = vpop.permute.xlu0 %2139
      %v2142 = vmul.f32 %v2063, %v2140
      %v2143 = vmul.f32 %v2065, %v2140
      %v2144 = vmul.f32 %v2134, %v2140
      %2146 = vset.pattern.permute.xlu0 0
      %2147 = vperm.xlu0 %2146, %v1805
      %v2148 = vpop.permute.xlu0 %2147
      %v2150 = vadd.f32 %v2142, %v2148
      %v2151 = vadd.f32 %v2143, %v2148
      %v2152 = vadd.f32 %v2144, %v2148
      %v2153 = vmax.f32 %v2150, 0.0
      %v2154 = vmax.f32 %v2151, 0.0
      %v2155 = vmax.f32 %v2152, 0.0
      %v2156 = vmul.f32 %v2153, %v1429
      %v2157 = vmul.f32 %v2154, %v1433
      %v2158 = vmul.f32 %v2155, %v1437
      %v2159 = vld [vmem:[%s29] sm:$0xff]
      %v2160 = vld [vmem:[%s31] sm:$0xff]
      %v2161 = vld [vmem:[%s33] sm:$0xff]
      %v2162 = vld [vmem:[%s35] sm:$0xff]
      %2164 = vset.pattern.permute.xlu0 4
      %2165 = vperm.xlu0 %2164, %v2159
      %v2166 = vpop.permute.xlu0 %2165
      %v2168 = vmul.f32 %v2156, %v2166
      %v2169 = vmul.f32 %v2157, %v2166
      %v2170 = vmul.f32 %v2158, %v2166
      %2174 = vrot.lane.b32.xlu0 %v2156, 21
      %v2175 = vpop.permute.xlu0 %2174
      %2176 = vrot.lane.b32.xlu0 %v2157, 21
      %v2177 = vpop.permute.xlu0 %2176
      %2178 = vrot.lane.b32.xlu0 %v2158, 21
      %v2179 = vpop.permute.xlu0 %2178
      %v2180 = vsel %vm1045, %v2175, %v2177
      %v2181 = vsel %vm1045, %v2177, %v2179
      %v2185 = vsel %vm1045, 0.0, %v2175
      %2186 = vset.pattern.permute.xlu0 0
      %2187 = vperm.xlu0 %2186, %v2159
      %v2188 = vpop.permute.xlu0 %2187
      %v2190 = vmul.f32 %v2185, %v2188
      %v2191 = vmul.f32 %v2180, %v2188
      %v2192 = vmul.f32 %v2181, %v2188
      %v2193 = vadd.f32 %v2168, %v2190
      %v2194 = vadd.f32 %v2169, %v2191
      %v2195 = vadd.f32 %v2170, %v2192
      %2196 = vrot.lane.b32.xlu0 %v2156, 20
      %v2197 = vpop.permute.xlu0 %2196
      %2198 = vrot.lane.b32.xlu0 %v2157, 20
      %v2199 = vpop.permute.xlu0 %2198
      %2200 = vrot.lane.b32.xlu0 %v2158, 20
      %v2201 = vpop.permute.xlu0 %2200
      %v2202 = vsel %vm1071, %v2197, %v2199
      %v2203 = vsel %vm1071, %v2199, %v2201
      %v2207 = vsel %vm1071, 0.0, %v2197
      %2208 = vset.pattern.permute.xlu0 1
      %2209 = vperm.xlu0 %2208, %v2159
      %v2210 = vpop.permute.xlu0 %2209
      %v2212 = vmul.f32 %v2207, %v2210
      %v2213 = vmul.f32 %v2202, %v2210
      %v2214 = vmul.f32 %v2203, %v2210
      %v2215 = vadd.f32 %v2193, %v2212
      %v2216 = vadd.f32 %v2194, %v2213
      %v2217 = vadd.f32 %v2195, %v2214
      %2218 = vrot.lane.b32.xlu0 %v2156, 19
      %v2219 = vpop.permute.xlu0 %2218
      %2220 = vrot.lane.b32.xlu0 %v2157, 19
      %v2221 = vpop.permute.xlu0 %2220
      %2222 = vrot.lane.b32.xlu0 %v2158, 19
      %v2223 = vpop.permute.xlu0 %2222
      %v2224 = vsel %vm1097, %v2219, %v2221
      %v2225 = vsel %vm1097, %v2221, %v2223
      %v2229 = vsel %vm1097, 0.0, %v2219
      %2230 = vset.pattern.permute.xlu0 2
      %2231 = vperm.xlu0 %2230, %v2159
      %v2232 = vpop.permute.xlu0 %2231
      %v2234 = vmul.f32 %v2229, %v2232
      %v2235 = vmul.f32 %v2224, %v2232
      %v2236 = vmul.f32 %v2225, %v2232
      %v2237 = vadd.f32 %v2215, %v2234
      %v2238 = vadd.f32 %v2216, %v2235
      %v2239 = vadd.f32 %v2217, %v2236
      %2240 = vrot.lane.b32.xlu0 %v2156, 1
      %v2241 = vpop.permute.xlu0 %2240
      %2242 = vrot.lane.b32.xlu0 %v2157, 1
      %v2243 = vpop.permute.xlu0 %2242
      %2244 = vrot.lane.b32.xlu0 %v2158, 1
      %v2245 = vpop.permute.xlu0 %2244
      %v2246 = vsel %vm1123, %v2241, %v2243
      %v2247 = vsel %vm1123, %v2243, %v2245
      %v2251 = vsel %vm1123, 0.0, %v2241
      %2252 = vset.pattern.permute.xlu0 3
      %2253 = vperm.xlu0 %2252, %v2159
      %v2254 = vpop.permute.xlu0 %2253
      %v2256 = vmul.f32 %v2251, %v2254
      %v2257 = vmul.f32 %v2246, %v2254
      %v2258 = vmul.f32 %v2247, %v2254
      %v2259 = vadd.f32 %v2237, %v2256
      %v2260 = vadd.f32 %v2238, %v2257
      %v2261 = vadd.f32 %v2239, %v2258
      %2262 = vrot.lane.b32.xlu0 %v2156, 127
      %v2263 = vpop.permute.xlu0 %2262
      %2264 = vrot.lane.b32.xlu0 %v2157, 127
      %v2265 = vpop.permute.xlu0 %2264
      %2266 = vrot.lane.b32.xlu0 %v2158, 127
      %v2267 = vpop.permute.xlu0 %2266
      %v2268 = vsel %vm1149, %v2263, %v2265
      %v2269 = vsel %vm1149, %v2265, %v2267
      %v2273 = vsel %vm1155, %v2267, 0.0
      %2274 = vset.pattern.permute.xlu0 5
      %2275 = vperm.xlu0 %2274, %v2159
      %v2276 = vpop.permute.xlu0 %2275
      %v2278 = vmul.f32 %v2268, %v2276
      %v2279 = vmul.f32 %v2269, %v2276
      %v2280 = vmul.f32 %v2273, %v2276
      %v2281 = vadd.f32 %v2259, %v2278
      %v2282 = vadd.f32 %v2260, %v2279
      %v2283 = vadd.f32 %v2261, %v2280
      %2284 = vrot.lane.b32.xlu0 %v2156, 109
      %v2285 = vpop.permute.xlu0 %2284
      %2286 = vrot.lane.b32.xlu0 %v2157, 109
      %v2287 = vpop.permute.xlu0 %2286
      %2288 = vrot.lane.b32.xlu0 %v2158, 109
      %v2289 = vpop.permute.xlu0 %2288
      %v2290 = vsel %vm1176, %v2285, %v2287
      %v2291 = vsel %vm1176, %v2287, %v2289
      %v2295 = vsel %vm1182, %v2289, 0.0
      %2296 = vset.pattern.permute.xlu0 6
      %2297 = vperm.xlu0 %2296, %v2159
      %v2298 = vpop.permute.xlu0 %2297
      %v2300 = vmul.f32 %v2290, %v2298
      %v2301 = vmul.f32 %v2291, %v2298
      %v2302 = vmul.f32 %v2295, %v2298
      %v2303 = vadd.f32 %v2281, %v2300
      %v2304 = vadd.f32 %v2282, %v2301
      %v2305 = vadd.f32 %v2283, %v2302
      %2306 = vrot.lane.b32.xlu0 %v2156, 108
      %v2307 = vpop.permute.xlu0 %2306
      %2308 = vrot.lane.b32.xlu0 %v2157, 108
      %v2309 = vpop.permute.xlu0 %2308
      %2310 = vrot.lane.b32.xlu0 %v2158, 108
      %v2311 = vpop.permute.xlu0 %2310
      %v2312 = vsel %vm1203, %v2307, %v2309
      %v2313 = vsel %vm1203, %v2309, %v2311
      %v2317 = vsel %vm1209, %v2311, 0.0
      %2318 = vset.pattern.permute.xlu0 7
      %2319 = vperm.xlu0 %2318, %v2159
      %v2320 = vpop.permute.xlu0 %2319
      %v2322 = vmul.f32 %v2312, %v2320
      %v2323 = vmul.f32 %v2313, %v2320
      %v2324 = vmul.f32 %v2317, %v2320
      %v2325 = vadd.f32 %v2303, %v2322
      %v2326 = vadd.f32 %v2304, %v2323
      %v2327 = vadd.f32 %v2305, %v2324
      %2328 = vrot.lane.b32.xlu0 %v2156, 107
      %v2329 = vpop.permute.xlu0 %2328
      %2330 = vrot.lane.b32.xlu0 %v2157, 107
      %v2331 = vpop.permute.xlu0 %2330
      %2332 = vrot.lane.b32.xlu0 %v2158, 107
      %v2333 = vpop.permute.xlu0 %2332
      %v2334 = vsel %vm1230, %v2329, %v2331
      %v2335 = vsel %vm1230, %v2331, %v2333
      %v2339 = vsel %vm1236, %v2333, 0.0
      %2340 = vset.pattern.permute.xlu0 8
      %2341 = vperm.xlu0 %2340, %v2159
      %v2342 = vpop.permute.xlu0 %2341
      %v2344 = vmul.f32 %v2334, %v2342
      %v2345 = vmul.f32 %v2335, %v2342
      %v2346 = vmul.f32 %v2339, %v2342
      %v2347 = vadd.f32 %v2325, %v2344
      %v2348 = vadd.f32 %v2326, %v2345
      %v2349 = vadd.f32 %v2327, %v2346
      %v2351 = vsel %vm1635, %v2160, 0
      %2353 = vmatprep.subr.mxu0 %v2348
      %2354 = vmatpush1.msra.mxu0 %v2347
      %2355 = vmatprep.subr.mxu0 0.0
      %2356 = vmatpush1.msra.mxu0 0.0
      %2357 = vmatprep.subr.mxu0 0.0
      %2358 = vmatpush1.msra.mxu0 0.0
      %2359 = vmatprep.subr.mxu0 0.0
      %2360 = vmatpush1.msra.mxu0 0.0
      %2361 = vmatprep.subr.mxu0 0.0
      %2362 = vmatpush1.msra.mxu0 0.0
      %2363 = vmatprep.subr.mxu0 0.0
      %2364 = vmatpush1.msra.mxu0 0.0
      %2365 = vmatprep.subr.mxu0 0.0
      %2366 = vmatpush1.msra.mxu0 0.0
      %2367 = vmatprep.subr.mxu0 0.0
      %2368 = vmatpush1.msra.mxu0 0.0
      %2369 = vmatprep.subr.mxu0 0.0
      %2370 = vmatpush1.msra.mxu0 0.0
      %2371 = vmatprep.subr.mxu0 0.0
      %2372 = vmatpush1.msra.mxu0 0.0
      %2373 = vmatprep.subr.mxu0 0.0
      %2374 = vmatpush1.msra.mxu0 0.0
      %2375 = vmatprep.subr.mxu0 0.0
      %2376 = vmatpush1.msra.mxu0 0.0
      %2377 = vmatprep.subr.mxu0 0.0
      %2378 = vmatpush1.msra.mxu0 0.0
      %2379 = vmatprep.subr.mxu0 0.0
      %2380 = vmatpush1.msra.mxu0 0.0
      %2381 = vmatprep.subr.mxu0 0.0
      %2382 = vmatpush1.msra.mxu0 0.0
      %2383 = vmatprep.subr.mxu0 0.0
      %2384 = vmatpush1.msra.mxu0 0.0
      %2385 = vmatprep.subr.mxu0 0.0
      %2386 = vmatpush1.msra.mxu0 0.0
      %2387 = vmatprep.subr.mxu0 0.0
      %2388 = vmatpush1.msra.mxu0 0.0
      %2389 = vmatprep.subr.mxu0 0.0
      %2390 = vmatpush1.msra.mxu0 0.0
      %2391 = vmatprep.subr.mxu0 0.0
      %2392 = vmatpush1.msra.mxu0 0.0
      %2393 = vmatprep.subr.mxu0 0.0
      %2394 = vmatpush1.msra.mxu0 0.0
      %2395 = vmatprep.subr.mxu0 0.0
      %2396 = vmatpush1.msra.mxu0 0.0
      %2397 = vmatprep.subr.mxu0 0.0
      %2398 = vmatpush1.msra.mxu0 0.0
      %2399 = vmatprep.subr.mxu0 0.0
      %2400 = vmatpush1.msra.mxu0 0.0
      %2401 = vmatprep.subr.mxu0 0.0
      %2402 = vmatpush1.msra.mxu0 0.0
      %2403 = vmatprep.subr.mxu0 0.0
      %2404 = vmatpush1.msra.mxu0 0.0
      %2405 = vmatprep.subr.mxu0 0.0
      %2406 = vmatpush1.msra.mxu0 0.0
      %2407 = vmatprep.subr.mxu0 0.0
      %2408 = vmatpush1.msra.mxu0 0.0
      %2409 = vmatprep.subr.mxu0 0.0
      %2410 = vmatpush1.msra.mxu0 0.0
      %2411 = vmatprep.subr.mxu0 0.0
      %2412 = vmatpush1.msra.mxu0 0.0
      %2413 = vmatprep.subr.mxu0 0.0
      %2414 = vmatpush1.msra.mxu0 0.0
      %2415 = vmatprep.subr.mxu0 0.0
      %2416 = vmatpush1.msra.mxu0 0.0
      %2417 = vmatprep.mubr.f32.mxu0 0.0
      %2418 = vmatmul.mubr.f32.gmra.mrb[0].mxu0 %v2351
      %v2419 = vpop.f32.mrb[0].mxu0
      %v2420 = vadd.f32 0.0, %v2419
      %v2421 = vpop.f32.mrb[0].mxu0
      %v2422 = vadd.f32 0.0, %v2421
      %2423 = vdwg.mxu0
      %2424 = vmatprep.subr.mxu0 0.0
      %2425 = vmatpush1.msra.mxu0 %v2349
      %2426 = vmatprep.subr.mxu0 0.0
      %2427 = vmatpush1.msra.mxu0 0.0
      %2428 = vmatprep.subr.mxu0 0.0
      %2429 = vmatpush1.msra.mxu0 0.0
      %2430 = vmatprep.subr.mxu0 0.0
      %2431 = vmatpush1.msra.mxu0 0.0
      %2432 = vmatprep.subr.mxu0 0.0
      %2433 = vmatpush1.msra.mxu0 0.0
      %2434 = vmatprep.subr.mxu0 0.0
      %2435 = vmatpush1.msra.mxu0 0.0
      %2436 = vmatprep.subr.mxu0 0.0
      %2437 = vmatpush1.msra.mxu0 0.0
      %2438 = vmatprep.subr.mxu0 0.0
      %2439 = vmatpush1.msra.mxu0 0.0
      %2440 = vmatprep.subr.mxu0 0.0
      %2441 = vmatpush1.msra.mxu0 0.0
      %2442 = vmatprep.subr.mxu0 0.0
      %2443 = vmatpush1.msra.mxu0 0.0
      %2444 = vmatprep.subr.mxu0 0.0
      %2445 = vmatpush1.msra.mxu0 0.0
      %2446 = vmatprep.subr.mxu0 0.0
      %2447 = vmatpush1.msra.mxu0 0.0
      %2448 = vmatprep.subr.mxu0 0.0
      %2449 = vmatpush1.msra.mxu0 0.0
      %2450 = vmatprep.subr.mxu0 0.0
      %2451 = vmatpush1.msra.mxu0 0.0
      %2452 = vmatprep.subr.mxu0 0.0
      %2453 = vmatpush1.msra.mxu0 0.0
      %2454 = vmatprep.subr.mxu0 0.0
      %2455 = vmatpush1.msra.mxu0 0.0
      %2456 = vmatprep.subr.mxu0 0.0
      %2457 = vmatpush1.msra.mxu0 0.0
      %2458 = vmatprep.subr.mxu0 0.0
      %2459 = vmatpush1.msra.mxu0 0.0
      %2460 = vmatprep.subr.mxu0 0.0
      %2461 = vmatpush1.msra.mxu0 0.0
      %2462 = vmatprep.subr.mxu0 0.0
      %2463 = vmatpush1.msra.mxu0 0.0
      %2464 = vmatprep.subr.mxu0 0.0
      %2465 = vmatpush1.msra.mxu0 0.0
      %2466 = vmatprep.subr.mxu0 0.0
      %2467 = vmatpush1.msra.mxu0 0.0
      %2468 = vmatprep.subr.mxu0 0.0
      %2469 = vmatpush1.msra.mxu0 0.0
      %2470 = vmatprep.subr.mxu0 0.0
      %2471 = vmatpush1.msra.mxu0 0.0
      %2472 = vmatprep.subr.mxu0 0.0
      %2473 = vmatpush1.msra.mxu0 0.0
      %2474 = vmatprep.subr.mxu0 0.0
      %2475 = vmatpush1.msra.mxu0 0.0
      %2476 = vmatprep.subr.mxu0 0.0
      %2477 = vmatpush1.msra.mxu0 0.0
      %2478 = vmatprep.subr.mxu0 0.0
      %2479 = vmatpush1.msra.mxu0 0.0
      %2480 = vmatprep.subr.mxu0 0.0
      %2481 = vmatpush1.msra.mxu0 0.0
      %2482 = vmatprep.subr.mxu0 0.0
      %2483 = vmatpush1.msra.mxu0 0.0
      %2484 = vmatprep.subr.mxu0 0.0
      %2485 = vmatpush1.msra.mxu0 0.0
      %2486 = vmatprep.subr.mxu0 0.0
      %2487 = vmatpush1.msra.mxu0 0.0
      %2488 = vmatprep.mubr.f32.mxu0 0.0
      %2489 = vmatmul.mubr.f32.gmra.mrb[0].mxu0 %v2351
      %v2490 = vpop.f32.mrb[0].mxu0
      %v2491 = vadd.f32 0.0, %v2490
      %v2492 = vpop.f32.mrb[0].mxu0
      %2493 = vdwg.mxu0
      %2495 = vset.pattern.permute.xlu0 0
      %2496 = vperm.xlu0 %2495, %v2161
      %v2497 = vpop.permute.xlu0 %2496
      %v2499 = vmul.f32 %v2420, %v2497
      %v2500 = vmul.f32 %v2422, %v2497
      %v2501 = vmul.f32 %v2491, %v2497
      %2503 = vset.pattern.permute.xlu0 0
      %2504 = vperm.xlu0 %2503, %v2162
      %v2505 = vpop.permute.xlu0 %2504
      %v2507 = vadd.f32 %v2499, %v2505
      %v2508 = vadd.f32 %v2500, %v2505
      %v2509 = vadd.f32 %v2501, %v2505
      %v2510 = vmax.f32 %v2507, 0.0
      %v2511 = vmax.f32 %v2508, 0.0
      %v2512 = vmax.f32 %v2509, 0.0
      %v2513 = vmul.f32 %v2510, %v1429
      %v2514 = vmul.f32 %v2511, %v1433
      %v2515 = vmul.f32 %v2512, %v1437
      %v2516 = vld [vmem:[%s37] sm:$0xff]
      %v2517 = vld [vmem:[%s39] sm:$0xff]
      %v2518 = vld [vmem:[%s41] sm:$0xff]
      %v2519 = vld [vmem:[%s43] sm:$0xff]
      %2521 = vset.pattern.permute.xlu0 4
      %2522 = vperm.xlu0 %2521, %v2516
      %v2523 = vpop.permute.xlu0 %2522
      %v2525 = vmul.f32 %v2513, %v2523
      %v2526 = vmul.f32 %v2514, %v2523
      %v2527 = vmul.f32 %v2515, %v2523
      %2531 = vrot.lane.b32.xlu0 %v2513, 21
      %v2532 = vpop.permute.xlu0 %2531
      %2533 = vrot.lane.b32.xlu0 %v2514, 21
      %v2534 = vpop.permute.xlu0 %2533
      %2535 = vrot.lane.b32.xlu0 %v2515, 21
      %v2536 = vpop.permute.xlu0 %2535
      %v2537 = vsel %vm1045, %v2532, %v2534
      %v2538 = vsel %vm1045, %v2534, %v2536
      %v2542 = vsel %vm1045, 0.0, %v2532
      %2543 = vset.pattern.permute.xlu0 0
      %2544 = vperm.xlu0 %2543, %v2516
      %v2545 = vpop.permute.xlu0 %2544
      %v2547 = vmul.f32 %v2542, %v2545
      %v2548 = vmul.f32 %v2537, %v2545
      %v2549 = vmul.f32 %v2538, %v2545
      %v2550 = vadd.f32 %v2525, %v2547
      %v2551 = vadd.f32 %v2526, %v2548
      %v2552 = vadd.f32 %v2527, %v2549
      %2553 = vrot.lane.b32.xlu0 %v2513, 20
      %v2554 = vpop.permute.xlu0 %2553
      %2555 = vrot.lane.b32.xlu0 %v2514, 20
      %v2556 = vpop.permute.xlu0 %2555
      %2557 = vrot.lane.b32.xlu0 %v2515, 20
      %v2558 = vpop.permute.xlu0 %2557
      %v2559 = vsel %vm1071, %v2554, %v2556
      %v2560 = vsel %vm1071, %v2556, %v2558
      %v2564 = vsel %vm1071, 0.0, %v2554
      %2565 = vset.pattern.permute.xlu0 1
      %2566 = vperm.xlu0 %2565, %v2516
      %v2567 = vpop.permute.xlu0 %2566
      %v2569 = vmul.f32 %v2564, %v2567
      %v2570 = vmul.f32 %v2559, %v2567
      %v2571 = vmul.f32 %v2560, %v2567
      %v2572 = vadd.f32 %v2550, %v2569
      %v2573 = vadd.f32 %v2551, %v2570
      %v2574 = vadd.f32 %v2552, %v2571
      %2575 = vrot.lane.b32.xlu0 %v2513, 19
      %v2576 = vpop.permute.xlu0 %2575
      %2577 = vrot.lane.b32.xlu0 %v2514, 19
      %v2578 = vpop.permute.xlu0 %2577
      %2579 = vrot.lane.b32.xlu0 %v2515, 19
      %v2580 = vpop.permute.xlu0 %2579
      %v2581 = vsel %vm1097, %v2576, %v2578
      %v2582 = vsel %vm1097, %v2578, %v2580
      %v2586 = vsel %vm1097, 0.0, %v2576
      %2587 = vset.pattern.permute.xlu0 2
      %2588 = vperm.xlu0 %2587, %v2516
      %v2589 = vpop.permute.xlu0 %2588
      %v2591 = vmul.f32 %v2586, %v2589
      %v2592 = vmul.f32 %v2581, %v2589
      %v2593 = vmul.f32 %v2582, %v2589
      %v2594 = vadd.f32 %v2572, %v2591
      %v2595 = vadd.f32 %v2573, %v2592
      %v2596 = vadd.f32 %v2574, %v2593
      %2597 = vrot.lane.b32.xlu0 %v2513, 1
      %v2598 = vpop.permute.xlu0 %2597
      %2599 = vrot.lane.b32.xlu0 %v2514, 1
      %v2600 = vpop.permute.xlu0 %2599
      %2601 = vrot.lane.b32.xlu0 %v2515, 1
      %v2602 = vpop.permute.xlu0 %2601
      %v2603 = vsel %vm1123, %v2598, %v2600
      %v2604 = vsel %vm1123, %v2600, %v2602
      %v2608 = vsel %vm1123, 0.0, %v2598
      %2609 = vset.pattern.permute.xlu0 3
      %2610 = vperm.xlu0 %2609, %v2516
      %v2611 = vpop.permute.xlu0 %2610
      %v2613 = vmul.f32 %v2608, %v2611
      %v2614 = vmul.f32 %v2603, %v2611
      %v2615 = vmul.f32 %v2604, %v2611
      %v2616 = vadd.f32 %v2594, %v2613
      %v2617 = vadd.f32 %v2595, %v2614
      %v2618 = vadd.f32 %v2596, %v2615
      %2619 = vrot.lane.b32.xlu0 %v2513, 127
      %v2620 = vpop.permute.xlu0 %2619
      %2621 = vrot.lane.b32.xlu0 %v2514, 127
      %v2622 = vpop.permute.xlu0 %2621
      %2623 = vrot.lane.b32.xlu0 %v2515, 127
      %v2624 = vpop.permute.xlu0 %2623
      %v2625 = vsel %vm1149, %v2620, %v2622
      %v2626 = vsel %vm1149, %v2622, %v2624
      %v2630 = vsel %vm1155, %v2624, 0.0
      %2631 = vset.pattern.permute.xlu0 5
      %2632 = vperm.xlu0 %2631, %v2516
      %v2633 = vpop.permute.xlu0 %2632
      %v2635 = vmul.f32 %v2625, %v2633
      %v2636 = vmul.f32 %v2626, %v2633
      %v2637 = vmul.f32 %v2630, %v2633
      %v2638 = vadd.f32 %v2616, %v2635
      %v2639 = vadd.f32 %v2617, %v2636
      %v2640 = vadd.f32 %v2618, %v2637
      %2641 = vrot.lane.b32.xlu0 %v2513, 109
      %v2642 = vpop.permute.xlu0 %2641
      %2643 = vrot.lane.b32.xlu0 %v2514, 109
      %v2644 = vpop.permute.xlu0 %2643
      %2645 = vrot.lane.b32.xlu0 %v2515, 109
      %v2646 = vpop.permute.xlu0 %2645
      %v2647 = vsel %vm1176, %v2642, %v2644
      %v2648 = vsel %vm1176, %v2644, %v2646
      %v2652 = vsel %vm1182, %v2646, 0.0
      %2653 = vset.pattern.permute.xlu0 6
      %2654 = vperm.xlu0 %2653, %v2516
      %v2655 = vpop.permute.xlu0 %2654
      %v2657 = vmul.f32 %v2647, %v2655
      %v2658 = vmul.f32 %v2648, %v2655
      %v2659 = vmul.f32 %v2652, %v2655
      %v2660 = vadd.f32 %v2638, %v2657
      %v2661 = vadd.f32 %v2639, %v2658
      %v2662 = vadd.f32 %v2640, %v2659
      %2663 = vrot.lane.b32.xlu0 %v2513, 108
      %v2664 = vpop.permute.xlu0 %2663
      %2665 = vrot.lane.b32.xlu0 %v2514, 108
      %v2666 = vpop.permute.xlu0 %2665
      %2667 = vrot.lane.b32.xlu0 %v2515, 108
      %v2668 = vpop.permute.xlu0 %2667
      %v2669 = vsel %vm1203, %v2664, %v2666
      %v2670 = vsel %vm1203, %v2666, %v2668
      %v2674 = vsel %vm1209, %v2668, 0.0
      %2675 = vset.pattern.permute.xlu0 7
      %2676 = vperm.xlu0 %2675, %v2516
      %v2677 = vpop.permute.xlu0 %2676
      %v2679 = vmul.f32 %v2669, %v2677
      %v2680 = vmul.f32 %v2670, %v2677
      %v2681 = vmul.f32 %v2674, %v2677
      %v2682 = vadd.f32 %v2660, %v2679
      %v2683 = vadd.f32 %v2661, %v2680
      %v2684 = vadd.f32 %v2662, %v2681
      %2685 = vrot.lane.b32.xlu0 %v2513, 107
      %v2686 = vpop.permute.xlu0 %2685
      %2687 = vrot.lane.b32.xlu0 %v2514, 107
      %v2688 = vpop.permute.xlu0 %2687
      %2689 = vrot.lane.b32.xlu0 %v2515, 107
      %v2690 = vpop.permute.xlu0 %2689
      %v2691 = vsel %vm1230, %v2686, %v2688
      %v2692 = vsel %vm1230, %v2688, %v2690
      %v2696 = vsel %vm1236, %v2690, 0.0
      %2697 = vset.pattern.permute.xlu0 8
      %2698 = vperm.xlu0 %2697, %v2516
      %v2699 = vpop.permute.xlu0 %2698
      %v2701 = vmul.f32 %v2691, %v2699
      %v2702 = vmul.f32 %v2692, %v2699
      %v2703 = vmul.f32 %v2696, %v2699
      %v2704 = vadd.f32 %v2682, %v2701
      %v2705 = vadd.f32 %v2683, %v2702
      %v2706 = vadd.f32 %v2684, %v2703
      %v2708 = vsel %vm1635, %v2517, 0
      %2710 = vmatprep.subr.mxu0 %v2705
      %2711 = vmatpush1.msra.mxu0 %v2704
      %2712 = vmatprep.subr.mxu0 0.0
      %2713 = vmatpush1.msra.mxu0 0.0
      %2714 = vmatprep.subr.mxu0 0.0
      %2715 = vmatpush1.msra.mxu0 0.0
      %2716 = vmatprep.subr.mxu0 0.0
      %2717 = vmatpush1.msra.mxu0 0.0
      %2718 = vmatprep.subr.mxu0 0.0
      %2719 = vmatpush1.msra.mxu0 0.0
      %2720 = vmatprep.subr.mxu0 0.0
      %2721 = vmatpush1.msra.mxu0 0.0
      %2722 = vmatprep.subr.mxu0 0.0
      %2723 = vmatpush1.msra.mxu0 0.0
      %2724 = vmatprep.subr.mxu0 0.0
      %2725 = vmatpush1.msra.mxu0 0.0
      %2726 = vmatprep.subr.mxu0 0.0
      %2727 = vmatpush1.msra.mxu0 0.0
      %2728 = vmatprep.subr.mxu0 0.0
      %2729 = vmatpush1.msra.mxu0 0.0
      %2730 = vmatprep.subr.mxu0 0.0
      %2731 = vmatpush1.msra.mxu0 0.0
      %2732 = vmatprep.subr.mxu0 0.0
      %2733 = vmatpush1.msra.mxu0 0.0
      %2734 = vmatprep.subr.mxu0 0.0
      %2735 = vmatpush1.msra.mxu0 0.0
      %2736 = vmatprep.subr.mxu0 0.0
      %2737 = vmatpush1.msra.mxu0 0.0
      %2738 = vmatprep.subr.mxu0 0.0
      %2739 = vmatpush1.msra.mxu0 0.0
      %2740 = vmatprep.subr.mxu0 0.0
      %2741 = vmatpush1.msra.mxu0 0.0
      %2742 = vmatprep.subr.mxu0 0.0
      %2743 = vmatpush1.msra.mxu0 0.0
      %2744 = vmatprep.subr.mxu0 0.0
      %2745 = vmatpush1.msra.mxu0 0.0
      %2746 = vmatprep.subr.mxu0 0.0
      %2747 = vmatpush1.msra.mxu0 0.0
      %2748 = vmatprep.subr.mxu0 0.0
      %2749 = vmatpush1.msra.mxu0 0.0
      %2750 = vmatprep.subr.mxu0 0.0
      %2751 = vmatpush1.msra.mxu0 0.0
      %2752 = vmatprep.subr.mxu0 0.0
      %2753 = vmatpush1.msra.mxu0 0.0
      %2754 = vmatprep.subr.mxu0 0.0
      %2755 = vmatpush1.msra.mxu0 0.0
      %2756 = vmatprep.subr.mxu0 0.0
      %2757 = vmatpush1.msra.mxu0 0.0
      %2758 = vmatprep.subr.mxu0 0.0
      %2759 = vmatpush1.msra.mxu0 0.0
      %2760 = vmatprep.subr.mxu0 0.0
      %2761 = vmatpush1.msra.mxu0 0.0
      %2762 = vmatprep.subr.mxu0 0.0
      %2763 = vmatpush1.msra.mxu0 0.0
      %2764 = vmatprep.subr.mxu0 0.0
      %2765 = vmatpush1.msra.mxu0 0.0
      %2766 = vmatprep.subr.mxu0 0.0
      %2767 = vmatpush1.msra.mxu0 0.0
      %2768 = vmatprep.subr.mxu0 0.0
      %2769 = vmatpush1.msra.mxu0 0.0
      %2770 = vmatprep.subr.mxu0 0.0
      %2771 = vmatpush1.msra.mxu0 0.0
      %2772 = vmatprep.subr.mxu0 0.0
      %2773 = vmatpush1.msra.mxu0 0.0
      %2774 = vmatprep.mubr.f32.mxu0 0.0
      %2775 = vmatmul.mubr.f32.gmra.mrb[0].mxu0 %v2708
      %v2776 = vpop.f32.mrb[0].mxu0
      %v2777 = vadd.f32 0.0, %v2776
      %v2778 = vpop.f32.mrb[0].mxu0
      %v2779 = vadd.f32 0.0, %v2778
      %2780 = vdwg.mxu0
      %2781 = vmatprep.subr.mxu0 0.0
      %2782 = vmatpush1.msra.mxu0 %v2706
      %2783 = vmatprep.subr.mxu0 0.0
      %2784 = vmatpush1.msra.mxu0 0.0
      %2785 = vmatprep.subr.mxu0 0.0
      %2786 = vmatpush1.msra.mxu0 0.0
      %2787 = vmatprep.subr.mxu0 0.0
      %2788 = vmatpush1.msra.mxu0 0.0
      %2789 = vmatprep.subr.mxu0 0.0
      %2790 = vmatpush1.msra.mxu0 0.0
      %2791 = vmatprep.subr.mxu0 0.0
      %2792 = vmatpush1.msra.mxu0 0.0
      %2793 = vmatprep.subr.mxu0 0.0
      %2794 = vmatpush1.msra.mxu0 0.0
      %2795 = vmatprep.subr.mxu0 0.0
      %2796 = vmatpush1.msra.mxu0 0.0
      %2797 = vmatprep.subr.mxu0 0.0
      %2798 = vmatpush1.msra.mxu0 0.0
      %2799 = vmatprep.subr.mxu0 0.0
      %2800 = vmatpush1.msra.mxu0 0.0
      %2801 = vmatprep.subr.mxu0 0.0
      %2802 = vmatpush1.msra.mxu0 0.0
      %2803 = vmatprep.subr.mxu0 0.0
      %2804 = vmatpush1.msra.mxu0 0.0
      %2805 = vmatprep.subr.mxu0 0.0
      %2806 = vmatpush1.msra.mxu0 0.0
      %2807 = vmatprep.subr.mxu0 0.0
      %2808 = vmatpush1.msra.mxu0 0.0
      %2809 = vmatprep.subr.mxu0 0.0
      %2810 = vmatpush1.msra.mxu0 0.0
      %2811 = vmatprep.subr.mxu0 0.0
      %2812 = vmatpush1.msra.mxu0 0.0
      %2813 = vmatprep.subr.mxu0 0.0
      %2814 = vmatpush1.msra.mxu0 0.0
      %2815 = vmatprep.subr.mxu0 0.0
      %2816 = vmatpush1.msra.mxu0 0.0
      %2817 = vmatprep.subr.mxu0 0.0
      %2818 = vmatpush1.msra.mxu0 0.0
      %2819 = vmatprep.subr.mxu0 0.0
      %2820 = vmatpush1.msra.mxu0 0.0
      %2821 = vmatprep.subr.mxu0 0.0
      %2822 = vmatpush1.msra.mxu0 0.0
      %2823 = vmatprep.subr.mxu0 0.0
      %2824 = vmatpush1.msra.mxu0 0.0
      %2825 = vmatprep.subr.mxu0 0.0
      %2826 = vmatpush1.msra.mxu0 0.0
      %2827 = vmatprep.subr.mxu0 0.0
      %2828 = vmatpush1.msra.mxu0 0.0
      %2829 = vmatprep.subr.mxu0 0.0
      %2830 = vmatpush1.msra.mxu0 0.0
      %2831 = vmatprep.subr.mxu0 0.0
      %2832 = vmatpush1.msra.mxu0 0.0
      %2833 = vmatprep.subr.mxu0 0.0
      %2834 = vmatpush1.msra.mxu0 0.0
      %2835 = vmatprep.subr.mxu0 0.0
      %2836 = vmatpush1.msra.mxu0 0.0
      %2837 = vmatprep.subr.mxu0 0.0
      %2838 = vmatpush1.msra.mxu0 0.0
      %2839 = vmatprep.subr.mxu0 0.0
      %2840 = vmatpush1.msra.mxu0 0.0
      %2841 = vmatprep.subr.mxu0 0.0
      %2842 = vmatpush1.msra.mxu0 0.0
      %2843 = vmatprep.subr.mxu0 0.0
      %2844 = vmatpush1.msra.mxu0 0.0
      %2845 = vmatprep.mubr.f32.mxu0 0.0
      %2846 = vmatmul.mubr.f32.gmra.mrb[0].mxu0 %v2708
      %v2847 = vpop.f32.mrb[0].mxu0
      %v2848 = vadd.f32 0.0, %v2847
      %v2849 = vpop.f32.mrb[0].mxu0
      %2850 = vdwg.mxu0
      %2852 = vset.pattern.permute.xlu0 0
      %2853 = vperm.xlu0 %2852, %v2518
      %v2854 = vpop.permute.xlu0 %2853
      %v2856 = vmul.f32 %v2777, %v2854
      %v2857 = vmul.f32 %v2779, %v2854
      %v2858 = vmul.f32 %v2848, %v2854
      %2860 = vset.pattern.permute.xlu0 0
      %2861 = vperm.xlu0 %2860, %v2519
      %v2862 = vpop.permute.xlu0 %2861
      %v2864 = vadd.f32 %v2856, %v2862
      %v2865 = vadd.f32 %v2857, %v2862
      %v2866 = vadd.f32 %v2858, %v2862
      %v2867 = vmax.f32 %v2864, 0.0
      %v2868 = vmax.f32 %v2865, 0.0
      %v2869 = vmax.f32 %v2866, 0.0
      %v2870 = vmul.f32 %v2867, %v1429
      %v2871 = vmul.f32 %v2868, %v1433
      %v2872 = vmul.f32 %v2869, %v1437
      %v2873 = vld [vmem:[%s45] sm:$0xff]
      %v2874 = vld [vmem:[%s45 + $0x8] sm:$0xff]
      %v2875 = vld [vmem:[%s47] sm:$0xff]
      %v2876 = vld [vmem:[%s49] sm:$0xff]
      %v2877 = vld [vmem:[%s51] sm:$0xff]
      %2879 = vset.pattern.permute.xlu0 4
      %2880 = vperm.xlu0 %2879, %v2873
      %v2881 = vpop.permute.xlu0 %2880
      %2884 = vset.pattern.permute.xlu0 4
      %2885 = vperm.xlu0 %2884, %v2874
      %v2886 = vpop.permute.xlu0 %2885
      %v2888 = vmul.f32 %v2870, %v2881
      %v2889 = vmul.f32 %v2871, %v2881
      %v2890 = vmul.f32 %v2872, %v2881
      %v2891 = vmul.f32 %v2513, %v2886
      %v2892 = vmul.f32 %v2514, %v2886
      %v2893 = vmul.f32 %v2515, %v2886
      %2897 = vrot.lane.b32.xlu0 %v2870, 21
      %v2898 = vpop.permute.xlu0 %2897
      %2899 = vrot.lane.b32.xlu0 %v2871, 21
      %v2900 = vpop.permute.xlu0 %2899
      %2901 = vrot.lane.b32.xlu0 %v2872, 21
      %v2902 = vpop.permute.xlu0 %2901
      %v2903 = vsel %vm1045, %v2898, %v2900
      %v2904 = vsel %vm1045, %v2900, %v2902
      %v2908 = vsel %vm1045, 0.0, %v2898
      %2909 = vset.pattern.permute.xlu0 0
      %2910 = vperm.xlu0 %2909, %v2873
      %v2911 = vpop.permute.xlu0 %2910
      %2913 = vset.pattern.permute.xlu0 0
      %2914 = vperm.xlu0 %2913, %v2874
      %v2915 = vpop.permute.xlu0 %2914
      %v2917 = vmul.f32 %v2908, %v2911
      %v2918 = vmul.f32 %v2903, %v2911
      %v2919 = vmul.f32 %v2904, %v2911
      %v2920 = vmul.f32 %v2542, %v2915
      %v2921 = vmul.f32 %v2537, %v2915
      %v2922 = vmul.f32 %v2538, %v2915
      %v2923 = vadd.f32 %v2888, %v2917
      %v2924 = vadd.f32 %v2889, %v2918
      %v2925 = vadd.f32 %v2890, %v2919
      %v2926 = vadd.f32 %v2891, %v2920
      %v2927 = vadd.f32 %v2892, %v2921
      %v2928 = vadd.f32 %v2893, %v2922
      %2929 = vrot.lane.b32.xlu0 %v2870, 20
      %v2930 = vpop.permute.xlu0 %2929
      %2931 = vrot.lane.b32.xlu0 %v2871, 20
      %v2932 = vpop.permute.xlu0 %2931
      %2933 = vrot.lane.b32.xlu0 %v2872, 20
      %v2934 = vpop.permute.xlu0 %2933
      %v2935 = vsel %vm1071, %v2930, %v2932
      %v2936 = vsel %vm1071, %v2932, %v2934
      %v2940 = vsel %vm1071, 0.0, %v2930
      %2941 = vset.pattern.permute.xlu0 1
      %2942 = vperm.xlu0 %2941, %v2873
      %v2943 = vpop.permute.xlu0 %2942
      %2945 = vset.pattern.permute.xlu0 1
      %2946 = vperm.xlu0 %2945, %v2874
      %v2947 = vpop.permute.xlu0 %2946
      %v2949 = vmul.f32 %v2940, %v2943
      %v2950 = vmul.f32 %v2935, %v2943
      %v2951 = vmul.f32 %v2936, %v2943
      %v2952 = vmul.f32 %v2564, %v2947
      %v2953 = vmul.f32 %v2559, %v2947
      %v2954 = vmul.f32 %v2560, %v2947
      %v2955 = vadd.f32 %v2923, %v2949
      %v2956 = vadd.f32 %v2924, %v2950
      %v2957 = vadd.f32 %v2925, %v2951
      %v2958 = vadd.f32 %v2926, %v2952
      %v2959 = vadd.f32 %v2927, %v2953
      %v2960 = vadd.f32 %v2928, %v2954
      %2961 = vrot.lane.b32.xlu0 %v2870, 19
      %v2962 = vpop.permute.xlu0 %2961
      %2963 = vrot.lane.b32.xlu0 %v2871, 19
      %v2964 = vpop.permute.xlu0 %2963
      %2965 = vrot.lane.b32.xlu0 %v2872, 19
      %v2966 = vpop.permute.xlu0 %2965
      %v2967 = vsel %vm1097, %v2962, %v2964
      %v2968 = vsel %vm1097, %v2964, %v2966
      %v2972 = vsel %vm1097, 0.0, %v2962
      %2973 = vset.pattern.permute.xlu0 2
      %2974 = vperm.xlu0 %2973, %v2873
      %v2975 = vpop.permute.xlu0 %2974
      %2977 = vset.pattern.permute.xlu0 2
      %2978 = vperm.xlu0 %2977, %v2874
      %v2979 = vpop.permute.xlu0 %2978
      %v2981 = vmul.f32 %v2972, %v2975
      %v2982 = vmul.f32 %v2967, %v2975
      %v2983 = vmul.f32 %v2968, %v2975
      %v2984 = vmul.f32 %v2586, %v2979
      %v2985 = vmul.f32 %v2581, %v2979
      %v2986 = vmul.f32 %v2582, %v2979
      %v2987 = vadd.f32 %v2955, %v2981
      %v2988 = vadd.f32 %v2956, %v2982
      %v2989 = vadd.f32 %v2957, %v2983
      %v2990 = vadd.f32 %v2958, %v2984
      %v2991 = vadd.f32 %v2959, %v2985
      %v2992 = vadd.f32 %v2960, %v2986
      %2993 = vrot.lane.b32.xlu0 %v2870, 1
      %v2994 = vpop.permute.xlu0 %2993
      %2995 = vrot.lane.b32.xlu0 %v2871, 1
      %v2996 = vpop.permute.xlu0 %2995
      %2997 = vrot.lane.b32.xlu0 %v2872, 1
      %v2998 = vpop.permute.xlu0 %2997
      %v2999 = vsel %vm1123, %v2994, %v2996
      %v3000 = vsel %vm1123, %v2996, %v2998
      %v3004 = vsel %vm1123, 0.0, %v2994
      %3005 = vset.pattern.permute.xlu0 3
      %3006 = vperm.xlu0 %3005, %v2873
      %v3007 = vpop.permute.xlu0 %3006
      %3009 = vset.pattern.permute.xlu0 3
      %3010 = vperm.xlu0 %3009, %v2874
      %v3011 = vpop.permute.xlu0 %3010
      %v3013 = vmul.f32 %v3004, %v3007
      %v3014 = vmul.f32 %v2999, %v3007
      %v3015 = vmul.f32 %v3000, %v3007
      %v3016 = vmul.f32 %v2608, %v3011
      %v3017 = vmul.f32 %v2603, %v3011
      %v3018 = vmul.f32 %v2604, %v3011
      %v3019 = vadd.f32 %v2987, %v3013
      %v3020 = vadd.f32 %v2988, %v3014
      %v3021 = vadd.f32 %v2989, %v3015
      %v3022 = vadd.f32 %v2990, %v3016
      %v3023 = vadd.f32 %v2991, %v3017
      %v3024 = vadd.f32 %v2992, %v3018
      %3025 = vrot.lane.b32.xlu0 %v2870, 127
      %v3026 = vpop.permute.xlu0 %3025
      %3027 = vrot.lane.b32.xlu0 %v2871, 127
      %v3028 = vpop.permute.xlu0 %3027
      %3029 = vrot.lane.b32.xlu0 %v2872, 127
      %v3030 = vpop.permute.xlu0 %3029
      %v3031 = vsel %vm1149, %v3026, %v3028
      %v3032 = vsel %vm1149, %v3028, %v3030
      %v3036 = vsel %vm1155, %v3030, 0.0
      %3037 = vset.pattern.permute.xlu0 5
      %3038 = vperm.xlu0 %3037, %v2873
      %v3039 = vpop.permute.xlu0 %3038
      %3041 = vset.pattern.permute.xlu0 5
      %3042 = vperm.xlu0 %3041, %v2874
      %v3043 = vpop.permute.xlu0 %3042
      %v3045 = vmul.f32 %v3031, %v3039
      %v3046 = vmul.f32 %v3032, %v3039
      %v3047 = vmul.f32 %v3036, %v3039
      %v3048 = vmul.f32 %v2625, %v3043
      %v3049 = vmul.f32 %v2626, %v3043
      %v3050 = vmul.f32 %v2630, %v3043
      %v3051 = vadd.f32 %v3019, %v3045
      %v3052 = vadd.f32 %v3020, %v3046
      %v3053 = vadd.f32 %v3021, %v3047
      %v3054 = vadd.f32 %v3022, %v3048
      %v3055 = vadd.f32 %v3023, %v3049
      %v3056 = vadd.f32 %v3024, %v3050
      %3057 = vrot.lane.b32.xlu0 %v2870, 109
      %v3058 = vpop.permute.xlu0 %3057
      %3059 = vrot.lane.b32.xlu0 %v2871, 109
      %v3060 = vpop.permute.xlu0 %3059
      %3061 = vrot.lane.b32.xlu0 %v2872, 109
      %v3062 = vpop.permute.xlu0 %3061
      %v3063 = vsel %vm1176, %v3058, %v3060
      %v3064 = vsel %vm1176, %v3060, %v3062
      %v3068 = vsel %vm1182, %v3062, 0.0
      %3069 = vset.pattern.permute.xlu0 6
      %3070 = vperm.xlu0 %3069, %v2873
      %v3071 = vpop.permute.xlu0 %3070
      %3073 = vset.pattern.permute.xlu0 6
      %3074 = vperm.xlu0 %3073, %v2874
      %v3075 = vpop.permute.xlu0 %3074
      %v3077 = vmul.f32 %v3063, %v3071
      %v3078 = vmul.f32 %v3064, %v3071
      %v3079 = vmul.f32 %v3068, %v3071
      %v3080 = vmul.f32 %v2647, %v3075
      %v3081 = vmul.f32 %v2648, %v3075
      %v3082 = vmul.f32 %v2652, %v3075
      %v3083 = vadd.f32 %v3051, %v3077
      %v3084 = vadd.f32 %v3052, %v3078
      %v3085 = vadd.f32 %v3053, %v3079
      %v3086 = vadd.f32 %v3054, %v3080
      %v3087 = vadd.f32 %v3055, %v3081
      %v3088 = vadd.f32 %v3056, %v3082
      %3089 = vrot.lane.b32.xlu0 %v2870, 108
      %v3090 = vpop.permute.xlu0 %3089
      %3091 = vrot.lane.b32.xlu0 %v2871, 108
      %v3092 = vpop.permute.xlu0 %3091
      %3093 = vrot.lane.b32.xlu0 %v2872, 108
      %v3094 = vpop.permute.xlu0 %3093
      %v3095 = vsel %vm1203, %v3090, %v3092
      %v3096 = vsel %vm1203, %v3092, %v3094
      %v3100 = vsel %vm1209, %v3094, 0.0
      %3101 = vset.pattern.permute.xlu0 7
      %3102 = vperm.xlu0 %3101, %v2873
      %v3103 = vpop.permute.xlu0 %3102
      %3105 = vset.pattern.permute.xlu0 7
      %3106 = vperm.xlu0 %3105, %v2874
      %v3107 = vpop.permute.xlu0 %3106
      %v3109 = vmul.f32 %v3095, %v3103
      %v3110 = vmul.f32 %v3096, %v3103
      %v3111 = vmul.f32 %v3100, %v3103
      %v3112 = vmul.f32 %v2669, %v3107
      %v3113 = vmul.f32 %v2670, %v3107
      %v3114 = vmul.f32 %v2674, %v3107
      %v3115 = vadd.f32 %v3083, %v3109
      %v3116 = vadd.f32 %v3084, %v3110
      %v3117 = vadd.f32 %v3085, %v3111
      %v3118 = vadd.f32 %v3086, %v3112
      %v3119 = vadd.f32 %v3087, %v3113
      %v3120 = vadd.f32 %v3088, %v3114
      %3121 = vrot.lane.b32.xlu0 %v2870, 107
      %v3122 = vpop.permute.xlu0 %3121
      %3123 = vrot.lane.b32.xlu0 %v2871, 107
      %v3124 = vpop.permute.xlu0 %3123
      %3125 = vrot.lane.b32.xlu0 %v2872, 107
      %v3126 = vpop.permute.xlu0 %3125
      %v3127 = vsel %vm1230, %v3122, %v3124
      %v3128 = vsel %vm1230, %v3124, %v3126
      %v3132 = vsel %vm1236, %v3126, 0.0
      %3133 = vset.pattern.permute.xlu0 8
      %3134 = vperm.xlu0 %3133, %v2873
      %v3135 = vpop.permute.xlu0 %3134
      %3137 = vset.pattern.permute.xlu0 8
      %3138 = vperm.xlu0 %3137, %v2874
      %v3139 = vpop.permute.xlu0 %3138
      %v3141 = vmul.f32 %v3127, %v3135
      %v3142 = vmul.f32 %v3128, %v3135
      %v3143 = vmul.f32 %v3132, %v3135
      %v3144 = vmul.f32 %v2691, %v3139
      %v3145 = vmul.f32 %v2692, %v3139
      %v3146 = vmul.f32 %v2696, %v3139
      %v3147 = vadd.f32 %v3115, %v3141
      %v3148 = vadd.f32 %v3116, %v3142
      %v3149 = vadd.f32 %v3117, %v3143
      %v3150 = vadd.f32 %v3118, %v3144
      %v3151 = vadd.f32 %v3119, %v3145
      %v3152 = vadd.f32 %v3120, %v3146
      %vm3153 = vcmask 130048
      %v3155 = vsel %vm3153, %v2875, 0
      %3157 = vmatprep.subr.mxu0 %v3148
      %3158 = vmatpush1.msra.mxu0 %v3147
      %3159 = vmatprep.subr.mxu0 %v3151
      %3160 = vmatpush1.msra.mxu0 %v3150
      %3161 = vmatprep.subr.mxu0 0.0
      %3162 = vmatpush1.msra.mxu0 0.0
      %3163 = vmatprep.subr.mxu0 0.0
      %3164 = vmatpush1.msra.mxu0 0.0
      %3165 = vmatprep.subr.mxu0 0.0
      %3166 = vmatpush1.msra.mxu0 0.0
      %3167 = vmatprep.subr.mxu0 0.0
      %3168 = vmatpush1.msra.mxu0 0.0
      %3169 = vmatprep.subr.mxu0 0.0
      %3170 = vmatpush1.msra.mxu0 0.0
      %3171 = vmatprep.subr.mxu0 0.0
      %3172 = vmatpush1.msra.mxu0 0.0
      %3173 = vmatprep.subr.mxu0 0.0
      %3174 = vmatpush1.msra.mxu0 0.0
      %3175 = vmatprep.subr.mxu0 0.0
      %3176 = vmatpush1.msra.mxu0 0.0
      %3177 = vmatprep.subr.mxu0 0.0
      %3178 = vmatpush1.msra.mxu0 0.0
      %3179 = vmatprep.subr.mxu0 0.0
      %3180 = vmatpush1.msra.mxu0 0.0
      %3181 = vmatprep.subr.mxu0 0.0
      %3182 = vmatpush1.msra.mxu0 0.0
      %3183 = vmatprep.subr.mxu0 0.0
      %3184 = vmatpush1.msra.mxu0 0.0
      %3185 = vmatprep.subr.mxu0 0.0
      %3186 = vmatpush1.msra.mxu0 0.0
      %3187 = vmatprep.subr.mxu0 0.0
      %3188 = vmatpush1.msra.mxu0 0.0
      %3189 = vmatprep.subr.mxu0 0.0
      %3190 = vmatpush1.msra.mxu0 0.0
      %3191 = vmatprep.subr.mxu0 0.0
      %3192 = vmatpush1.msra.mxu0 0.0
      %3193 = vmatprep.subr.mxu0 0.0
      %3194 = vmatpush1.msra.mxu0 0.0
      %3195 = vmatprep.subr.mxu0 0.0
      %3196 = vmatpush1.msra.mxu0 0.0
      %3197 = vmatprep.subr.mxu0 0.0
      %3198 = vmatpush1.msra.mxu0 0.0
      %3199 = vmatprep.subr.mxu0 0.0
      %3200 = vmatpush1.msra.mxu0 0.0
      %3201 = vmatprep.subr.mxu0 0.0
      %3202 = vmatpush1.msra.mxu0 0.0
      %3203 = vmatprep.subr.mxu0 0.0
      %3204 = vmatpush1.msra.mxu0 0.0
      %3205 = vmatprep.subr.mxu0 0.0
      %3206 = vmatpush1.msra.mxu0 0.0
      %3207 = vmatprep.subr.mxu0 0.0
      %3208 = vmatpush1.msra.mxu0 0.0
      %3209 = vmatprep.subr.mxu0 0.0
      %3210 = vmatpush1.msra.mxu0 0.0
      %3211 = vmatprep.subr.mxu0 0.0
      %3212 = vmatpush1.msra.mxu0 0.0
      %3213 = vmatprep.subr.mxu0 0.0
      %3214 = vmatpush1.msra.mxu0 0.0
      %3215 = vmatprep.subr.mxu0 0.0
      %3216 = vmatpush1.msra.mxu0 0.0
      %3217 = vmatprep.subr.mxu0 0.0
      %3218 = vmatpush1.msra.mxu0 0.0
      %3219 = vmatprep.subr.mxu0 0.0
      %3220 = vmatpush1.msra.mxu0 0.0
      %3221 = vmatprep.mubr.f32.mxu0 0.0
      %3222 = vmatmul.mubr.f32.gmra.mrb[0].mxu0 %v3155
      %v3223 = vpop.f32.mrb[0].mxu0
      %v3224 = vadd.f32 0.0, %v3223
      %v3225 = vpop.f32.mrb[0].mxu0
      %v3226 = vadd.f32 0.0, %v3225
      %3227 = vdwg.mxu0
      %3228 = vmatprep.subr.mxu0 0.0
      %3229 = vmatpush1.msra.mxu0 %v3149
      %3230 = vmatprep.subr.mxu0 0.0
      %3231 = vmatpush1.msra.mxu0 %v3152
      %3232 = vmatprep.subr.mxu0 0.0
      %3233 = vmatpush1.msra.mxu0 0.0
      %3234 = vmatprep.subr.mxu0 0.0
      %3235 = vmatpush1.msra.mxu0 0.0
      %3236 = vmatprep.subr.mxu0 0.0
      %3237 = vmatpush1.msra.mxu0 0.0
      %3238 = vmatprep.subr.mxu0 0.0
      %3239 = vmatpush1.msra.mxu0 0.0
      %3240 = vmatprep.subr.mxu0 0.0
      %3241 = vmatpush1.msra.mxu0 0.0
      %3242 = vmatprep.subr.mxu0 0.0
      %3243 = vmatpush1.msra.mxu0 0.0
      %3244 = vmatprep.subr.mxu0 0.0
      %3245 = vmatpush1.msra.mxu0 0.0
      %3246 = vmatprep.subr.mxu0 0.0
      %3247 = vmatpush1.msra.mxu0 0.0
      %3248 = vmatprep.subr.mxu0 0.0
      %3249 = vmatpush1.msra.mxu0 0.0
      %3250 = vmatprep.subr.mxu0 0.0
      %3251 = vmatpush1.msra.mxu0 0.0
      %3252 = vmatprep.subr.mxu0 0.0
      %3253 = vmatpush1.msra.mxu0 0.0
      %3254 = vmatprep.subr.mxu0 0.0
      %3255 = vmatpush1.msra.mxu0 0.0
      %3256 = vmatprep.subr.mxu0 0.0
      %3257 = vmatpush1.msra.mxu0 0.0
      %3258 = vmatprep.subr.mxu0 0.0
      %3259 = vmatpush1.msra.mxu0 0.0
      %3260 = vmatprep.subr.mxu0 0.0
      %3261 = vmatpush1.msra.mxu0 0.0
      %3262 = vmatprep.subr.mxu0 0.0
      %3263 = vmatpush1.msra.mxu0 0.0
      %3264 = vmatprep.subr.mxu0 0.0
      %3265 = vmatpush1.msra.mxu0 0.0
      %3266 = vmatprep.subr.mxu0 0.0
      %3267 = vmatpush1.msra.mxu0 0.0
      %3268 = vmatprep.subr.mxu0 0.0
      %3269 = vmatpush1.msra.mxu0 0.0
      %3270 = vmatprep.subr.mxu0 0.0
      %3271 = vmatpush1.msra.mxu0 0.0
      %3272 = vmatprep.subr.mxu0 0.0
      %3273 = vmatpush1.msra.mxu0 0.0
      %3274 = vmatprep.subr.mxu0 0.0
      %3275 = vmatpush1.msra.mxu0 0.0
      %3276 = vmatprep.subr.mxu0 0.0
      %3277 = vmatpush1.msra.mxu0 0.0
      %3278 = vmatprep.subr.mxu0 0.0
      %3279 = vmatpush1.msra.mxu0 0.0
      %3280 = vmatprep.subr.mxu0 0.0
      %3281 = vmatpush1.msra.mxu0 0.0
      %3282 = vmatprep.subr.mxu0 0.0
      %3283 = vmatpush1.msra.mxu0 0.0
      %3284 = vmatprep.subr.mxu0 0.0
      %3285 = vmatpush1.msra.mxu0 0.0
      %3286 = vmatprep.subr.mxu0 0.0
      %3287 = vmatpush1.msra.mxu0 0.0
      %3288 = vmatprep.subr.mxu0 0.0
      %3289 = vmatpush1.msra.mxu0 0.0
      %3290 = vmatprep.subr.mxu0 0.0
      %3291 = vmatpush1.msra.mxu0 0.0
      %3292 = vmatprep.mubr.f32.mxu0 0.0
      %3293 = vmatmul.mubr.f32.gmra.mrb[0].mxu0 %v3155
      %v3294 = vpop.f32.mrb[0].mxu0
      %v3295 = vadd.f32 0.0, %v3294
      %v3296 = vpop.f32.mrb[0].mxu0
      %3297 = vdwg.mxu0
      %3299 = vset.pattern.permute.xlu0 0
      %3300 = vperm.xlu0 %3299, %v2876
      %v3301 = vpop.permute.xlu0 %3300
      %v3303 = vmul.f32 %v3224, %v3301
      %v3304 = vmul.f32 %v3226, %v3301
      %v3305 = vmul.f32 %v3295, %v3301
      %3307 = vset.pattern.permute.xlu0 0
      %3308 = vperm.xlu0 %3307, %v2877
      %v3309 = vpop.permute.xlu0 %3308
      %v3311 = vadd.f32 %v3303, %v3309
      %v3312 = vadd.f32 %v3304, %v3309
      %v3313 = vadd.f32 %v3305, %v3309
      %v3314 = vmax.f32 %v3311, 0.0
      %v3315 = vmax.f32 %v3312, 0.0
      %v3316 = vmax.f32 %v3313, 0.0
      %v3317 = vmul.f32 %v3314, %v1429
      %v3318 = vmul.f32 %v3315, %v1433
      %v3319 = vmul.f32 %v3316, %v1437
      %v3320 = vld [vmem:[%s53] sm:$0xff]
      %v3321 = vld [vmem:[%s53 + $0x8] sm:$0xff]
      %v3322 = vld [vmem:[%s55] sm:$0xff]
      %v3323 = vld [vmem:[%s57] sm:$0xff]
      %3327 = vrot.lane.b32.xlu0 %v3317, 42
      %v3328 = vpop.permute.xlu0 %3327
      %3329 = vrot.lane.b32.xlu0 %v3318, 42
      %v3330 = vpop.permute.xlu0 %3329
      %3331 = vrot.lane.b32.xlu0 %v3319, 42
      %v3332 = vpop.permute.xlu0 %3331
      %3333 = vrot.lane.b32.xlu0 %v2156, 42
      %v3334 = vpop.permute.xlu0 %3333
      %3335 = vrot.lane.b32.xlu0 %v2157, 42
      %v3336 = vpop.permute.xlu0 %3335
      %3337 = vrot.lane.b32.xlu0 %v2158, 42
      %v3338 = vpop.permute.xlu0 %3337
      %vm3339 = vcmask 343040
      %v3340 = vsel %vm3339, %v3328, %v3330
      %v3341 = vsel %vm3339, %v3330, %v3332
      %v3342 = vsel %vm3339, %v3334, %v3336
      %v3343 = vsel %vm3339, %v3336, %v3338
      %v3350 = vsel %vm3339, 0.0, %v3328
      %v3351 = vsel %vm3339, 0.0, %v3334
      %3352 = vrot.lane.b32.xlu0 %v3317, 40
      %v3353 = vpop.permute.xlu0 %3352
      %3354 = vrot.lane.b32.xlu0 %v3318, 40
      %v3355 = vpop.permute.xlu0 %3354
      %3356 = vrot.lane.b32.xlu0 %v3319, 40
      %v3357 = vpop.permute.xlu0 %3356
      %3358 = vrot.lane.b32.xlu0 %v2156, 40
      %v3359 = vpop.permute.xlu0 %3358
      %3360 = vrot.lane.b32.xlu0 %v2157, 40
      %v3361 = vpop.permute.xlu0 %3360
      %3362 = vrot.lane.b32.xlu0 %v2158, 40
      %v3363 = vpop.permute.xlu0 %3362
      %vm3364 = vcmask 326656
      %v3365 = vsel %vm3364, %v3353, %v3355
      %v3366 = vsel %vm3364, %v3355, %v3357
      %v3367 = vsel %vm3364, %v3359, %v3361
      %v3368 = vsel %vm3364, %v3361, %v3363
      %v3375 = vsel %vm3364, 0.0, %v3353
      %v3376 = vsel %vm3364, 0.0, %v3359
      %3377 = vrot.lane.b32.xlu0 %v3317, 38
      %v3378 = vpop.permute.xlu0 %3377
      %3379 = vrot.lane.b32.xlu0 %v3318, 38
      %v3380 = vpop.permute.xlu0 %3379
      %3381 = vrot.lane.b32.xlu0 %v3319, 38
      %v3382 = vpop.permute.xlu0 %3381
      %3383 = vrot.lane.b32.xlu0 %v2156, 38
      %v3384 = vpop.permute.xlu0 %3383
      %3385 = vrot.lane.b32.xlu0 %v2157, 38
      %v3386 = vpop.permute.xlu0 %3385
      %3387 = vrot.lane.b32.xlu0 %v2158, 38
      %v3388 = vpop.permute.xlu0 %3387
      %vm3389 = vcmask 310272
      %v3390 = vsel %vm3389, %v3378, %v3380
      %v3391 = vsel %vm3389, %v3380, %v3382
      %v3392 = vsel %vm3389, %v3384, %v3386
      %v3393 = vsel %vm3389, %v3386, %v3388
      %v3400 = vsel %vm3389, 0.0, %v3378
      %v3401 = vsel %vm3389, 0.0, %v3384
      %3402 = vrot.lane.b32.xlu0 %v3317, 2
      %v3403 = vpop.permute.xlu0 %3402
      %3404 = vrot.lane.b32.xlu0 %v3318, 2
      %v3405 = vpop.permute.xlu0 %3404
      %3406 = vrot.lane.b32.xlu0 %v3319, 2
      %v3407 = vpop.permute.xlu0 %3406
      %3408 = vrot.lane.b32.xlu0 %v2156, 2
      %v3409 = vpop.permute.xlu0 %3408
      %3410 = vrot.lane.b32.xlu0 %v2157, 2
      %v3411 = vpop.permute.xlu0 %3410
      %3412 = vrot.lane.b32.xlu0 %v2158, 2
      %v3413 = vpop.permute.xlu0 %3412
      %vm3414 = vcmask 15360
      %v3415 = vsel %vm3414, %v3403, %v3405
      %v3416 = vsel %vm3414, %v3405, %v3407
      %v3417 = vsel %vm3414, %v3409, %v3411
      %v3418 = vsel %vm3414, %v3411, %v3413
      %v3425 = vsel %vm3414, 0.0, %v3403
      %v3426 = vsel %vm3414, 0.0, %v3409
      %3427 = vrot.lane.b32.xlu0 %v3317, 126
      %v3428 = vpop.permute.xlu0 %3427
      %3429 = vrot.lane.b32.xlu0 %v3318, 126
      %v3430 = vpop.permute.xlu0 %3429
      %3431 = vrot.lane.b32.xlu0 %v3319, 126
      %v3432 = vpop.permute.xlu0 %3431
      %3433 = vrot.lane.b32.xlu0 %v2156, 126
      %v3434 = vpop.permute.xlu0 %3433
      %3435 = vrot.lane.b32.xlu0 %v2157, 126
      %v3436 = vpop.permute.xlu0 %3435
      %3437 = vrot.lane.b32.xlu0 %v2158, 126
      %v3438 = vpop.permute.xlu0 %3437
      %vm3439 = vcmask 1031168
      %v3440 = vsel %vm3439, %v3428, %v3430
      %v3441 = vsel %vm3439, %v3430, %v3432
      %v3442 = vsel %vm3439, %v3434, %v3436
      %v3443 = vsel %vm3439, %v3436, %v3438
      %vm3450 = vcmask 506880
      %v3451 = vsel %vm3450, %v3432, 0.0
      %v3452 = vsel %vm3450, %v3438, 0.0
      %3453 = vrot.lane.b32.xlu0 %v3317, 90
      %v3454 = vpop.permute.xlu0 %3453
      %3455 = vrot.lane.b32.xlu0 %v3318, 90
      %v3456 = vpop.permute.xlu0 %3455
      %3457 = vrot.lane.b32.xlu0 %v3319, 90
      %v3458 = vpop.permute.xlu0 %3457
      %3459 = vrot.lane.b32.xlu0 %v2156, 90
      %v3460 = vpop.permute.xlu0 %3459
      %3461 = vrot.lane.b32.xlu0 %v2157, 90
      %v3462 = vpop.permute.xlu0 %3461
      %3463 = vrot.lane.b32.xlu0 %v2158, 90
      %v3464 = vpop.permute.xlu0 %3463
      %vm3465 = vcmask 736256
      %v3466 = vsel %vm3465, %v3454, %v3456
      %v3467 = vsel %vm3465, %v3456, %v3458
      %v3468 = vsel %vm3465, %v3460, %v3462
      %v3469 = vsel %vm3465, %v3462, %v3464
      %vm3476 = vcmask 211968
      %v3477 = vsel %vm3476, %v3458, 0.0
      %v3478 = vsel %vm3476, %v3464, 0.0
      %3479 = vrot.lane.b32.xlu0 %v3317, 88
      %v3480 = vpop.permute.xlu0 %3479
      %3481 = vrot.lane.b32.xlu0 %v3318, 88
      %v3482 = vpop.permute.xlu0 %3481
      %3483 = vrot.lane.b32.xlu0 %v3319, 88
      %v3484 = vpop.permute.xlu0 %3483
      %3485 = vrot.lane.b32.xlu0 %v2156, 88
      %v3486 = vpop.permute.xlu0 %3485
      %3487 = vrot.lane.b32.xlu0 %v2157, 88
      %v3488 = vpop.permute.xlu0 %3487
      %3489 = vrot.lane.b32.xlu0 %v2158, 88
      %v3490 = vpop.permute.xlu0 %3489
      %vm3491 = vcmask 719872
      %v3492 = vsel %vm3491, %v3480, %v3482
      %v3493 = vsel %vm3491, %v3482, %v3484
      %v3494 = vsel %vm3491, %v3486, %v3488
      %v3495 = vsel %vm3491, %v3488, %v3490
      %vm3502 = vcmask 195584
      %v3503 = vsel %vm3502, %v3484, 0.0
      %v3504 = vsel %vm3502, %v3490, 0.0
      %3505 = vrot.lane.b32.xlu0 %v3317, 86
      %v3506 = vpop.permute.xlu0 %3505
      %3507 = vrot.lane.b32.xlu0 %v3318, 86
      %v3508 = vpop.permute.xlu0 %3507
      %3509 = vrot.lane.b32.xlu0 %v3319, 86
      %v3510 = vpop.permute.xlu0 %3509
      %3511 = vrot.lane.b32.xlu0 %v2156, 86
      %v3512 = vpop.permute.xlu0 %3511
      %3513 = vrot.lane.b32.xlu0 %v2157, 86
      %v3514 = vpop.permute.xlu0 %3513
      %3515 = vrot.lane.b32.xlu0 %v2158, 86
      %v3516 = vpop.permute.xlu0 %3515
      %vm3517 = vcmask 703488
      %v3518 = vsel %vm3517, %v3506, %v3508
      %v3519 = vsel %vm3517, %v3508, %v3510
      %v3520 = vsel %vm3517, %v3512, %v3514
      %v3521 = vsel %vm3517, %v3514, %v3516
      %vm3528 = vcmask 179200
      %v3529 = vsel %vm3528, %v3510, 0.0
      %v3530 = vsel %vm3528, %v3516, 0.0
      %v3532 = vsel %vm3153, %v3321, 0
      %3534 = vmatprep.subr.mxu0 %v3340
      %3535 = vmatpush1.msra.mxu0 %v3350
      %3536 = vmatprep.subr.mxu0 %v3342
      %3537 = vmatpush1.msra.mxu0 %v3351
      %3538 = vmatprep.subr.mxu0 %v3365
      %3539 = vmatpush1.msra.mxu0 %v3375
      %3540 = vmatprep.subr.mxu0 %v3367
      %3541 = vmatpush1.msra.mxu0 %v3376
      %3542 = vmatprep.subr.mxu0 %v3390
      %3543 = vmatpush1.msra.mxu0 %v3400
      %3544 = vmatprep.subr.mxu0 %v3392
      %3545 = vmatpush1.msra.mxu0 %v3401
      %3546 = vmatprep.subr.mxu0 %v3415
      %3547 = vmatpush1.msra.mxu0 %v3425
      %3548 = vmatprep.subr.mxu0 %v3417
      %3549 = vmatpush1.msra.mxu0 %v3426
      %3550 = vmatprep.subr.mxu0 %v3318
      %3551 = vmatpush1.msra.mxu0 %v3317
      %3552 = vmatprep.subr.mxu0 %v2157
      %3553 = vmatpush1.msra.mxu0 %v2156
      %3554 = vmatprep.subr.mxu0 %v3441
      %3555 = vmatpush1.msra.mxu0 %v3440
      %3556 = vmatprep.subr.mxu0 %v3443
      %3557 = vmatpush1.msra.mxu0 %v3442
      %3558 = vmatprep.subr.mxu0 %v3467
      %3559 = vmatpush1.msra.mxu0 %v3466
      %3560 = vmatprep.subr.mxu0 %v3469
      %3561 = vmatpush1.msra.mxu0 %v3468
      %3562 = vmatprep.subr.mxu0 %v3493
      %3563 = vmatpush1.msra.mxu0 %v3492
      %3564 = vmatprep.subr.mxu0 %v3495
      %3565 = vmatpush1.msra.mxu0 %v3494
      %3566 = vmatprep.subr.mxu0 %v3519
      %3567 = vmatpush1.msra.mxu0 %v3518
      %3568 = vmatprep.subr.mxu0 %v3521
      %3569 = vmatpush1.msra.mxu0 %v3520
      %3570 = vmatprep.subr.mxu0 0.0
      %3571 = vmatpush1.msra.mxu0 0.0
      %3572 = vmatprep.subr.mxu0 0.0
      %3573 = vmatpush1.msra.mxu0 0.0
      %3574 = vmatprep.subr.mxu0 0.0
      %3575 = vmatpush1.msra.mxu0 0.0
      %3576 = vmatprep.subr.mxu0 0.0
      %3577 = vmatpush1.msra.mxu0 0.0
      %3578 = vmatprep.subr.mxu0 0.0
      %3579 = vmatpush1.msra.mxu0 0.0
      %3580 = vmatprep.subr.mxu0 0.0
      %3581 = vmatpush1.msra.mxu0 0.0
      %3582 = vmatprep.subr.mxu0 0.0
      %3583 = vmatpush1.msra.mxu0 0.0
      %3584 = vmatprep.subr.mxu0 0.0
      %3585 = vmatpush1.msra.mxu0 0.0
      %3586 = vmatprep.subr.mxu0 0.0
      %3587 = vmatpush1.msra.mxu0 0.0
      %3588 = vmatprep.subr.mxu0 0.0
      %3589 = vmatpush1.msra.mxu0 0.0
      %3590 = vmatprep.subr.mxu0 0.0
      %3591 = vmatpush1.msra.mxu0 0.0
      %3592 = vmatprep.subr.mxu0 0.0
      %3593 = vmatpush1.msra.mxu0 0.0
      %3594 = vmatprep.subr.mxu0 0.0
      %3595 = vmatpush1.msra.mxu0 0.0
      %3596 = vmatprep.subr.mxu0 0.0
      %3597 = vmatpush1.msra.mxu0 0.0
      %3598 = vmatprep.mubr.f32.mxu0 %v3532
      %3599 = vmatmul.mubr.f32.gmra.mrb[0].mxu0 %v3320
      %v3600 = vpop.f32.mrb[0].mxu0
      %v3601 = vadd.f32 0.0, %v3600
      %v3602 = vpop.f32.mrb[0].mxu0
      %v3603 = vadd.f32 0.0, %v3602
      %3604 = vdwg.mxu0
      %3605 = vmatprep.subr.mxu0 0.0
      %3606 = vmatpush1.msra.mxu0 %v3341
      %3607 = vmatprep.subr.mxu0 0.0
      %3608 = vmatpush1.msra.mxu0 %v3343
      %3609 = vmatprep.subr.mxu0 0.0
      %3610 = vmatpush1.msra.mxu0 %v3366
      %3611 = vmatprep.subr.mxu0 0.0
      %3612 = vmatpush1.msra.mxu0 %v3368
      %3613 = vmatprep.subr.mxu0 0.0
      %3614 = vmatpush1.msra.mxu0 %v3391
      %3615 = vmatprep.subr.mxu0 0.0
      %3616 = vmatpush1.msra.mxu0 %v3393
      %3617 = vmatprep.subr.mxu0 0.0
      %3618 = vmatpush1.msra.mxu0 %v3416
      %3619 = vmatprep.subr.mxu0 0.0
      %3620 = vmatpush1.msra.mxu0 %v3418
      %3621 = vmatprep.subr.mxu0 0.0
      %3622 = vmatpush1.msra.mxu0 %v3319
      %3623 = vmatprep.subr.mxu0 0.0
      %3624 = vmatpush1.msra.mxu0 %v2158
      %3625 = vmatprep.subr.mxu0 0.0
      %3626 = vmatpush1.msra.mxu0 %v3451
      %3627 = vmatprep.subr.mxu0 0.0
      %3628 = vmatpush1.msra.mxu0 %v3452
      %3629 = vmatprep.subr.mxu0 0.0
      %3630 = vmatpush1.msra.mxu0 %v3477
      %3631 = vmatprep.subr.mxu0 0.0
      %3632 = vmatpush1.msra.mxu0 %v3478
      %3633 = vmatprep.subr.mxu0 0.0
      %3634 = vmatpush1.msra.mxu0 %v3503
      %3635 = vmatprep.subr.mxu0 0.0
      %3636 = vmatpush1.msra.mxu0 %v3504
      %3637 = vmatprep.subr.mxu0 0.0
      %3638 = vmatpush1.msra.mxu0 %v3529
      %3639 = vmatprep.subr.mxu0 0.0
      %3640 = vmatpush1.msra.mxu0 %v3530
      %3641 = vmatprep.subr.mxu0 0.0
      %3642 = vmatpush1.msra.mxu0 0.0
      %3643 = vmatprep.subr.mxu0 0.0
      %3644 = vmatpush1.msra.mxu0 0.0
      %3645 = vmatprep.subr.mxu0 0.0
      %3646 = vmatpush1.msra.mxu0 0.0
      %3647 = vmatprep.subr.mxu0 0.0
      %3648 = vmatpush1.msra.mxu0 0.0
      %3649 = vmatprep.subr.mxu0 0.0
      %3650 = vmatpush1.msra.mxu0 0.0
      %3651 = vmatprep.subr.mxu0 0.0
      %3652 = vmatpush1.msra.mxu0 0.0
      %3653 = vmatprep.subr.mxu0 0.0
      %3654 = vmatpush1.msra.mxu0 0.0
      %3655 = vmatprep.subr.mxu0 0.0
      %3656 = vmatpush1.msra.mxu0 0.0
      %3657 = vmatprep.subr.mxu0 0.0
      %3658 = vmatpush1.msra.mxu0 0.0
      %3659 = vmatprep.subr.mxu0 0.0
      %3660 = vmatpush1.msra.mxu0 0.0
      %3661 = vmatprep.subr.mxu0 0.0
      %3662 = vmatpush1.msra.mxu0 0.0
      %3663 = vmatprep.subr.mxu0 0.0
      %3664 = vmatpush1.msra.mxu0 0.0
      %3665 = vmatprep.subr.mxu0 0.0
      %3666 = vmatpush1.msra.mxu0 0.0
      %3667 = vmatprep.subr.mxu0 0.0
      %3668 = vmatpush1.msra.mxu0 0.0
      %3669 = vmatprep.mubr.f32.mxu0 %v3532
      %3670 = vmatmul.mubr.f32.gmra.mrb[0].mxu0 %v3320
      %v3671 = vpop.f32.mrb[0].mxu0
      %v3672 = vadd.f32 0.0, %v3671
      %v3673 = vpop.f32.mrb[0].mxu0
      %3674 = vdwg.mxu0
      %3676 = vset.pattern.permute.xlu0 0
      %3677 = vperm.xlu0 %3676, %v3322
      %v3678 = vpop.permute.xlu0 %3677
      %v3680 = vmul.f32 %v3601, %v3678
      %v3681 = vmul.f32 %v3603, %v3678
      %v3682 = vmul.f32 %v3672, %v3678
      %3684 = vset.pattern.permute.xlu0 0
      %3685 = vperm.xlu0 %3684, %v3323
      %v3686 = vpop.permute.xlu0 %3685
      %v3688 = vadd.f32 %v3680, %v3686
      %v3689 = vadd.f32 %v3681, %v3686
      %v3690 = vadd.f32 %v3682, %v3686
      %v3691 = vmax.f32 %v3688, 0.0
      %v3692 = vmax.f32 %v3689, 0.0
      %v3693 = vmax.f32 %v3690, 0.0
      %v3694 = vmul.f32 %v3691, %v1429
      %v3695 = vmul.f32 %v3692, %v1433
      %v3696 = vmul.f32 %v3693, %v1437
      %v3697 = vld [vmem:[%s59] sm:$0xff]
      %v3698 = vld [vmem:[%s59 + $0x8] sm:$0xff]
      %v3699 = vld [vmem:[%s61] sm:$0xff]
      %v3700 = vld [vmem:[%s63] sm:$0xff]
      %v3701 = vld [vmem:[%s65] sm:$0xff]
      %3703 = vset.pattern.permute.xlu0 4
      %3704 = vperm.xlu0 %3703, %v3697
      %v3705 = vpop.permute.xlu0 %3704
      %3708 = vset.pattern.permute.xlu0 4
      %3709 = vperm.xlu0 %3708, %v3698
      %v3710 = vpop.permute.xlu0 %3709
      %v3712 = vmul.f32 %v3694, %v3705
      %v3713 = vmul.f32 %v3695, %v3705
      %v3714 = vmul.f32 %v3696, %v3705
      %v3715 = vmul.f32 %v1799, %v3710
      %v3716 = vmul.f32 %v1800, %v3710
      %v3717 = vmul.f32 %v1801, %v3710
      %3721 = vrot.lane.b32.xlu0 %v3694, 21
      %v3722 = vpop.permute.xlu0 %3721
      %3723 = vrot.lane.b32.xlu0 %v3695, 21
      %v3724 = vpop.permute.xlu0 %3723
      %3725 = vrot.lane.b32.xlu0 %v3696, 21
      %v3726 = vpop.permute.xlu0 %3725
      %v3727 = vsel %vm1045, %v3722, %v3724
      %v3728 = vsel %vm1045, %v3724, %v3726
      %v3732 = vsel %vm1045, 0.0, %v3722
      %3733 = vset.pattern.permute.xlu0 0
      %3734 = vperm.xlu0 %3733, %v3697
      %v3735 = vpop.permute.xlu0 %3734
      %3737 = vset.pattern.permute.xlu0 0
      %3738 = vperm.xlu0 %3737, %v3698
      %v3739 = vpop.permute.xlu0 %3738
      %v3741 = vmul.f32 %v3732, %v3735
      %v3742 = vmul.f32 %v3727, %v3735
      %v3743 = vmul.f32 %v3728, %v3735
      %v3744 = vmul.f32 %v1828, %v3739
      %v3745 = vmul.f32 %v1823, %v3739
      %v3746 = vmul.f32 %v1824, %v3739
      %v3747 = vadd.f32 %v3712, %v3741
      %v3748 = vadd.f32 %v3713, %v3742
      %v3749 = vadd.f32 %v3714, %v3743
      %v3750 = vadd.f32 %v3715, %v3744
      %v3751 = vadd.f32 %v3716, %v3745
      %v3752 = vadd.f32 %v3717, %v3746
      %3753 = vrot.lane.b32.xlu0 %v3694, 20
      %v3754 = vpop.permute.xlu0 %3753
      %3755 = vrot.lane.b32.xlu0 %v3695, 20
      %v3756 = vpop.permute.xlu0 %3755
      %3757 = vrot.lane.b32.xlu0 %v3696, 20
      %v3758 = vpop.permute.xlu0 %3757
      %v3759 = vsel %vm1071, %v3754, %v3756
      %v3760 = vsel %vm1071, %v3756, %v3758
      %v3764 = vsel %vm1071, 0.0, %v3754
      %3765 = vset.pattern.permute.xlu0 1
      %3766 = vperm.xlu0 %3765, %v3697
      %v3767 = vpop.permute.xlu0 %3766
      %3769 = vset.pattern.permute.xlu0 1
      %3770 = vperm.xlu0 %3769, %v3698
      %v3771 = vpop.permute.xlu0 %3770
      %v3773 = vmul.f32 %v3764, %v3767
      %v3774 = vmul.f32 %v3759, %v3767
      %v3775 = vmul.f32 %v3760, %v3767
      %v3776 = vmul.f32 %v1850, %v3771
      %v3777 = vmul.f32 %v1845, %v3771
      %v3778 = vmul.f32 %v1846, %v3771
      %v3779 = vadd.f32 %v3747, %v3773
      %v3780 = vadd.f32 %v3748, %v3774
      %v3781 = vadd.f32 %v3749, %v3775
      %v3782 = vadd.f32 %v3750, %v3776
      %v3783 = vadd.f32 %v3751, %v3777
      %v3784 = vadd.f32 %v3752, %v3778
      %3785 = vrot.lane.b32.xlu0 %v3694, 19
      %v3786 = vpop.permute.xlu0 %3785
      %3787 = vrot.lane.b32.xlu0 %v3695, 19
      %v3788 = vpop.permute.xlu0 %3787
      %3789 = vrot.lane.b32.xlu0 %v3696, 19
      %v3790 = vpop.permute.xlu0 %3789
      %v3791 = vsel %vm1097, %v3786, %v3788
      %v3792 = vsel %vm1097, %v3788, %v3790
      %v3796 = vsel %vm1097, 0.0, %v3786
      %3797 = vset.pattern.permute.xlu0 2
      %3798 = vperm.xlu0 %3797, %v3697
      %v3799 = vpop.permute.xlu0 %3798
      %3801 = vset.pattern.permute.xlu0 2
      %3802 = vperm.xlu0 %3801, %v3698
      %v3803 = vpop.permute.xlu0 %3802
      %v3805 = vmul.f32 %v3796, %v3799
      %v3806 = vmul.f32 %v3791, %v3799
      %v3807 = vmul.f32 %v3792, %v3799
      %v3808 = vmul.f32 %v1872, %v3803
      %v3809 = vmul.f32 %v1867, %v3803
      %v3810 = vmul.f32 %v1868, %v3803
      %v3811 = vadd.f32 %v3779, %v3805
      %v3812 = vadd.f32 %v3780, %v3806
      %v3813 = vadd.f32 %v3781, %v3807
      %v3814 = vadd.f32 %v3782, %v3808
      %v3815 = vadd.f32 %v3783, %v3809
      %v3816 = vadd.f32 %v3784, %v3810
      %3817 = vrot.lane.b32.xlu0 %v3694, 1
      %v3818 = vpop.permute.xlu0 %3817
      %3819 = vrot.lane.b32.xlu0 %v3695, 1
      %v3820 = vpop.permute.xlu0 %3819
      %3821 = vrot.lane.b32.xlu0 %v3696, 1
      %v3822 = vpop.permute.xlu0 %3821
      %v3823 = vsel %vm1123, %v3818, %v3820
      %v3824 = vsel %vm1123, %v3820, %v3822
      %v3828 = vsel %vm1123, 0.0, %v3818
      %3829 = vset.pattern.permute.xlu0 3
      %3830 = vperm.xlu0 %3829, %v3697
      %v3831 = vpop.permute.xlu0 %3830
      %3833 = vset.pattern.permute.xlu0 3
      %3834 = vperm.xlu0 %3833, %v3698
      %v3835 = vpop.permute.xlu0 %3834
      %v3837 = vmul.f32 %v3828, %v3831
      %v3838 = vmul.f32 %v3823, %v3831
      %v3839 = vmul.f32 %v3824, %v3831
      %v3840 = vmul.f32 %v1894, %v3835
      %v3841 = vmul.f32 %v1889, %v3835
      %v3842 = vmul.f32 %v1890, %v3835
      %v3843 = vadd.f32 %v3811, %v3837
      %v3844 = vadd.f32 %v3812, %v3838
      %v3845 = vadd.f32 %v3813, %v3839
      %v3846 = vadd.f32 %v3814, %v3840
      %v3847 = vadd.f32 %v3815, %v3841
      %v3848 = vadd.f32 %v3816, %v3842
      %3849 = vrot.lane.b32.xlu0 %v3694, 127
      %v3850 = vpop.permute.xlu0 %3849
      %3851 = vrot.lane.b32.xlu0 %v3695, 127
      %v3852 = vpop.permute.xlu0 %3851
      %3853 = vrot.lane.b32.xlu0 %v3696, 127
      %v3854 = vpop.permute.xlu0 %3853
      %v3855 = vsel %vm1149, %v3850, %v3852
      %v3856 = vsel %vm1149, %v3852, %v3854
      %v3860 = vsel %vm1155, %v3854, 0.0
      %3861 = vset.pattern.permute.xlu0 5
      %3862 = vperm.xlu0 %3861, %v3697
      %v3863 = vpop.permute.xlu0 %3862
      %3865 = vset.pattern.permute.xlu0 5
      %3866 = vperm.xlu0 %3865, %v3698
      %v3867 = vpop.permute.xlu0 %3866
      %v3869 = vmul.f32 %v3855, %v3863
      %v3870 = vmul.f32 %v3856, %v3863
      %v3871 = vmul.f32 %v3860, %v3863
      %v3872 = vmul.f32 %v1911, %v3867
      %v3873 = vmul.f32 %v1912, %v3867
      %v3874 = vmul.f32 %v1916, %v3867
      %v3875 = vadd.f32 %v3843, %v3869
      %v3876 = vadd.f32 %v3844, %v3870
      %v3877 = vadd.f32 %v3845, %v3871
      %v3878 = vadd.f32 %v3846, %v3872
      %v3879 = vadd.f32 %v3847, %v3873
      %v3880 = vadd.f32 %v3848, %v3874
      %3881 = vrot.lane.b32.xlu0 %v3694, 109
      %v3882 = vpop.permute.xlu0 %3881
      %3883 = vrot.lane.b32.xlu0 %v3695, 109
      %v3884 = vpop.permute.xlu0 %3883
      %3885 = vrot.lane.b32.xlu0 %v3696, 109
      %v3886 = vpop.permute.xlu0 %3885
      %v3887 = vsel %vm1176, %v3882, %v3884
      %v3888 = vsel %vm1176, %v3884, %v3886
      %v3892 = vsel %vm1182, %v3886, 0.0
      %3893 = vset.pattern.permute.xlu0 6
      %3894 = vperm.xlu0 %3893, %v3697
      %v3895 = vpop.permute.xlu0 %3894
      %3897 = vset.pattern.permute.xlu0 6
      %3898 = vperm.xlu0 %3897, %v3698
      %v3899 = vpop.permute.xlu0 %3898
      %v3901 = vmul.f32 %v3887, %v3895
      %v3902 = vmul.f32 %v3888, %v3895
      %v3903 = vmul.f32 %v3892, %v3895
      %v3904 = vmul.f32 %v1933, %v3899
      %v3905 = vmul.f32 %v1934, %v3899
      %v3906 = vmul.f32 %v1938, %v3899
      %v3907 = vadd.f32 %v3875, %v3901
      %v3908 = vadd.f32 %v3876, %v3902
      %v3909 = vadd.f32 %v3877, %v3903
      %v3910 = vadd.f32 %v3878, %v3904
      %v3911 = vadd.f32 %v3879, %v3905
      %v3912 = vadd.f32 %v3880, %v3906
      %3913 = vrot.lane.b32.xlu0 %v3694, 108
      %v3914 = vpop.permute.xlu0 %3913
      %3915 = vrot.lane.b32.xlu0 %v3695, 108
      %v3916 = vpop.permute.xlu0 %3915
      %3917 = vrot.lane.b32.xlu0 %v3696, 108
      %v3918 = vpop.permute.xlu0 %3917
      %v3919 = vsel %vm1203, %v3914, %v3916
      %v3920 = vsel %vm1203, %v3916, %v3918
      %v3924 = vsel %vm1209, %v3918, 0.0
      %3925 = vset.pattern.permute.xlu0 7
      %3926 = vperm.xlu0 %3925, %v3697
      %v3927 = vpop.permute.xlu0 %3926
      %3929 = vset.pattern.permute.xlu0 7
      %3930 = vperm.xlu0 %3929, %v3698
      %v3931 = vpop.permute.xlu0 %3930
      %v3933 = vmul.f32 %v3919, %v3927
      %v3934 = vmul.f32 %v3920, %v3927
      %v3935 = vmul.f32 %v3924, %v3927
      %v3936 = vmul.f32 %v1955, %v3931
      %v3937 = vmul.f32 %v1956, %v3931
      %v3938 = vmul.f32 %v1960, %v3931
      %v3939 = vadd.f32 %v3907, %v3933
      %v3940 = vadd.f32 %v3908, %v3934
      %v3941 = vadd.f32 %v3909, %v3935
      %v3942 = vadd.f32 %v3910, %v3936
      %v3943 = vadd.f32 %v3911, %v3937
      %v3944 = vadd.f32 %v3912, %v3938
      %3945 = vrot.lane.b32.xlu0 %v3694, 107
      %v3946 = vpop.permute.xlu0 %3945
      %3947 = vrot.lane.b32.xlu0 %v3695, 107
      %v3948 = vpop.permute.xlu0 %3947
      %3949 = vrot.lane.b32.xlu0 %v3696, 107
      %v3950 = vpop.permute.xlu0 %3949
      %v3951 = vsel %vm1230, %v3946, %v3948
      %v3952 = vsel %vm1230, %v3948, %v3950
      %v3956 = vsel %vm1236, %v3950, 0.0
      %3957 = vset.pattern.permute.xlu0 8
      %3958 = vperm.xlu0 %3957, %v3697
      %v3959 = vpop.permute.xlu0 %3958
      %3961 = vset.pattern.permute.xlu0 8
      %3962 = vperm.xlu0 %3961, %v3698
      %v3963 = vpop.permute.xlu0 %3962
      %v3965 = vmul.f32 %v3951, %v3959
      %v3966 = vmul.f32 %v3952, %v3959
      %v3967 = vmul.f32 %v3956, %v3959
      %v3968 = vmul.f32 %v1977, %v3963
      %v3969 = vmul.f32 %v1978, %v3963
      %v3970 = vmul.f32 %v1982, %v3963
      %v3971 = vadd.f32 %v3939, %v3965
      %v3972 = vadd.f32 %v3940, %v3966
      %v3973 = vadd.f32 %v3941, %v3967
      %v3974 = vadd.f32 %v3942, %v3968
      %v3975 = vadd.f32 %v3943, %v3969
      %v3976 = vadd.f32 %v3944, %v3970
      %v3978 = vsel %vm3153, %v3699, 0
      %3980 = vmatprep.subr.mxu0 %v3972
      %3981 = vmatpush1.msra.mxu0 %v3971
      %3982 = vmatprep.subr.mxu0 %v3975
      %3983 = vmatpush1.msra.mxu0 %v3974
      %3984 = vmatprep.subr.mxu0 0.0
      %3985 = vmatpush1.msra.mxu0 0.0
      %3986 = vmatprep.subr.mxu0 0.0
      %3987 = vmatpush1.msra.mxu0 0.0
      %3988 = vmatprep.subr.mxu0 0.0
      %3989 = vmatpush1.msra.mxu0 0.0
      %3990 = vmatprep.subr.mxu0 0.0
      %3991 = vmatpush1.msra.mxu0 0.0
      %3992 = vmatprep.subr.mxu0 0.0
      %3993 = vmatpush1.msra.mxu0 0.0
      %3994 = vmatprep.subr.mxu0 0.0
      %3995 = vmatpush1.msra.mxu0 0.0
      %3996 = vmatprep.subr.mxu0 0.0
      %3997 = vmatpush1.msra.mxu0 0.0
      %3998 = vmatprep.subr.mxu0 0.0
      %3999 = vmatpush1.msra.mxu0 0.0
      %4000 = vmatprep.subr.mxu0 0.0
      %4001 = vmatpush1.msra.mxu0 0.0
      %4002 = vmatprep.subr.mxu0 0.0
      %4003 = vmatpush1.msra.mxu0 0.0
      %4004 = vmatprep.subr.mxu0 0.0
      %4005 = vmatpush1.msra.mxu0 0.0
      %4006 = vmatprep.subr.mxu0 0.0
      %4007 = vmatpush1.msra.mxu0 0.0
      %4008 = vmatprep.subr.mxu0 0.0
      %4009 = vmatpush1.msra.mxu0 0.0
      %4010 = vmatprep.subr.mxu0 0.0
      %4011 = vmatpush1.msra.mxu0 0.0
      %4012 = vmatprep.subr.mxu0 0.0
      %4013 = vmatpush1.msra.mxu0 0.0
      %4014 = vmatprep.subr.mxu0 0.0
      %4015 = vmatpush1.msra.mxu0 0.0
      %4016 = vmatprep.subr.mxu0 0.0
      %4017 = vmatpush1.msra.mxu0 0.0
      %4018 = vmatprep.subr.mxu0 0.0
      %4019 = vmatpush1.msra.mxu0 0.0
      %4020 = vmatprep.subr.mxu0 0.0
      %4021 = vmatpush1.msra.mxu0 0.0
      %4022 = vmatprep.subr.mxu0 0.0
      %4023 = vmatpush1.msra.mxu0 0.0
      %4024 = vmatprep.subr.mxu0 0.0
      %4025 = vmatpush1.msra.mxu0 0.0
      %4026 = vmatprep.subr.mxu0 0.0
      %4027 = vmatpush1.msra.mxu0 0.0
      %4028 = vmatprep.subr.mxu0 0.0
      %4029 = vmatpush1.msra.mxu0 0.0
      %4030 = vmatprep.subr.mxu0 0.0
      %4031 = vmatpush1.msra.mxu0 0.0
      %4032 = vmatprep.subr.mxu0 0.0
      %4033 = vmatpush1.msra.mxu0 0.0
      %4034 = vmatprep.subr.mxu0 0.0
      %4035 = vmatpush1.msra.mxu0 0.0
      %4036 = vmatprep.subr.mxu0 0.0
      %4037 = vmatpush1.msra.mxu0 0.0
      %4038 = vmatprep.subr.mxu0 0.0
      %4039 = vmatpush1.msra.mxu0 0.0
      %4040 = vmatprep.subr.mxu0 0.0
      %4041 = vmatpush1.msra.mxu0 0.0
      %4042 = vmatprep.subr.mxu0 0.0
      %4043 = vmatpush1.msra.mxu0 0.0
      %4044 = vmatprep.mubr.f32.mxu0 0.0
      %4045 = vmatmul.mubr.f32.gmra.mrb[0].mxu0 %v3978
      %v4046 = vpop.f32.mrb[0].mxu0
      %v4047 = vadd.f32 0.0, %v4046
      %v4048 = vpop.f32.mrb[0].mxu0
      %v4049 = vadd.f32 0.0, %v4048
      %4050 = vdwg.mxu0
      %4051 = vmatprep.subr.mxu0 0.0
      %4052 = vmatpush1.msra.mxu0 %v3973
      %4053 = vmatprep.subr.mxu0 0.0
      %4054 = vmatpush1.msra.mxu0 %v3976
      %4055 = vmatprep.subr.mxu0 0.0
      %4056 = vmatpush1.msra.mxu0 0.0
      %4057 = vmatprep.subr.mxu0 0.0
      %4058 = vmatpush1.msra.mxu0 0.0
      %4059 = vmatprep.subr.mxu0 0.0
      %4060 = vmatpush1.msra.mxu0 0.0
      %4061 = vmatprep.subr.mxu0 0.0
      %4062 = vmatpush1.msra.mxu0 0.0
      %4063 = vmatprep.subr.mxu0 0.0
      %4064 = vmatpush1.msra.mxu0 0.0
      %4065 = vmatprep.subr.mxu0 0.0
      %4066 = vmatpush1.msra.mxu0 0.0
      %4067 = vmatprep.subr.mxu0 0.0
      %4068 = vmatpush1.msra.mxu0 0.0
      %4069 = vmatprep.subr.mxu0 0.0
      %4070 = vmatpush1.msra.mxu0 0.0
      %4071 = vmatprep.subr.mxu0 0.0
      %4072 = vmatpush1.msra.mxu0 0.0
      %4073 = vmatprep.subr.mxu0 0.0
      %4074 = vmatpush1.msra.mxu0 0.0
      %4075 = vmatprep.subr.mxu0 0.0
      %4076 = vmatpush1.msra.mxu0 0.0
      %4077 = vmatprep.subr.mxu0 0.0
      %4078 = vmatpush1.msra.mxu0 0.0
      %4079 = vmatprep.subr.mxu0 0.0
      %4080 = vmatpush1.msra.mxu0 0.0
      %4081 = vmatprep.subr.mxu0 0.0
      %4082 = vmatpush1.msra.mxu0 0.0
      %4083 = vmatprep.subr.mxu0 0.0
      %4084 = vmatpush1.msra.mxu0 0.0
      %4085 = vmatprep.subr.mxu0 0.0
      %4086 = vmatpush1.msra.mxu0 0.0
      %4087 = vmatprep.subr.mxu0 0.0
      %4088 = vmatpush1.msra.mxu0 0.0
      %4089 = vmatprep.subr.mxu0 0.0
      %4090 = vmatpush1.msra.mxu0 0.0
      %4091 = vmatprep.subr.mxu0 0.0
      %4092 = vmatpush1.msra.mxu0 0.0
      %4093 = vmatprep.subr.mxu0 0.0
      %4094 = vmatpush1.msra.mxu0 0.0
      %4095 = vmatprep.subr.mxu0 0.0
      %4096 = vmatpush1.msra.mxu0 0.0
      %4097 = vmatprep.subr.mxu0 0.0
      %4098 = vmatpush1.msra.mxu0 0.0
      %4099 = vmatprep.subr.mxu0 0.0
      %4100 = vmatpush1.msra.mxu0 0.0
      %4101 = vmatprep.subr.mxu0 0.0
      %4102 = vmatpush1.msra.mxu0 0.0
      %4103 = vmatprep.subr.mxu0 0.0
      %4104 = vmatpush1.msra.mxu0 0.0
      %4105 = vmatprep.subr.mxu0 0.0
      %4106 = vmatpush1.msra.mxu0 0.0
      %4107 = vmatprep.subr.mxu0 0.0
      %4108 = vmatpush1.msra.mxu0 0.0
      %4109 = vmatprep.subr.mxu0 0.0
      %4110 = vmatpush1.msra.mxu0 0.0
      %4111 = vmatprep.subr.mxu0 0.0
      %4112 = vmatpush1.msra.mxu0 0.0
      %4113 = vmatprep.subr.mxu0 0.0
      %4114 = vmatpush1.msra.mxu0 0.0
      %4115 = vmatprep.mubr.f32.mxu0 0.0
      %4116 = vmatmul.mubr.f32.gmra.mrb[0].mxu0 %v3978
      %v4117 = vpop.f32.mrb[0].mxu0
      %v4118 = vadd.f32 0.0, %v4117
      %v4119 = vpop.f32.mrb[0].mxu0
      %4120 = vdwg.mxu0
      %4122 = vset.pattern.permute.xlu0 0
      %4123 = vperm.xlu0 %4122, %v3700
      %v4124 = vpop.permute.xlu0 %4123
      %v4126 = vmul.f32 %v4047, %v4124
      %v4127 = vmul.f32 %v4049, %v4124
      %v4128 = vmul.f32 %v4118, %v4124
      %4130 = vset.pattern.permute.xlu0 0
      %4131 = vperm.xlu0 %4130, %v3701
      %v4132 = vpop.permute.xlu0 %4131
      %v4134 = vadd.f32 %v4126, %v4132
      %v4135 = vadd.f32 %v4127, %v4132
      %v4136 = vadd.f32 %v4128, %v4132
      %v4137 = vmax.f32 %v4134, 0.0
      %v4138 = vmax.f32 %v4135, 0.0
      %v4139 = vmax.f32 %v4136, 0.0
      %v4140 = vmul.f32 %v4137, %v1429
      %v4141 = vmul.f32 %v4138, %v1433
      %v4142 = vmul.f32 %v4139, %v1437
      %v4143 = vadd.f32 %v4140, %v1441
      %v4144 = vadd.f32 %v4141, %v1442
      %v4145 = vadd.f32 %v4142, %v1443
      %4146 = vst [vmem:[%s1014] sm:$0xff] %v4143
      %4147 = vst [vmem:[%s1014 + $0x8] sm:$0xff] %v4144
      %vm4148 = vcmask 523264
      %4149 = vst.msk [vmem:[%s1014 + $0x10] sm:$0xff] %vm4148, %v4145
      %p4150 = scmp.lt.s32.totalorder %s78, 1
      %s4151 = scalar_select %p4150, %s78, 1
      %s4152 = smul.addr %s4151, 3
      %s4153 = smul.addr %s4152, 8
      %s4154 = scalar_lea.vmem %s67, %s4153
      // Predicated region
      $region153: #{dwrsu4f_forward.1} parent=151 // pred_check
        %p4155 = pneg %p794
      $region154: #{dwrsu4f_forward.1} parent=151 // pred_check_branch
        %4157 = sbr.rel (%p4155) target = $region156
      $region155: #{dwrsu4f_forward.1} parent=151 // pred_region
        _
      $region156: #{dwrsu4f_forward.1} parent=151 // pred_fallthru
        _
    $region152: #{dwrsu4f_forward.1} parent=5 // pred_fallthru
      _
    %p4158 = scmp.le.s32.totalorder 2, %s73
    // Predicated region
    $region157: #{dwrsu4f_forward.1} parent=5 // pred_check
      %p4159 = pneg %p4158
    $region158: #{dwrsu4f_forward.1} parent=5 // pred_check_branch
      %4161 = sbr.rel (%p4159) target = $region160
    $region159: #{dwrsu4f_forward.1} parent=5 // pred_region
      %s4162 = ssub.s32 %s73, 2
      // Predicated region
      $region161: #{dwrsu4f_forward.1} parent=159 // pred_check
        %p4163 = pneg %p800
      $region162: #{dwrsu4f_forward.1} parent=159 // pred_check_branch
        %4165 = sbr.rel (%p4163) target = $region164
      $region163: #{dwrsu4f_forward.1} parent=159 // pred_region
        %p4166 = scmp.lt.s32.totalorder %s79, 1
        %s4167 = scalar_select %p4166, %s79, 1
        %s4168 = smul.addr %s4167, 3
        %s4169 = smul.addr %s4168, 8
        %s4170 = scalar_lea.vmem %s67, %s4169
      $region164: #{dwrsu4f_forward.1} parent=159 // pred_fallthru
        _
    $region160: #{dwrsu4f_forward.1} parent=5 // pred_fallthru
      _
  $region6: #{dwrsu4f_forward.1} parent=0 // loop_footer
    %s77 = sadd.s32 1, %s73
  $region7: #{dwrsu4f_forward.1} parent=0 // loop_footer_branch
    %72 = sbr.rel target = $region3
  $region8: #{dwrsu4f_forward.1} parent=0 // loop_exit
    _

</llo_original>
